<compile_context>
chip_gen: v6e
topology: v6e:2x2x1
jax: 0.10.0
libtpu: 0.0.40
codegen_flags: <defaults>
</compile_context>

<pallas_src>
import functools

import jax
import jax.numpy as jnp
from jax.experimental import pallas as pl
from jax.experimental.pallas import tpu as pltpu

NUM_CLASSES = 100
LAYER_DIMS = [600, 1024, 512, 256, 128, NUM_CLASSES]

OUT_PAD = 128          # round_up(NUM_CLASSES, 128): lane-dense output stores
MAX_BATCH_TILE = 512   # keeps the 24 MiB VMEM budget valid


def _round_up(x, m):
    return (x + m - 1) // m * m


def _cdiv(a, b):
    return (a + b - 1) // b


def _tanh_in_bf16():
    """bf16 tanh on v6e/v7x (bf16 EUP); f32 tanh on v5e (no bf16 EUP)."""
    try:
        kind = jax.devices()[0].device_kind.lower()
    except Exception:
        return True
    return not ("v5e" in kind or "v5 lite" in kind or "v5litepod" in kind)


def purchase_mlp_kernel(x_ref,
                        w1_ref, b1_ref,
                        w2_ref, b2_ref,
                        w3_ref, b3_ref,
                        w4_ref, b4_ref,
                        w5_ref, b5_ref,
                        o_ref, *, tanh_in_bf16):
    """Fused MLP: 4 x (Linear + Tanh), then the classifier Linear.

    Matmuls run on the MXU with bf16 inputs and f32 accumulation; the bias add
    stays on the f32 accumulator.  On v6e/v7x tanh runs in bf16 (half the EUP
    pushes; output is already the next matmul's input dtype); on v5e tanh stays
    in f32 and is cast to bf16 at the next matmul.
    """
    def layer(h, w_ref, b_ref, activate):
        acc = jnp.dot(h.astype(w_ref.dtype), w_ref[...],
                      preferred_element_type=jnp.float32) + b_ref[...]
        if not activate:
            return acc
        if tanh_in_bf16:
            return jnp.tanh(acc.astype(jnp.bfloat16))
        return jnp.tanh(acc)

    h = x_ref[...]                       # [bt, 600] f32; cast to bf16 in layer()
    h = layer(h, w1_ref, b1_ref, True)
    h = layer(h, w2_ref, b2_ref, True)
    h = layer(h, w3_ref, b3_ref, True)
    h = layer(h, w4_ref, b4_ref, True)
    logits = layer(h, w5_ref, b5_ref, False)
    o_ref[...] = logits.astype(o_ref.dtype)


def _choose_batch_tile(B, batch_tile):
    """Batch tile: multiple of 16, <= MAX_BATCH_TILE, and split into >= 2 grid
    steps whenever the batch allows it (the 'parallel' batch axis only shards
    across v7x's two TensorCores if the grid has >= 2 steps)."""
    bt_req = max(16, min(_round_up(batch_tile, 16), MAX_BATCH_TILE))
    n_tiles = max(_cdiv(B, bt_req), 2 if B >= 32 else 1)
    bt = _round_up(_cdiv(B, n_tiles), 16)
    return max(16, min(bt, MAX_BATCH_TILE))


@functools.partial(jax.jit, static_argnames=("batch_tile",))
def purchase_classifier(x, kparams, *, batch_tile=512):
    """x: [B, 600] float32.  kparams: output of prepare_params() ([in, out] layout)."""
    B, d_in = x.shape
    assert d_in == LAYER_DIMS[0]

    bt = _choose_batch_tile(B, batch_tile)
    b_pad = _round_up(B, bt)
    # Only the batch dim is (maybe) zero-padded; no wrapper-side feature pad or
    # dtype cast pass over x -- the kernel casts each tile to bf16 on the fly.
    x_p = x if b_pad == B else jnp.pad(x, ((0, b_pad - B), (0, 0)))

    flat_params = []
    # x block (bt, 600): 600 is the full last dim, so this block shape is legal.
    in_specs = [pl.BlockSpec((bt, d_in), lambda i: (i, 0))]
    for (w, b) in kparams:
        flat_params += [w, b]
        # Constant index_map -> the block never changes, so weights/biases stay
        # resident in VMEM across the whole grid (no per-step re-DMA).
        # (Left at default double-buffering: pl.Buffered(1) would shave ~2.6 MiB
        #  of VMEM, but the footprint is already far under every chip's budget.)
        in_specs.append(pl.BlockSpec(w.shape, lambda i: (0, 0)))
        in_specs.append(pl.BlockSpec(b.shape, lambda i: (0, 0)))

    out_spec = pl.BlockSpec((bt, OUT_PAD), lambda i: (i, 0))

    kernel = functools.partial(purchase_mlp_kernel, tanh_in_bf16=_tanh_in_bf16())

    # TODO(synk): for v5e small-batch latency, overlap the W2..W5 HBM->VMEM DMAs
    # with layer-1 compute (memory_space=pl.ANY + pltpu.make_async_copy, or a
    # prior pallas_call prefetch, P10); omitted because a one-shot in-kernel
    # prefetch interacts badly with megacore-parallel grid sharding.

    out = pl.pallas_call(
        kernel,
        out_shape=jax.ShapeDtypeStruct((b_pad, OUT_PAD), jnp.float32),
        grid_spec=pltpu.PrefetchScalarGridSpec(
            num_scalar_prefetch=0,
            grid=(b_pad // bt,),
            in_specs=in_specs,
            out_specs=out_spec,
        ),
        compiler_params=pltpu.CompilerParams(
            # Batch axis is embarrassingly parallel -> shards across v7x's 2 TCs.
            dimension_semantics=("parallel",),
            # Actual footprint ~14 MiB at bt=512 (2.6 MiB bf16 weights x2 buffers
            # + x/out tiles x2 + f32/bf16 activation temporaries); 24 MiB leaves
            # margin while staying under v7x's 32 MiB scoped default.
            vmem_limit_bytes=24 * 1024 * 1024,
        ),
    )(x_p, *flat_params)

    return out[:B, :NUM_CLASSES]


def init_params(key):
    """PyTorch nn.Linear default init: U(-1/sqrt(fan_in), 1/sqrt(fan_in)).
    Weights are produced directly in kernel layout [in, out]."""
    params = []
    for d_in, d_out in zip(LAYER_DIMS[:-1], LAYER_DIMS[1:]):
        key, kw, kb = jax.random.split(key, 3)
        bound = 1.0 / jnp.sqrt(jnp.float32(d_in))
        w = jax.random.uniform(kw, (d_in, d_out), jnp.float32, -bound, bound)
        b = jax.random.uniform(kb, (1, d_out), jnp.float32, -bound, bound)
        params.append((w, b))
    return params


def prepare_params(params, dtype=jnp.bfloat16):
    """Cast weights to the MXU compute dtype (bf16), keep biases in f32 (added to
    the f32 accumulator).  Only the classifier's N dim is zero-padded 100 -> 128
    (math unchanged, lane-dense stores); layer 1 keeps its native K=600."""
    kparams = []
    last = len(params) - 1
    for li, (w, b) in enumerate(params):
        if li == last:
            w = jnp.pad(w, ((0, 0), (0, OUT_PAD - w.shape[1])))
            b = jnp.pad(b, ((0, 0), (0, OUT_PAD - b.shape[1])))
        kparams.append((w.astype(dtype), b.astype(jnp.float32)))
    return kparams


def reference_forward(x, params):
    """Pure-JAX f32 reference with PyTorch PurchaseClassifier semantics."""
    h = x
    for (w, b) in params[:-1]:
        h = jnp.tanh(h @ w + b)
    w, b = params[-1]
    return h @ w + b


if __name__ == "__main__":
    key = jax.random.PRNGKey(0)
    key, kx = jax.random.split(key)

    # Small deterministic test: batch=40 with batch_tile=16 -> 3 grid steps,
    # a zero-padded batch tail and padded logit lanes (all sliced off outside).
    batch = 40
    x = jax.random.normal(kx, (batch, LAYER_DIMS[0]), jnp.float32)
    params = init_params(key)
    kparams = prepare_params(params, dtype=jnp.bfloat16)

    out = purchase_classifier(x, kparams, batch_tile=16)
    out = jax.block_until_ready(out)

    ref = reference_forward(x, params)
    assert out.shape == (batch, NUM_CLASSES)
    err = jnp.max(jnp.abs(out - ref))
    # bf16 MXU inputs + f32 accumulation vs pure-f32 reference: deliberate,
    # documented precision trade (per perf review).
    assert jnp.allclose(out, ref, atol=5e-2, rtol=5e-2), f"max err {err}"

    print("KERNEL_OK")
</pallas_src>

<mosaic_0001>
module attributes {stable_mosaic.version = 11 : i64} {
  func.func @purchase_mlp_kernel(%arg0: i32, %arg1: memref<16x600xf32, #tpu.memory_space<vmem>>, %arg2: memref<600x1024xbf16, #tpu.memory_space<vmem>>, %arg3: memref<1x1024xf32, #tpu.memory_space<vmem>>, %arg4: memref<1024x512xbf16, #tpu.memory_space<vmem>>, %arg5: memref<1x512xf32, #tpu.memory_space<vmem>>, %arg6: memref<512x256xbf16, #tpu.memory_space<vmem>>, %arg7: memref<1x256xf32, #tpu.memory_space<vmem>>, %arg8: memref<256x128xbf16, #tpu.memory_space<vmem>>, %arg9: memref<1x128xf32, #tpu.memory_space<vmem>>, %arg10: memref<128x128xbf16, #tpu.memory_space<vmem>>, %arg11: memref<1x128xf32, #tpu.memory_space<vmem>>, %arg12: memref<16x128xf32, #tpu.memory_space<vmem>>) attributes {dimension_semantics = [#tpu.dimension_semantics<parallel>], iteration_bounds = array<i64: 3>, scalar_prefetch = 0 : i64, scratch_operands = 0 : i64, tpu.core_type = #tpu.core_type<tc>, window_params = [{transform_indices = @transform_0, window_bounds = array<i64: 16, 600>}, {pipeline_mode = #tpu.pipeline_mode<synchronous>, transform_indices = @transform_1, window_bounds = array<i64: 600, 1024>}, {pipeline_mode = #tpu.pipeline_mode<synchronous>, transform_indices = @transform_2, window_bounds = array<i64: 1, 1024>}, {pipeline_mode = #tpu.pipeline_mode<synchronous>, transform_indices = @transform_3, window_bounds = array<i64: 1024, 512>}, {pipeline_mode = #tpu.pipeline_mode<synchronous>, transform_indices = @transform_4, window_bounds = array<i64: 1, 512>}, {pipeline_mode = #tpu.pipeline_mode<synchronous>, transform_indices = @transform_5, window_bounds = array<i64: 512, 256>}, {pipeline_mode = #tpu.pipeline_mode<synchronous>, transform_indices = @transform_6, window_bounds = array<i64: 1, 256>}, {pipeline_mode = #tpu.pipeline_mode<synchronous>, transform_indices = @transform_7, window_bounds = array<i64: 256, 128>}, {pipeline_mode = #tpu.pipeline_mode<synchronous>, transform_indices = @transform_8, window_bounds = array<i64: 1, 128>}, {pipeline_mode = #tpu.pipeline_mode<synchronous>, transform_indices = @transform_9, window_bounds = array<i64: 128, 128>}, {pipeline_mode = #tpu.pipeline_mode<synchronous>, transform_indices = @transform_10, window_bounds = array<i64: 1, 128>}, {transform_indices = @transform_11, window_bounds = array<i64: 16, 128>}]} {
    %c0 = arith.constant 0 : index
    %c0_0 = arith.constant 0 : index
    %0 = vector.load %arg1[%c0, %c0_0] : memref<16x600xf32, #tpu.memory_space<vmem>>, vector<16x600xf32>
    %1 = arith.truncf %0 : vector<16x600xf32> to vector<16x600xbf16>
    %c0_1 = arith.constant 0 : index
    %c0_2 = arith.constant 0 : index
    %2 = vector.load %arg2[%c0_1, %c0_2] : memref<600x1024xbf16, #tpu.memory_space<vmem>>, vector<600x1024xbf16>
    %cst = arith.constant dense<0.000000e+00> : vector<16x1024xf32>
    %3 = tpu.matmul %1, %2, %cst {dimension_numbers = #tpu.dot_dimension_numbers<[1], [0], [0], [1], [0, 0, 1, 1], [], []>} : vector<16x600xbf16>, vector<600x1024xbf16>, vector<16x1024xf32> -> vector<16x1024xf32>
    %c0_3 = arith.constant 0 : index
    %c0_4 = arith.constant 0 : index
    %4 = vector.load %arg3[%c0_3, %c0_4] : memref<1x1024xf32, #tpu.memory_space<vmem>>, vector<1x1024xf32>
    %5 = vector.broadcast %4 : vector<1x1024xf32> to vector<16x1024xf32>
    %6 = arith.addf %3, %5 : vector<16x1024xf32>
    %7 = arith.truncf %6 : vector<16x1024xf32> to vector<16x1024xbf16>
    %8 = math.tanh %7 : vector<16x1024xbf16>
    %c0_5 = arith.constant 0 : index
    %c0_6 = arith.constant 0 : index
    %9 = vector.load %arg4[%c0_5, %c0_6] : memref<1024x512xbf16, #tpu.memory_space<vmem>>, vector<1024x512xbf16>
    %cst_7 = arith.constant dense<0.000000e+00> : vector<16x512xf32>
    %10 = tpu.matmul %8, %9, %cst_7 {dimension_numbers = #tpu.dot_dimension_numbers<[1], [0], [0], [1], [0, 0, 1, 1], [], []>} : vector<16x1024xbf16>, vector<1024x512xbf16>, vector<16x512xf32> -> vector<16x512xf32>
    %c0_8 = arith.constant 0 : index
    %c0_9 = arith.constant 0 : index
    %11 = vector.load %arg5[%c0_8, %c0_9] : memref<1x512xf32, #tpu.memory_space<vmem>>, vector<1x512xf32>
    %12 = vector.broadcast %11 : vector<1x512xf32> to vector<16x512xf32>
    %13 = arith.addf %10, %12 : vector<16x512xf32>
    %14 = arith.truncf %13 : vector<16x512xf32> to vector<16x512xbf16>
    %15 = math.tanh %14 : vector<16x512xbf16>
    %c0_10 = arith.constant 0 : index
    %c0_11 = arith.constant 0 : index
    %16 = vector.load %arg6[%c0_10, %c0_11] : memref<512x256xbf16, #tpu.memory_space<vmem>>, vector<512x256xbf16>
    %cst_12 = arith.constant dense<0.000000e+00> : vector<16x256xf32>
    %17 = tpu.matmul %15, %16, %cst_12 {dimension_numbers = #tpu.dot_dimension_numbers<[1], [0], [0], [1], [0, 0, 1, 1], [], []>} : vector<16x512xbf16>, vector<512x256xbf16>, vector<16x256xf32> -> vector<16x256xf32>
    %c0_13 = arith.constant 0 : index
    %c0_14 = arith.constant 0 : index
    %18 = vector.load %arg7[%c0_13, %c0_14] : memref<1x256xf32, #tpu.memory_space<vmem>>, vector<1x256xf32>
    %19 = vector.broadcast %18 : vector<1x256xf32> to vector<16x256xf32>
    %20 = arith.addf %17, %19 : vector<16x256xf32>
    %21 = arith.truncf %20 : vector<16x256xf32> to vector<16x256xbf16>
    %22 = math.tanh %21 : vector<16x256xbf16>
    %c0_15 = arith.constant 0 : index
    %c0_16 = arith.constant 0 : index
    %23 = vector.load %arg8[%c0_15, %c0_16] : memref<256x128xbf16, #tpu.memory_space<vmem>>, vector<256x128xbf16>
    %cst_17 = arith.constant dense<0.000000e+00> : vector<16x128xf32>
    %24 = tpu.matmul %22, %23, %cst_17 {dimension_numbers = #tpu.dot_dimension_numbers<[1], [0], [0], [1], [0, 0, 1, 1], [], []>} : vector<16x256xbf16>, vector<256x128xbf16>, vector<16x128xf32> -> vector<16x128xf32>
    %c0_18 = arith.constant 0 : index
    %c0_19 = arith.constant 0 : index
    %25 = vector.load %arg9[%c0_18, %c0_19] : memref<1x128xf32, #tpu.memory_space<vmem>>, vector<1x128xf32>
    %26 = vector.broadcast %25 : vector<1x128xf32> to vector<16x128xf32>
    %27 = arith.addf %24, %26 : vector<16x128xf32>
    %28 = arith.truncf %27 : vector<16x128xf32> to vector<16x128xbf16>
    %29 = math.tanh %28 : vector<16x128xbf16>
    %c0_20 = arith.constant 0 : index
    %c0_21 = arith.constant 0 : index
    %30 = vector.load %arg10[%c0_20, %c0_21] : memref<128x128xbf16, #tpu.memory_space<vmem>>, vector<128x128xbf16>
    %cst_22 = arith.constant dense<0.000000e+00> : vector<16x128xf32>
    %31 = tpu.matmul %29, %30, %cst_22 {dimension_numbers = #tpu.dot_dimension_numbers<[1], [0], [0], [1], [0, 0, 1, 1], [], []>} : vector<16x128xbf16>, vector<128x128xbf16>, vector<16x128xf32> -> vector<16x128xf32>
    %c0_23 = arith.constant 0 : index
    %c0_24 = arith.constant 0 : index
    %32 = vector.load %arg11[%c0_23, %c0_24] : memref<1x128xf32, #tpu.memory_space<vmem>>, vector<1x128xf32>
    %33 = vector.broadcast %32 : vector<1x128xf32> to vector<16x128xf32>
    %34 = arith.addf %31, %33 : vector<16x128xf32>
    %c0_25 = arith.constant 0 : index
    %c0_26 = arith.constant 0 : index
    %35 = vector.load %arg12[%c0_25, %c0_26] : memref<16x128xf32, #tpu.memory_space<vmem>>, vector<16x128xf32>
    tpu.vector_store %arg12[%c0_25, %c0_26], %34 {strides = array<i32>} : memref<16x128xf32, #tpu.memory_space<vmem>>, vector<16x128xf32>,
    return
  }
  func.func @transform_0(%arg0: i32) -> (i32, i32) {
    %c0_i32 = arith.constant 0 : i32
    %c0_i32_0 = arith.constant 0 : i32
    return %arg0, %c0_i32 : i32, i32
  }
  func.func @transform_1(%arg0: i32) -> (i32, i32) {
    %c0_i32 = arith.constant 0 : i32
    %c0_i32_0 = arith.constant 0 : i32
    %c0_i32_1 = arith.constant 0 : i32
    return %c0_i32, %c0_i32_0 : i32, i32
  }
  func.func @transform_2(%arg0: i32) -> (i32, i32) {
    %c0_i32 = arith.constant 0 : i32
    %c0_i32_0 = arith.constant 0 : i32
    %c0_i32_1 = arith.constant 0 : i32
    return %c0_i32, %c0_i32_0 : i32, i32
  }
  func.func @transform_3(%arg0: i32) -> (i32, i32) {
    %c0_i32 = arith.constant 0 : i32
    %c0_i32_0 = arith.constant 0 : i32
    %c0_i32_1 = arith.constant 0 : i32
    return %c0_i32, %c0_i32_0 : i32, i32
  }
  func.func @transform_4(%arg0: i32) -> (i32, i32) {
    %c0_i32 = arith.constant 0 : i32
    %c0_i32_0 = arith.constant 0 : i32
    %c0_i32_1 = arith.constant 0 : i32
    return %c0_i32, %c0_i32_0 : i32, i32
  }
  func.func @transform_5(%arg0: i32) -> (i32, i32) {
    %c0_i32 = arith.constant 0 : i32
    %c0_i32_0 = arith.constant 0 : i32
    %c0_i32_1 = arith.constant 0 : i32
    return %c0_i32, %c0_i32_0 : i32, i32
  }
  func.func @transform_6(%arg0: i32) -> (i32, i32) {
    %c0_i32 = arith.constant 0 : i32
    %c0_i32_0 = arith.constant 0 : i32
    %c0_i32_1 = arith.constant 0 : i32
    return %c0_i32, %c0_i32_0 : i32, i32
  }
  func.func @transform_7(%arg0: i32) -> (i32, i32) {
    %c0_i32 = arith.constant 0 : i32
    %c0_i32_0 = arith.constant 0 : i32
    %c0_i32_1 = arith.constant 0 : i32
    return %c0_i32, %c0_i32_0 : i32, i32
  }
  func.func @transform_8(%arg0: i32) -> (i32, i32) {
    %c0_i32 = arith.constant 0 : i32
    %c0_i32_0 = arith.constant 0 : i32
    %c0_i32_1 = arith.constant 0 : i32
    return %c0_i32, %c0_i32_0 : i32, i32
  }
  func.func @transform_9(%arg0: i32) -> (i32, i32) {
    %c0_i32 = arith.constant 0 : i32
    %c0_i32_0 = arith.constant 0 : i32
    %c0_i32_1 = arith.constant 0 : i32
    return %c0_i32, %c0_i32_0 : i32, i32
  }
  func.func @transform_10(%arg0: i32) -> (i32, i32) {
    %c0_i32 = arith.constant 0 : i32
    %c0_i32_0 = arith.constant 0 : i32
    %c0_i32_1 = arith.constant 0 : i32
    return %c0_i32, %c0_i32_0 : i32, i32
  }
  func.func @transform_11(%arg0: i32) -> (i32, i32) {
    %c0_i32 = arith.constant 0 : i32
    %c0_i32_0 = arith.constant 0 : i32
    return %arg0, %c0_i32 : i32, i32
  }
}

</mosaic_0001>

<llo_original>
// kernel: purchase_classifier.1
$region0: #{purchase_classifier.1}
  #allocation0 [shape = 'u32[]', space=smem, size = 0x4, offset = 0x4, fixed_abs, tag = 'smem constant byte address 0x4 - core index']
  #allocation1 [shape = 'u32[144,128]{1,0:T(1,128)}', space=vmem, size = 0x12000, scoped, tag = 'internal scratch']
  %s0 = inlined_call_operand.vmem [shape: f32[48,600], index: 0, kind: input, shape index: {}]
  %s1 = inlined_call_operand.hbm [shape: bf16[600,1024], index: 1, kind: input, shape index: {}]
  %s2 = inlined_call_operand.hbm [shape: f32[1,1024], index: 2, kind: input, shape index: {}]
  %s3 = inlined_call_operand.hbm [shape: bf16[1024,512], index: 3, kind: input, shape index: {}]
  %s4 = inlined_call_operand.hbm [shape: f32[1,512], index: 4, kind: input, shape index: {}]
  %s5 = inlined_call_operand.hbm [shape: bf16[512,256], index: 5, kind: input, shape index: {}]
  %s6 = inlined_call_operand.hbm [shape: f32[1,256], index: 6, kind: input, shape index: {}]
  %s7 = inlined_call_operand.hbm [shape: bf16[256,128], index: 7, kind: input, shape index: {}]
  %s8 = inlined_call_operand.hbm [shape: f32[1,128], index: 8, kind: input, shape index: {}]
  %s9 = inlined_call_operand.hbm [shape: bf16[128,128], index: 9, kind: input, shape index: {}]
  %s10 = inlined_call_operand.hbm [shape: f32[1,128], index: 10, kind: input, shape index: {}]
  %s11 = inlined_call_operand.vmem [shape: f32[48,128], index: 11, kind: output, shape index: {}]
  %s12 = sld [smem:[#allocation0]]
  $region117: #{purchase_classifier.1} parent=0
    _
  %s14 = ssub.s32 1, %s12
  %s15 = scalar_select 0, %s14, %s12
  $region1: #{purchase_classifier.1} parent=0
    #allocation2 [shape = 'u8[1228800]{0}', space=vmem, size = 0x12c000, scoped, tag = 'input window, operand 1, single buffered']
    #allocation3 [shape = 's32[2]{0}', space=sflag, size = 0x8, scoped, tag = 'scoped memory for purchase_classifier.1']
    #allocation4 [shape = 'u8[4096]{0}', space=vmem, size = 0x1000, scoped, tag = 'input window, operand 2, single buffered']
    #allocation5 [shape = 's32[1]{0}', space=sflag, size = 0x4, scoped, tag = 'scoped memory for purchase_classifier.1']
    #allocation6 [shape = 'u8[1048576]{0}', space=vmem, size = 0x100000, scoped, tag = 'input window, operand 3, single buffered']
    #allocation7 [shape = 'u8[2048]{0}', space=vmem, size = 0x800, scoped, tag = 'input window, operand 4, single buffered']
    #allocation8 [shape = 's32[1]{0}', space=sflag, size = 0x4, scoped, tag = 'scoped memory for purchase_classifier.1']
    #allocation9 [shape = 'u8[262144]{0}', space=vmem, size = 0x40000, scoped, tag = 'input window, operand 5, single buffered']
    #allocation10 [shape = 'u8[1024]{0}', space=vmem, size = 0x400, scoped, tag = 'input window, operand 6, single buffered']
    #allocation11 [shape = 's32[1]{0}', space=sflag, size = 0x4, scoped, tag = 'scoped memory for purchase_classifier.1']
    #allocation12 [shape = 'u8[65536]{0}', space=vmem, size = 0x10000, scoped, tag = 'input window, operand 7, single buffered']
    #allocation13 [shape = 'u8[512]{0}', space=vmem, size = 0x400, scoped, tag = 'input window, operand 8, single buffered']
    #allocation14 [shape = 's32[1]{0}', space=sflag, size = 0x4, scoped, tag = 'scoped memory for purchase_classifier.1']
    #allocation15 [shape = 'u8[32768]{0}', space=vmem, size = 0x8000, scoped, tag = 'input window, operand 9, single buffered']
    #allocation16 [shape = 'u8[512]{0}', space=vmem, size = 0x400, scoped, tag = 'input window, operand 10, single buffered']
    #allocation17 [shape = 's32[1]{0}', space=sflag, size = 0x4, scoped, tag = 'scoped memory for purchase_classifier.1']
    %16 = vsyncpa [#allocation3], 0
    %17 = vsyncpa [#allocation5], 0
    %18 = vsyncpa [#allocation8], 0
    %19 = vsyncpa [#allocation11], 0
    %20 = vsyncpa [#allocation14], 0
    %21 = vsyncpa [#allocation17], 0
    loop: start=0, step=1, limit=5
    $region2: #{purchase_classifier.1} parent=1 // loop_pre_header
      _
    $region3: #{purchase_classifier.1} parent=1 // loop_header
      %s23 = sphi 0, %s27
      %p24 = scmp.ge.s32.totalorder %s23, 5
      %s33 = sphi 0, %s35
      %s36 = sphi 0, %s33
      %s37 = sphi 0, %s36
      %s53 = sphi 0, %s37
      %s57 = sphi 0, %s57
      %s59 = sphi 0, %s57
      %s60 = sphi 0, %s59
      %s74 = sphi 0, %s60
      %s78 = sphi 0, %s78
      %s80 = sphi 0, %s78
      %s81 = sphi 0, %s80
      %s95 = sphi 0, %s81
      %s99 = sphi 0, %s99
      %s101 = sphi 0, %s99
      %s102 = sphi 0, %s101
      %s116 = sphi 0, %s102
      %s120 = sphi 0, %s120
      %s122 = sphi 0, %s120
      %s123 = sphi 0, %s122
      %s137 = sphi 0, %s123
      %s141 = sphi 0, %s141
      %s143 = sphi 0, %s141
      %s144 = sphi 0, %s143
      %s158 = sphi 0, %s144
      %s162 = sphi 0, %s162
      %s164 = sphi 0, %s162
      %s165 = sphi 0, %s164
      %s179 = sphi 0, %s165
      %s183 = sphi 0, %s183
      %s185 = sphi 0, %s183
      %s186 = sphi 0, %s185
      %s200 = sphi 0, %s186
      %s204 = sphi 0, %s204
      %s206 = sphi 0, %s204
      %s207 = sphi 0, %s206
      %s221 = sphi 0, %s207
      %s225 = sphi 0, %s225
      %s227 = sphi 0, %s225
      %s228 = sphi 0, %s227
      %s242 = sphi 0, %s228
      %s246 = sphi 0, %s246
      %s248 = sphi 0, %s246
      %s249 = sphi 0, %s248
      %s263 = sphi 0, %s249
      %s269 = sphi 0, %s271
      %s272 = sphi 0, %s269
      %s273 = sphi 0, %s272
      %s289 = sphi 0, %s273
    $region4: #{purchase_classifier.1} parent=1 // loop_header_branch
      %26 = sbr.rel (%p24) target = $region8
    $region5: #{purchase_classifier.1} parent=1 // loop_body
      %s28 = ssub.s32 %s23, 1
      %s29 = ssub.s32 %s23, 2
      %s30 = sadd.s32 %s23, 1
      %s31 = ssub.s32 %s23, %s30
      %p32 = scmp.eq.s32.totalorder %s31, 0
      %s34 = sadd.s32 %s33, 1
      %s35 = scalar_select %p32, %s33, %s34
      %p38 = pneg %p32
      %p39 = scmp.eq.s32.totalorder %s23, 2
      %p40 = por %p38, %p39
      %p41 = scmp.ne.s32.totalorder %s33, %s36
      %p42 = scmp.eq.s32.totalorder %s23, 0
      %p43 = por %p41, %p42
      %p44 = scmp.ne.s32.totalorder %s33, %s36
      %p45 = scmp.eq.s32.totalorder %s28, 2
      %p46 = por %p44, %p45
      %p47 = scmp.ne.s32.totalorder %s36, %s37
      %p48 = scmp.eq.s32.totalorder %s28, 0
      %p49 = por %p47, %p48
      %p50 = scmp.ne.s32.totalorder %s36, %s37
      %p51 = scmp.eq.s32.totalorder %s29, 2
      %p52 = por %p50, %p51
      %p54 = scmp.ne.s32.totalorder %s37, %s53
      %p55 = scmp.eq.s32.totalorder %s29, 0
      %p56 = por %p54, %p55
      %s58 = sadd.s32 %s57, 1
      %p61 = scmp.eq.s32.totalorder %s23, 2
      %p62 = scmp.ne.s32.totalorder %s57, %s59
      %p63 = scmp.eq.s32.totalorder %s23, 0
      %p64 = por %p62, %p63
      %p65 = scmp.ne.s32.totalorder %s57, %s59
      %p66 = scmp.eq.s32.totalorder %s28, 2
      %p67 = por %p65, %p66
      %p68 = scmp.ne.s32.totalorder %s59, %s60
      %p69 = scmp.eq.s32.totalorder %s28, 0
      %p70 = por %p68, %p69
      %p71 = scmp.ne.s32.totalorder %s59, %s60
      %p72 = scmp.eq.s32.totalorder %s29, 2
      %p73 = por %p71, %p72
      %p75 = scmp.ne.s32.totalorder %s60, %s74
      %p76 = scmp.eq.s32.totalorder %s29, 0
      %p77 = por %p75, %p76
      %s79 = sadd.s32 %s78, 1
      %p82 = scmp.eq.s32.totalorder %s23, 2
      %p83 = scmp.ne.s32.totalorder %s78, %s80
      %p84 = scmp.eq.s32.totalorder %s23, 0
      %p85 = por %p83, %p84
      %p86 = scmp.ne.s32.totalorder %s78, %s80
      %p87 = scmp.eq.s32.totalorder %s28, 2
      %p88 = por %p86, %p87
      %p89 = scmp.ne.s32.totalorder %s80, %s81
      %p90 = scmp.eq.s32.totalorder %s28, 0
      %p91 = por %p89, %p90
      %p92 = scmp.ne.s32.totalorder %s80, %s81
      %p93 = scmp.eq.s32.totalorder %s29, 2
      %p94 = por %p92, %p93
      %p96 = scmp.ne.s32.totalorder %s81, %s95
      %p97 = scmp.eq.s32.totalorder %s29, 0
      %p98 = por %p96, %p97
      %s100 = sadd.s32 %s99, 1
      %p103 = scmp.eq.s32.totalorder %s23, 2
      %p104 = scmp.ne.s32.totalorder %s99, %s101
      %p105 = scmp.eq.s32.totalorder %s23, 0
      %p106 = por %p104, %p105
      %p107 = scmp.ne.s32.totalorder %s99, %s101
      %p108 = scmp.eq.s32.totalorder %s28, 2
      %p109 = por %p107, %p108
      %p110 = scmp.ne.s32.totalorder %s101, %s102
      %p111 = scmp.eq.s32.totalorder %s28, 0
      %p112 = por %p110, %p111
      %p113 = scmp.ne.s32.totalorder %s101, %s102
      %p114 = scmp.eq.s32.totalorder %s29, 2
      %p115 = por %p113, %p114
      %p117 = scmp.ne.s32.totalorder %s102, %s116
      %p118 = scmp.eq.s32.totalorder %s29, 0
      %p119 = por %p117, %p118
      %s121 = sadd.s32 %s120, 1
      %p124 = scmp.eq.s32.totalorder %s23, 2
      %p125 = scmp.ne.s32.totalorder %s120, %s122
      %p126 = scmp.eq.s32.totalorder %s23, 0
      %p127 = por %p125, %p126
      %p128 = scmp.ne.s32.totalorder %s120, %s122
      %p129 = scmp.eq.s32.totalorder %s28, 2
      %p130 = por %p128, %p129
      %p131 = scmp.ne.s32.totalorder %s122, %s123
      %p132 = scmp.eq.s32.totalorder %s28, 0
      %p133 = por %p131, %p132
      %p134 = scmp.ne.s32.totalorder %s122, %s123
      %p135 = scmp.eq.s32.totalorder %s29, 2
      %p136 = por %p134, %p135
      %p138 = scmp.ne.s32.totalorder %s123, %s137
      %p139 = scmp.eq.s32.totalorder %s29, 0
      %p140 = por %p138, %p139
      %s142 = sadd.s32 %s141, 1
      %p145 = scmp.eq.s32.totalorder %s23, 2
      %p146 = scmp.ne.s32.totalorder %s141, %s143
      %p147 = scmp.eq.s32.totalorder %s23, 0
      %p148 = por %p146, %p147
      %p149 = scmp.ne.s32.totalorder %s141, %s143
      %p150 = scmp.eq.s32.totalorder %s28, 2
      %p151 = por %p149, %p150
      %p152 = scmp.ne.s32.totalorder %s143, %s144
      %p153 = scmp.eq.s32.totalorder %s28, 0
      %p154 = por %p152, %p153
      %p155 = scmp.ne.s32.totalorder %s143, %s144
      %p156 = scmp.eq.s32.totalorder %s29, 2
      %p157 = por %p155, %p156
      %p159 = scmp.ne.s32.totalorder %s144, %s158
      %p160 = scmp.eq.s32.totalorder %s29, 0
      %p161 = por %p159, %p160
      %s163 = sadd.s32 %s162, 1
      %p166 = scmp.eq.s32.totalorder %s23, 2
      %p167 = scmp.ne.s32.totalorder %s162, %s164
      %p168 = scmp.eq.s32.totalorder %s23, 0
      %p169 = por %p167, %p168
      %p170 = scmp.ne.s32.totalorder %s162, %s164
      %p171 = scmp.eq.s32.totalorder %s28, 2
      %p172 = por %p170, %p171
      %p173 = scmp.ne.s32.totalorder %s164, %s165
      %p174 = scmp.eq.s32.totalorder %s28, 0
      %p175 = por %p173, %p174
      %p176 = scmp.ne.s32.totalorder %s164, %s165
      %p177 = scmp.eq.s32.totalorder %s29, 2
      %p178 = por %p176, %p177
      %p180 = scmp.ne.s32.totalorder %s165, %s179
      %p181 = scmp.eq.s32.totalorder %s29, 0
      %p182 = por %p180, %p181
      %s184 = sadd.s32 %s183, 1
      %p187 = scmp.eq.s32.totalorder %s23, 2
      %p188 = scmp.ne.s32.totalorder %s183, %s185
      %p189 = scmp.eq.s32.totalorder %s23, 0
      %p190 = por %p188, %p189
      %p191 = scmp.ne.s32.totalorder %s183, %s185
      %p192 = scmp.eq.s32.totalorder %s28, 2
      %p193 = por %p191, %p192
      %p194 = scmp.ne.s32.totalorder %s185, %s186
      %p195 = scmp.eq.s32.totalorder %s28, 0
      %p196 = por %p194, %p195
      %p197 = scmp.ne.s32.totalorder %s185, %s186
      %p198 = scmp.eq.s32.totalorder %s29, 2
      %p199 = por %p197, %p198
      %p201 = scmp.ne.s32.totalorder %s186, %s200
      %p202 = scmp.eq.s32.totalorder %s29, 0
      %p203 = por %p201, %p202
      %s205 = sadd.s32 %s204, 1
      %p208 = scmp.eq.s32.totalorder %s23, 2
      %p209 = scmp.ne.s32.totalorder %s204, %s206
      %p210 = scmp.eq.s32.totalorder %s23, 0
      %p211 = por %p209, %p210
      %p212 = scmp.ne.s32.totalorder %s204, %s206
      %p213 = scmp.eq.s32.totalorder %s28, 2
      %p214 = por %p212, %p213
      %p215 = scmp.ne.s32.totalorder %s206, %s207
      %p216 = scmp.eq.s32.totalorder %s28, 0
      %p217 = por %p215, %p216
      %p218 = scmp.ne.s32.totalorder %s206, %s207
      %p219 = scmp.eq.s32.totalorder %s29, 2
      %p220 = por %p218, %p219
      %p222 = scmp.ne.s32.totalorder %s207, %s221
      %p223 = scmp.eq.s32.totalorder %s29, 0
      %p224 = por %p222, %p223
      %s226 = sadd.s32 %s225, 1
      %p229 = scmp.eq.s32.totalorder %s23, 2
      %p230 = scmp.ne.s32.totalorder %s225, %s227
      %p231 = scmp.eq.s32.totalorder %s23, 0
      %p232 = por %p230, %p231
      %p233 = scmp.ne.s32.totalorder %s225, %s227
      %p234 = scmp.eq.s32.totalorder %s28, 2
      %p235 = por %p233, %p234
      %p236 = scmp.ne.s32.totalorder %s227, %s228
      %p237 = scmp.eq.s32.totalorder %s28, 0
      %p238 = por %p236, %p237
      %p239 = scmp.ne.s32.totalorder %s227, %s228
      %p240 = scmp.eq.s32.totalorder %s29, 2
      %p241 = por %p239, %p240
      %p243 = scmp.ne.s32.totalorder %s228, %s242
      %p244 = scmp.eq.s32.totalorder %s29, 0
      %p245 = por %p243, %p244
      %s247 = sadd.s32 %s246, 1
      %p250 = scmp.eq.s32.totalorder %s23, 2
      %p251 = scmp.ne.s32.totalorder %s246, %s248
      %p252 = scmp.eq.s32.totalorder %s23, 0
      %p253 = por %p251, %p252
      %p254 = scmp.ne.s32.totalorder %s246, %s248
      %p255 = scmp.eq.s32.totalorder %s28, 2
      %p256 = por %p254, %p255
      %p257 = scmp.ne.s32.totalorder %s248, %s249
      %p258 = scmp.eq.s32.totalorder %s28, 0
      %p259 = por %p257, %p258
      %p260 = scmp.ne.s32.totalorder %s248, %s249
      %p261 = scmp.eq.s32.totalorder %s29, 2
      %p262 = por %p260, %p261
      %p264 = scmp.ne.s32.totalorder %s249, %s263
      %p265 = scmp.eq.s32.totalorder %s29, 0
      %p266 = por %p264, %p265
      %s267 = ssub.s32 %s23, %s30
      %p268 = scmp.eq.s32.totalorder %s267, 0
      %s270 = sadd.s32 %s269, 1
      %s271 = scalar_select %p268, %s269, %s270
      %p274 = pneg %p268
      %p275 = scmp.eq.s32.totalorder %s23, 2
      %p276 = por %p274, %p275
      %p277 = scmp.ne.s32.totalorder %s269, %s272
      %p278 = scmp.eq.s32.totalorder %s23, 0
      %p279 = por %p277, %p278
      %p280 = scmp.ne.s32.totalorder %s269, %s272
      %p281 = scmp.eq.s32.totalorder %s28, 2
      %p282 = por %p280, %p281
      %p283 = scmp.ne.s32.totalorder %s272, %s273
      %p284 = scmp.eq.s32.totalorder %s28, 0
      %p285 = por %p283, %p284
      %p286 = scmp.ne.s32.totalorder %s272, %s273
      %p287 = scmp.eq.s32.totalorder %s29, 2
      %p288 = por %p286, %p287
      %p290 = scmp.ne.s32.totalorder %s273, %s289
      %p291 = scmp.eq.s32.totalorder %s29, 0
      %p292 = por %p290, %p291
      %p293 = scmp.le.s32.totalorder 1, %s23
      %p294 = scmp.lt.s32.totalorder %s23, 4
      %p295 = pnand %p293, %p294
      %p296 = pneg %p295
      // Predicated region
      $region9: #{purchase_classifier.1} parent=5 // pred_check
        _
      $region10: #{purchase_classifier.1} parent=5 // pred_check_branch
        %298 = sbr.rel (%p295) target = $region12
      $region11: #{purchase_classifier.1} parent=5 // pred_region
        %s299 = ssub.s32 %s23, 1
        // Predicated region
        $region13: #{purchase_classifier.1} parent=11 // pred_check
          %p300 = pneg %p70
        $region14: #{purchase_classifier.1} parent=11 // pred_check_branch
          %302 = sbr.rel (%p300) target = $region16
        $region15: #{purchase_classifier.1} parent=11 // pred_region
          %s304 = ssub.s32 38400, 38400
          %305 = vsyncadd [#allocation3], %s304
          %s306 = sshll.u32 [#allocation2], 4
          %s307 = int_to_ptr.vmem [resolvable:$true] %s306
          %312 = dma.hbm_to_vmem [thread:$0]  %s1, 38400, %s307, [#allocation3], 512, 512, 32
        $region16: #{purchase_classifier.1} parent=11 // pred_fallthru
          _
        // Predicated region
        $region17: #{purchase_classifier.1} parent=11 // pred_check
          %p313 = pneg %p91
        $region18: #{purchase_classifier.1} parent=11 // pred_check_branch
          %315 = sbr.rel (%p313) target = $region20
        $region19: #{purchase_classifier.1} parent=11 // pred_region
          %s317 = ssub.s32 128, 128
          %318 = vsyncadd [#allocation5], %s317
          %s320 = sshll.u32 [#allocation4], 4
          %s321 = int_to_ptr.vmem [resolvable:$true] %s320
          %323 = dma.hbm_to_vmem [thread:$0]  %s2, 128, %s321, [#allocation5]
        $region20: #{purchase_classifier.1} parent=11 // pred_fallthru
          _
        // Predicated region
        $region21: #{purchase_classifier.1} parent=11 // pred_check
          %p324 = pneg %p112
        $region22: #{purchase_classifier.1} parent=11 // pred_check_branch
          %326 = sbr.rel (%p324) target = $region24
        $region23: #{purchase_classifier.1} parent=11 // pred_region
          %s328 = ssub.s32 32768, 32768
          %329 = vsyncadd [#allocation5], %s328
          %s330 = sshll.u32 [#allocation6], 4
          %s331 = int_to_ptr.vmem [resolvable:$true] %s330
          %336 = dma.hbm_to_vmem [thread:$0]  %s3, 32768, %s331, [#allocation5], 256, 256, 16
        $region24: #{purchase_classifier.1} parent=11 // pred_fallthru
          _
        // Predicated region
        $region25: #{purchase_classifier.1} parent=11 // pred_check
          %p337 = pneg %p133
        $region26: #{purchase_classifier.1} parent=11 // pred_check_branch
          %339 = sbr.rel (%p337) target = $region28
        $region27: #{purchase_classifier.1} parent=11 // pred_region
          %s341 = ssub.s32 64, 64
          %342 = vsyncadd [#allocation8], %s341
          %s344 = sshll.u32 [#allocation7], 4
          %s345 = int_to_ptr.vmem [resolvable:$true] %s344
          %347 = dma.hbm_to_vmem [thread:$0]  %s4, 64, %s345, [#allocation8]
        $region28: #{purchase_classifier.1} parent=11 // pred_fallthru
          _
        // Predicated region
        $region29: #{purchase_classifier.1} parent=11 // pred_check
          %p348 = pneg %p154
        $region30: #{purchase_classifier.1} parent=11 // pred_check_branch
          %350 = sbr.rel (%p348) target = $region32
        $region31: #{purchase_classifier.1} parent=11 // pred_region
          %s352 = ssub.s32 8192, 8192
          %353 = vsyncadd [#allocation8], %s352
          %s354 = sshll.u32 [#allocation9], 4
          %s355 = int_to_ptr.vmem [resolvable:$true] %s354
          %360 = dma.hbm_to_vmem [thread:$0]  %s5, 8192, %s355, [#allocation8], 128, 128, 8
        $region32: #{purchase_classifier.1} parent=11 // pred_fallthru
          _
        // Predicated region
        $region33: #{purchase_classifier.1} parent=11 // pred_check
          %p361 = pneg %p175
        $region34: #{purchase_classifier.1} parent=11 // pred_check_branch
          %363 = sbr.rel (%p361) target = $region36
        $region35: #{purchase_classifier.1} parent=11 // pred_region
          %s365 = ssub.s32 32, 32
          %366 = vsyncadd [#allocation11], %s365
          %s368 = sshll.u32 [#allocation10], 4
          %s369 = int_to_ptr.vmem [resolvable:$true] %s368
          %371 = dma.hbm_to_vmem [thread:$0]  %s6, 32, %s369, [#allocation11]
        $region36: #{purchase_classifier.1} parent=11 // pred_fallthru
          _
        // Predicated region
        $region37: #{purchase_classifier.1} parent=11 // pred_check
          %p372 = pneg %p196
        $region38: #{purchase_classifier.1} parent=11 // pred_check_branch
          %374 = sbr.rel (%p372) target = $region40
        $region39: #{purchase_classifier.1} parent=11 // pred_region
          %s376 = ssub.s32 2048, 2048
          %377 = vsyncadd [#allocation11], %s376
          %s378 = sshll.u32 [#allocation12], 4
          %s379 = int_to_ptr.vmem [resolvable:$true] %s378
          %384 = dma.hbm_to_vmem [thread:$0]  %s7, 2048, %s379, [#allocation11], 64, 64, 4
        $region40: #{purchase_classifier.1} parent=11 // pred_fallthru
          _
        // Predicated region
        $region41: #{purchase_classifier.1} parent=11 // pred_check
          %p385 = pneg %p217
        $region42: #{purchase_classifier.1} parent=11 // pred_check_branch
          %387 = sbr.rel (%p385) target = $region44
        $region43: #{purchase_classifier.1} parent=11 // pred_region
          %s389 = ssub.s32 16, 16
          %390 = vsyncadd [#allocation14], %s389
          %s392 = sshll.u32 [#allocation13], 4
          %s393 = int_to_ptr.vmem [resolvable:$true] %s392
          %395 = dma.hbm_to_vmem [thread:$0]  %s8, 16, %s393, [#allocation14]
        $region44: #{purchase_classifier.1} parent=11 // pred_fallthru
          _
        // Predicated region
        $region45: #{purchase_classifier.1} parent=11 // pred_check
          %p396 = pneg %p238
        $region46: #{purchase_classifier.1} parent=11 // pred_check_branch
          %398 = sbr.rel (%p396) target = $region48
        $region47: #{purchase_classifier.1} parent=11 // pred_region
          %s400 = ssub.s32 1024, 1024
          %401 = vsyncadd [#allocation14], %s400
          %s402 = sshll.u32 [#allocation15], 4
          %s403 = int_to_ptr.vmem [resolvable:$true] %s402
          %408 = dma.hbm_to_vmem [thread:$0]  %s9, 1024, %s403, [#allocation14], 64, 64, 4
        $region48: #{purchase_classifier.1} parent=11 // pred_fallthru
          _
        // Predicated region
        $region49: #{purchase_classifier.1} parent=11 // pred_check
          %p409 = pneg %p259
        $region50: #{purchase_classifier.1} parent=11 // pred_check_branch
          %411 = sbr.rel (%p409) target = $region52
        $region51: #{purchase_classifier.1} parent=11 // pred_region
          %s413 = ssub.s32 16, 16
          %414 = vsyncadd [#allocation17], %s413
          %s416 = sshll.u32 [#allocation16], 4
          %s417 = int_to_ptr.vmem [resolvable:$true] %s416
          %419 = dma.hbm_to_vmem [thread:$0]  %s10, 16, %s417, [#allocation17]
        $region52: #{purchase_classifier.1} parent=11 // pred_fallthru
          _
      $region12: #{purchase_classifier.1} parent=5 // pred_fallthru
        _
      %p420 = scmp.lt.s32.totalorder %s23, 3
      // Predicated region
      $region53: #{purchase_classifier.1} parent=5 // pred_check
        %p421 = pneg %p420
      $region54: #{purchase_classifier.1} parent=5 // pred_check_branch
        %423 = sbr.rel (%p421) target = $region56
      $region55: #{purchase_classifier.1} parent=5 // pred_region
        // Predicated region
        $region57: #{purchase_classifier.1} parent=55 // pred_check
          %p424 = pneg %p43
        $region58: #{purchase_classifier.1} parent=55 // pred_check_branch
          %426 = sbr.rel (%p424) target = $region60
        $region59: #{purchase_classifier.1} parent=55 // pred_region
          %s427 = smul.u32 2, %s23
          %p428 = scmp.lt.s32.totalorder %s427, 5
          %s429 = scalar_select %p428, %s427, 5
          %s430 = smul.addr %s429, 5
          %s431 = smul.addr %s430, 8
          %s432 = scalar_lea.vmem %s0, %s431
          %s433 = smul.u32 2, %s23
        $region60: #{purchase_classifier.1} parent=55 // pred_fallthru
          _
      $region56: #{purchase_classifier.1} parent=5 // pred_fallthru
        _
      %p434 = scmp.le.s32.totalorder 1, %s23
      %p435 = scmp.lt.s32.totalorder %s23, 4
      %p436 = pnand %p434, %p435
      %p437 = pneg %p436
      // Predicated region
      $region61: #{purchase_classifier.1} parent=5 // pred_check
        _
      $region62: #{purchase_classifier.1} parent=5 // pred_check_branch
        %439 = sbr.rel (%p436) target = $region64
      $region63: #{purchase_classifier.1} parent=5 // pred_region
        %s440 = ssub.s32 %s23, 1
        // Predicated region
        $region65: #{purchase_classifier.1} parent=63 // pred_check
          %p441 = pneg %p70
        $region66: #{purchase_classifier.1} parent=63 // pred_check_branch
          %443 = sbr.rel (%p441) target = $region68
        $region67: #{purchase_classifier.1} parent=63 // pred_region
          %444 = dma.done [#allocation3], 38400
        $region68: #{purchase_classifier.1} parent=63 // pred_fallthru
          _
        // Predicated region
        $region69: #{purchase_classifier.1} parent=63 // pred_check
          %p445 = pneg %p91
        $region70: #{purchase_classifier.1} parent=63 // pred_check_branch
          %447 = sbr.rel (%p445) target = $region72
        $region71: #{purchase_classifier.1} parent=63 // pred_region
          %448 = dma.done [#allocation5], 128
        $region72: #{purchase_classifier.1} parent=63 // pred_fallthru
          _
        // Predicated region
        $region73: #{purchase_classifier.1} parent=63 // pred_check
          %p449 = pneg %p112
        $region74: #{purchase_classifier.1} parent=63 // pred_check_branch
          %451 = sbr.rel (%p449) target = $region76
        $region75: #{purchase_classifier.1} parent=63 // pred_region
          %452 = dma.done [#allocation5], 32768
        $region76: #{purchase_classifier.1} parent=63 // pred_fallthru
          _
        // Predicated region
        $region77: #{purchase_classifier.1} parent=63 // pred_check
          %p453 = pneg %p133
        $region78: #{purchase_classifier.1} parent=63 // pred_check_branch
          %455 = sbr.rel (%p453) target = $region80
        $region79: #{purchase_classifier.1} parent=63 // pred_region
          %456 = dma.done [#allocation8], 64
        $region80: #{purchase_classifier.1} parent=63 // pred_fallthru
          _
        // Predicated region
        $region81: #{purchase_classifier.1} parent=63 // pred_check
          %p457 = pneg %p154
        $region82: #{purchase_classifier.1} parent=63 // pred_check_branch
          %459 = sbr.rel (%p457) target = $region84
        $region83: #{purchase_classifier.1} parent=63 // pred_region
          %460 = dma.done [#allocation8], 8192
        $region84: #{purchase_classifier.1} parent=63 // pred_fallthru
          _
        // Predicated region
        $region85: #{purchase_classifier.1} parent=63 // pred_check
          %p461 = pneg %p175
        $region86: #{purchase_classifier.1} parent=63 // pred_check_branch
          %463 = sbr.rel (%p461) target = $region88
        $region87: #{purchase_classifier.1} parent=63 // pred_region
          %464 = dma.done [#allocation11], 32
        $region88: #{purchase_classifier.1} parent=63 // pred_fallthru
          _
        // Predicated region
        $region89: #{purchase_classifier.1} parent=63 // pred_check
          %p465 = pneg %p196
        $region90: #{purchase_classifier.1} parent=63 // pred_check_branch
          %467 = sbr.rel (%p465) target = $region92
        $region91: #{purchase_classifier.1} parent=63 // pred_region
          %468 = dma.done [#allocation11], 2048
        $region92: #{purchase_classifier.1} parent=63 // pred_fallthru
          _
        // Predicated region
        $region93: #{purchase_classifier.1} parent=63 // pred_check
          %p469 = pneg %p217
        $region94: #{purchase_classifier.1} parent=63 // pred_check_branch
          %471 = sbr.rel (%p469) target = $region96
        $region95: #{purchase_classifier.1} parent=63 // pred_region
          %472 = dma.done [#allocation14], 16
        $region96: #{purchase_classifier.1} parent=63 // pred_fallthru
          _
        // Predicated region
        $region97: #{purchase_classifier.1} parent=63 // pred_check
          %p473 = pneg %p238
        $region98: #{purchase_classifier.1} parent=63 // pred_check_branch
          %475 = sbr.rel (%p473) target = $region100
        $region99: #{purchase_classifier.1} parent=63 // pred_region
          %476 = dma.done [#allocation14], 1024
        $region100: #{purchase_classifier.1} parent=63 // pred_fallthru
          _
        // Predicated region
        $region101: #{purchase_classifier.1} parent=63 // pred_check
          %p477 = pneg %p259
        $region102: #{purchase_classifier.1} parent=63 // pred_check_branch
          %479 = sbr.rel (%p477) target = $region104
        $region103: #{purchase_classifier.1} parent=63 // pred_region
          %480 = dma.done [#allocation17], 16
        $region104: #{purchase_classifier.1} parent=63 // pred_fallthru
          _
        %s481 = smul.u32 2, %s28
        %p482 = scmp.lt.s32.totalorder %s481, 5
        %s483 = scalar_select %p482, %s481, 5
        %s484 = smul.addr %s483, 5
        %s485 = smul.addr %s484, 8
        %s486 = scalar_lea.vmem %s0, %s485
        %p487 = pneg %p49
        %p488 = pneg %p46
        %p489 = pneg %p70
        %p490 = pneg %p67
        %p491 = pneg %p91
        %p492 = pneg %p88
        %p493 = pneg %p112
        %p494 = pneg %p109
        %p495 = pneg %p133
        %p496 = pneg %p130
        %p497 = pneg %p154
        %p498 = pneg %p151
        %p499 = pneg %p175
        %p500 = pneg %p172
        %p501 = pneg %p196
        %p502 = pneg %p193
        %p503 = pneg %p217
        %p504 = pneg %p214
        %p505 = pneg %p238
        %p506 = pneg %p235
        %p507 = pneg %p259
        %p508 = pneg %p256
        %p509 = pneg %p285
        %p510 = pneg %p282
        %s511 = smul.u32 2, %s28
        %p512 = scmp.lt.s32.totalorder %s511, 5
        %s513 = scalar_select %p512, %s511, 5
        %s514 = smul.addr %s513, 8
        %s515 = scalar_lea.vmem %s11, %s514
        %s516 = smul.u32 2, %s28
        %p517 = scmp.lt.s32.totalorder %s516, 5
        %s518 = scalar_select %p517, %s516, 5
        %s519 = smul.addr %s518, 5
        %s520 = smul.addr %s519, 8
        %s521 = scalar_lea.vmem %s0, %s520
        %s522 = smul.u32 2, %s28
        %s523 = smul.u32 2, %s28
        %p524 = scmp.lt.s32.totalorder %s523, 5
        %s525 = scalar_select %p524, %s523, 5
        %s526 = smul.addr %s525, 8
        %s527 = scalar_lea.vmem %s11, %s526
        %s528 = smul.u32 2, %s28
        %v530 = vld [vmem:[%s521] sm:$0xff]
        %v531 = vld [vmem:[%s521 + $0x8] sm:$0xff]
        %v532 = vld [vmem:[%s521 + $0x10] sm:$0xff]
        %v533 = vld [vmem:[%s521 + $0x18] sm:$0xff]
        %v534 = vld [vmem:[%s521 + $0x20] sm:$0xff]
        %v535 = vld [vmem:[%s521 + $0x28] sm:$0xff]
        %v536 = vld [vmem:[%s521 + $0x30] sm:$0xff]
        %v537 = vld [vmem:[%s521 + $0x38] sm:$0xff]
        %v538 = vld [vmem:[%s521 + $0x40] sm:$0xff]
        %v539 = vld [vmem:[%s521 + $0x48] sm:$0xff]
        %v540 = vpack.c.bf16 %v535, %v530
        %v541 = vpack.c.bf16 %v536, %v531
        %v542 = vpack.c.bf16 %v537, %v532
        %v543 = vpack.c.bf16 %v538, %v533
        %v544 = vpack.c.bf16 %v539, %v534
        %v545 = vld [vmem:[#allocation2] sm:$0xff]
        %v546 = vld [vmem:[#allocation2 + $0x8] sm:$0xff]
        %v547 = vld [vmem:[#allocation2 + $0x10] sm:$0xff]
        %v548 = vld [vmem:[#allocation2 + $0x18] sm:$0xff]
        %v549 = vld [vmem:[#allocation2 + $0x20] sm:$0xff]
        %v550 = vld [vmem:[#allocation2 + $0x28] sm:$0xff]
        %v551 = vld [vmem:[#allocation2 + $0x30] sm:$0xff]
        %v552 = vld [vmem:[#allocation2 + $0x38] sm:$0xff]
        %v553 = vld [vmem:[#allocation2 + $0x40] sm:$0xff]
        %v554 = vld [vmem:[#allocation2 + $0x48] sm:$0xff]
        %v555 = vld [vmem:[#allocation2 + $0x50] sm:$0xff]
        %v556 = vld [vmem:[#allocation2 + $0x58] sm:$0xff]
        %v557 = vld [vmem:[#allocation2 + $0x60] sm:$0xff]
        %v558 = vld [vmem:[#allocation2 + $0x68] sm:$0xff]
        %v559 = vld [vmem:[#allocation2 + $0x70] sm:$0xff]
        %v560 = vld [vmem:[#allocation2 + $0x78] sm:$0xff]
        %v561 = vld [vmem:[#allocation2 + $0x80] sm:$0xff]
        %v562 = vld [vmem:[#allocation2 + $0x88] sm:$0xff]
        %v563 = vld [vmem:[#allocation2 + $0x90] sm:$0xff]
        %v564 = vld [vmem:[#allocation2 + $0x98] sm:$0xff]
        %v565 = vld [vmem:[#allocation2 + $0xa0] sm:$0xff]
        %v566 = vld [vmem:[#allocation2 + $0xa8] sm:$0xff]
        %v567 = vld [vmem:[#allocation2 + $0xb0] sm:$0xff]
        %v568 = vld [vmem:[#allocation2 + $0xb8] sm:$0xff]
        %v569 = vld [vmem:[#allocation2 + $0xc0] sm:$0xff]
        %v570 = vld [vmem:[#allocation2 + $0xc8] sm:$0xff]
        %v571 = vld [vmem:[#allocation2 + $0xd0] sm:$0xff]
        %v572 = vld [vmem:[#allocation2 + $0xd8] sm:$0xff]
        %v573 = vld [vmem:[#allocation2 + $0xe0] sm:$0xff]
        %v574 = vld [vmem:[#allocation2 + $0xe8] sm:$0xff]
        %v575 = vld [vmem:[#allocation2 + $0xf0] sm:$0xff]
        %v576 = vld [vmem:[#allocation2 + $0xf8] sm:$0xff]
        %v577 = vld [vmem:[#allocation2 + $0x100] sm:$0xff]
        %v578 = vld [vmem:[#allocation2 + $0x108] sm:$0xff]
        %v579 = vld [vmem:[#allocation2 + $0x110] sm:$0xff]
        %v580 = vld [vmem:[#allocation2 + $0x118] sm:$0xff]
        %v581 = vld [vmem:[#allocation2 + $0x120] sm:$0xff]
        %v582 = vld [vmem:[#allocation2 + $0x128] sm:$0xff]
        %v583 = vld [vmem:[#allocation2 + $0x130] sm:$0xff]
        %v584 = vld [vmem:[#allocation2 + $0x138] sm:$0xff]
        %v585 = vld [vmem:[#allocation2 + $0x140] sm:$0xff]
        %v586 = vld [vmem:[#allocation2 + $0x148] sm:$0xff]
        %v587 = vld [vmem:[#allocation2 + $0x150] sm:$0xff]
        %v588 = vld [vmem:[#allocation2 + $0x158] sm:$0xff]
        %v589 = vld [vmem:[#allocation2 + $0x160] sm:$0xff]
        %v590 = vld [vmem:[#allocation2 + $0x168] sm:$0xff]
        %v591 = vld [vmem:[#allocation2 + $0x170] sm:$0xff]
        %v592 = vld [vmem:[#allocation2 + $0x178] sm:$0xff]
        %v593 = vld [vmem:[#allocation2 + $0x180] sm:$0xff]
        %v594 = vld [vmem:[#allocation2 + $0x188] sm:$0xff]
        %v595 = vld [vmem:[#allocation2 + $0x190] sm:$0xff]
        %v596 = vld [vmem:[#allocation2 + $0x198] sm:$0xff]
        %v597 = vld [vmem:[#allocation2 + $0x1a0] sm:$0xff]
        %v598 = vld [vmem:[#allocation2 + $0x1a8] sm:$0xff]
        %v599 = vld [vmem:[#allocation2 + $0x1b0] sm:$0xff]
        %v600 = vld [vmem:[#allocation2 + $0x1b8] sm:$0xff]
        %v601 = vld [vmem:[#allocation2 + $0x1c0] sm:$0xff]
        %v602 = vld [vmem:[#allocation2 + $0x1c8] sm:$0xff]
        %v603 = vld [vmem:[#allocation2 + $0x1d0] sm:$0xff]
        %v604 = vld [vmem:[#allocation2 + $0x1d8] sm:$0xff]
        %v605 = vld [vmem:[#allocation2 + $0x1e0] sm:$0xff]
        %v606 = vld [vmem:[#allocation2 + $0x1e8] sm:$0xff]
        %v607 = vld [vmem:[#allocation2 + $0x1f0] sm:$0xff]
        %v608 = vld [vmem:[#allocation2 + $0x1f8] sm:$0xff]
        %v609 = vld [vmem:[#allocation2 + $0x200] sm:$0xff]
        %v610 = vld [vmem:[#allocation2 + $0x208] sm:$0xff]
        %v611 = vld [vmem:[#allocation2 + $0x210] sm:$0xff]
        %v612 = vld [vmem:[#allocation2 + $0x218] sm:$0xff]
        %v613 = vld [vmem:[#allocation2 + $0x220] sm:$0xff]
        %v614 = vld [vmem:[#allocation2 + $0x228] sm:$0xff]
        %v615 = vld [vmem:[#allocation2 + $0x230] sm:$0xff]
        %v616 = vld [vmem:[#allocation2 + $0x238] sm:$0xff]
        %v617 = vld [vmem:[#allocation2 + $0x240] sm:$0xff]
        %v618 = vld [vmem:[#allocation2 + $0x248] sm:$0xff]
        %v619 = vld [vmem:[#allocation2 + $0x250] sm:$0xff]
        %v620 = vld [vmem:[#allocation2 + $0x258] sm:$0xff]
        %v621 = vld [vmem:[#allocation2 + $0x260] sm:$0xff]
        %v622 = vld [vmem:[#allocation2 + $0x268] sm:$0xff]
        %v623 = vld [vmem:[#allocation2 + $0x270] sm:$0xff]
        %v624 = vld [vmem:[#allocation2 + $0x278] sm:$0xff]
        %v625 = vld [vmem:[#allocation2 + $0x280] sm:$0xff]
        %v626 = vld [vmem:[#allocation2 + $0x288] sm:$0xff]
        %v627 = vld [vmem:[#allocation2 + $0x290] sm:$0xff]
        %v628 = vld [vmem:[#allocation2 + $0x298] sm:$0xff]
        %v629 = vld [vmem:[#allocation2 + $0x2a0] sm:$0xff]
        %v630 = vld [vmem:[#allocation2 + $0x2a8] sm:$0xff]
        %v631 = vld [vmem:[#allocation2 + $0x2b0] sm:$0xff]
        %v632 = vld [vmem:[#allocation2 + $0x2b8] sm:$0xff]
        %v633 = vld [vmem:[#allocation2 + $0x2c0] sm:$0xff]
        %v634 = vld [vmem:[#allocation2 + $0x2c8] sm:$0xff]
        %v635 = vld [vmem:[#allocation2 + $0x2d0] sm:$0xff]
        %v636 = vld [vmem:[#allocation2 + $0x2d8] sm:$0xff]
        %v637 = vld [vmem:[#allocation2 + $0x2e0] sm:$0xff]
        %v638 = vld [vmem:[#allocation2 + $0x2e8] sm:$0xff]
        %v639 = vld [vmem:[#allocation2 + $0x2f0] sm:$0xff]
        %v640 = vld [vmem:[#allocation2 + $0x2f8] sm:$0xff]
        %v641 = vld [vmem:[#allocation2 + $0x300] sm:$0xff]
        %v642 = vld [vmem:[#allocation2 + $0x308] sm:$0xff]
        %v643 = vld [vmem:[#allocation2 + $0x310] sm:$0xff]
        %v644 = vld [vmem:[#allocation2 + $0x318] sm:$0xff]
        %v645 = vld [vmem:[#allocation2 + $0x320] sm:$0xff]
        %v646 = vld [vmem:[#allocation2 + $0x328] sm:$0xff]
        %v647 = vld [vmem:[#allocation2 + $0x330] sm:$0xff]
        %v648 = vld [vmem:[#allocation2 + $0x338] sm:$0xff]
        %v649 = vld [vmem:[#allocation2 + $0x340] sm:$0xff]
        %v650 = vld [vmem:[#allocation2 + $0x348] sm:$0xff]
        %v651 = vld [vmem:[#allocation2 + $0x350] sm:$0xff]
        %v652 = vld [vmem:[#allocation2 + $0x358] sm:$0xff]
        %v653 = vld [vmem:[#allocation2 + $0x360] sm:$0xff]
        %v654 = vld [vmem:[#allocation2 + $0x368] sm:$0xff]
        %v655 = vld [vmem:[#allocation2 + $0x370] sm:$0xff]
        %v656 = vld [vmem:[#allocation2 + $0x378] sm:$0xff]
        %v657 = vld [vmem:[#allocation2 + $0x380] sm:$0xff]
        %v658 = vld [vmem:[#allocation2 + $0x388] sm:$0xff]
        %v659 = vld [vmem:[#allocation2 + $0x390] sm:$0xff]
        %v660 = vld [vmem:[#allocation2 + $0x398] sm:$0xff]
        %v661 = vld [vmem:[#allocation2 + $0x3a0] sm:$0xff]
        %v662 = vld [vmem:[#allocation2 + $0x3a8] sm:$0xff]
        %v663 = vld [vmem:[#allocation2 + $0x3b0] sm:$0xff]
        %v664 = vld [vmem:[#allocation2 + $0x3b8] sm:$0xff]
        %v665 = vld [vmem:[#allocation2 + $0x3c0] sm:$0xff]
        %v666 = vld [vmem:[#allocation2 + $0x3c8] sm:$0xff]
        %v667 = vld [vmem:[#allocation2 + $0x3d0] sm:$0xff]
        %v668 = vld [vmem:[#allocation2 + $0x3d8] sm:$0xff]
        %v669 = vld [vmem:[#allocation2 + $0x3e0] sm:$0xff]
        %v670 = vld [vmem:[#allocation2 + $0x3e8] sm:$0xff]
        %v671 = vld [vmem:[#allocation2 + $0x3f0] sm:$0xff]
        %v672 = vld [vmem:[#allocation2 + $0x3f8] sm:$0xff]
        %v673 = vld [vmem:[#allocation2 + $0x400] sm:$0xff]
        %v674 = vld [vmem:[#allocation2 + $0x408] sm:$0xff]
        %v675 = vld [vmem:[#allocation2 + $0x410] sm:$0xff]
        %v676 = vld [vmem:[#allocation2 + $0x418] sm:$0xff]
        %v677 = vld [vmem:[#allocation2 + $0x420] sm:$0xff]
        %v678 = vld [vmem:[#allocation2 + $0x428] sm:$0xff]
        %v679 = vld [vmem:[#allocation2 + $0x430] sm:$0xff]
        %v680 = vld [vmem:[#allocation2 + $0x438] sm:$0xff]
        %v681 = vld [vmem:[#allocation2 + $0x440] sm:$0xff]
        %v682 = vld [vmem:[#allocation2 + $0x448] sm:$0xff]
        %v683 = vld [vmem:[#allocation2 + $0x450] sm:$0xff]
        %v684 = vld [vmem:[#allocation2 + $0x458] sm:$0xff]
        %v685 = vld [vmem:[#allocation2 + $0x460] sm:$0xff]
        %v686 = vld [vmem:[#allocation2 + $0x468] sm:$0xff]
        %v687 = vld [vmem:[#allocation2 + $0x470] sm:$0xff]
        %v688 = vld [vmem:[#allocation2 + $0x478] sm:$0xff]
        %v689 = vld [vmem:[#allocation2 + $0x480] sm:$0xff]
        %v690 = vld [vmem:[#allocation2 + $0x488] sm:$0xff]
        %v691 = vld [vmem:[#allocation2 + $0x490] sm:$0xff]
        %v692 = vld [vmem:[#allocation2 + $0x498] sm:$0xff]
        %v693 = vld [vmem:[#allocation2 + $0x4a0] sm:$0xff]
        %v694 = vld [vmem:[#allocation2 + $0x4a8] sm:$0xff]
        %v695 = vld [vmem:[#allocation2 + $0x4b0] sm:$0xff]
        %v696 = vld [vmem:[#allocation2 + $0x4b8] sm:$0xff]
        %v697 = vld [vmem:[#allocation2 + $0x4c0] sm:$0xff]
        %v698 = vld [vmem:[#allocation2 + $0x4c8] sm:$0xff]
        %v699 = vld [vmem:[#allocation2 + $0x4d0] sm:$0xff]
        %v700 = vld [vmem:[#allocation2 + $0x4d8] sm:$0xff]
        %v701 = vld [vmem:[#allocation2 + $0x4e0] sm:$0xff]
        %v702 = vld [vmem:[#allocation2 + $0x4e8] sm:$0xff]
        %v703 = vld [vmem:[#allocation2 + $0x4f0] sm:$0xff]
        %v704 = vld [vmem:[#allocation2 + $0x4f8] sm:$0xff]
        %v705 = vld [vmem:[#allocation2 + $0x500] sm:$0xff]
        %v706 = vld [vmem:[#allocation2 + $0x508] sm:$0xff]
        %v707 = vld [vmem:[#allocation2 + $0x510] sm:$0xff]
        %v708 = vld [vmem:[#allocation2 + $0x518] sm:$0xff]
        %v709 = vld [vmem:[#allocation2 + $0x520] sm:$0xff]
        %v710 = vld [vmem:[#allocation2 + $0x528] sm:$0xff]
        %v711 = vld [vmem:[#allocation2 + $0x530] sm:$0xff]
        %v712 = vld [vmem:[#allocation2 + $0x538] sm:$0xff]
        %v713 = vld [vmem:[#allocation2 + $0x540] sm:$0xff]
        %v714 = vld [vmem:[#allocation2 + $0x548] sm:$0xff]
        %v715 = vld [vmem:[#allocation2 + $0x550] sm:$0xff]
        %v716 = vld [vmem:[#allocation2 + $0x558] sm:$0xff]
        %v717 = vld [vmem:[#allocation2 + $0x560] sm:$0xff]
        %v718 = vld [vmem:[#allocation2 + $0x568] sm:$0xff]
        %v719 = vld [vmem:[#allocation2 + $0x570] sm:$0xff]
        %v720 = vld [vmem:[#allocation2 + $0x578] sm:$0xff]
        %v721 = vld [vmem:[#allocation2 + $0x580] sm:$0xff]
        %v722 = vld [vmem:[#allocation2 + $0x588] sm:$0xff]
        %v723 = vld [vmem:[#allocation2 + $0x590] sm:$0xff]
        %v724 = vld [vmem:[#allocation2 + $0x598] sm:$0xff]
        %v725 = vld [vmem:[#allocation2 + $0x5a0] sm:$0xff]
        %v726 = vld [vmem:[#allocation2 + $0x5a8] sm:$0xff]
        %v727 = vld [vmem:[#allocation2 + $0x5b0] sm:$0xff]
        %v728 = vld [vmem:[#allocation2 + $0x5b8] sm:$0xff]
        %v729 = vld [vmem:[#allocation2 + $0x5c0] sm:$0xff]
        %v730 = vld [vmem:[#allocation2 + $0x5c8] sm:$0xff]
        %v731 = vld [vmem:[#allocation2 + $0x5d0] sm:$0xff]
        %v732 = vld [vmem:[#allocation2 + $0x5d8] sm:$0xff]
        %v733 = vld [vmem:[#allocation2 + $0x5e0] sm:$0xff]
        %v734 = vld [vmem:[#allocation2 + $0x5e8] sm:$0xff]
        %v735 = vld [vmem:[#allocation2 + $0x5f0] sm:$0xff]
        %v736 = vld [vmem:[#allocation2 + $0x5f8] sm:$0xff]
        %v737 = vld [vmem:[#allocation2 + $0x600] sm:$0xff]
        %v738 = vld [vmem:[#allocation2 + $0x608] sm:$0xff]
        %v739 = vld [vmem:[#allocation2 + $0x610] sm:$0xff]
        %v740 = vld [vmem:[#allocation2 + $0x618] sm:$0xff]
        %v741 = vld [vmem:[#allocation2 + $0x620] sm:$0xff]
        %v742 = vld [vmem:[#allocation2 + $0x628] sm:$0xff]
        %v743 = vld [vmem:[#allocation2 + $0x630] sm:$0xff]
        %v744 = vld [vmem:[#allocation2 + $0x638] sm:$0xff]
        %v745 = vld [vmem:[#allocation2 + $0x640] sm:$0xff]
        %v746 = vld [vmem:[#allocation2 + $0x648] sm:$0xff]
        %v747 = vld [vmem:[#allocation2 + $0x650] sm:$0xff]
        %v748 = vld [vmem:[#allocation2 + $0x658] sm:$0xff]
        %v749 = vld [vmem:[#allocation2 + $0x660] sm:$0xff]
        %v750 = vld [vmem:[#allocation2 + $0x668] sm:$0xff]
        %v751 = vld [vmem:[#allocation2 + $0x670] sm:$0xff]
        %v752 = vld [vmem:[#allocation2 + $0x678] sm:$0xff]
        %v753 = vld [vmem:[#allocation2 + $0x680] sm:$0xff]
        %v754 = vld [vmem:[#allocation2 + $0x688] sm:$0xff]
        %v755 = vld [vmem:[#allocation2 + $0x690] sm:$0xff]
        %v756 = vld [vmem:[#allocation2 + $0x698] sm:$0xff]
        %v757 = vld [vmem:[#allocation2 + $0x6a0] sm:$0xff]
        %v758 = vld [vmem:[#allocation2 + $0x6a8] sm:$0xff]
        %v759 = vld [vmem:[#allocation2 + $0x6b0] sm:$0xff]
        %v760 = vld [vmem:[#allocation2 + $0x6b8] sm:$0xff]
        %v761 = vld [vmem:[#allocation2 + $0x6c0] sm:$0xff]
        %v762 = vld [vmem:[#allocation2 + $0x6c8] sm:$0xff]
        %v763 = vld [vmem:[#allocation2 + $0x6d0] sm:$0xff]
        %v764 = vld [vmem:[#allocation2 + $0x6d8] sm:$0xff]
        %v765 = vld [vmem:[#allocation2 + $0x6e0] sm:$0xff]
        %v766 = vld [vmem:[#allocation2 + $0x6e8] sm:$0xff]
        %v767 = vld [vmem:[#allocation2 + $0x6f0] sm:$0xff]
        %v768 = vld [vmem:[#allocation2 + $0x6f8] sm:$0xff]
        %v769 = vld [vmem:[#allocation2 + $0x700] sm:$0xff]
        %v770 = vld [vmem:[#allocation2 + $0x708] sm:$0xff]
        %v771 = vld [vmem:[#allocation2 + $0x710] sm:$0xff]
        %v772 = vld [vmem:[#allocation2 + $0x718] sm:$0xff]
        %v773 = vld [vmem:[#allocation2 + $0x720] sm:$0xff]
        %v774 = vld [vmem:[#allocation2 + $0x728] sm:$0xff]
        %v775 = vld [vmem:[#allocation2 + $0x730] sm:$0xff]
        %v776 = vld [vmem:[#allocation2 + $0x738] sm:$0xff]
        %v777 = vld [vmem:[#allocation2 + $0x740] sm:$0xff]
        %v778 = vld [vmem:[#allocation2 + $0x748] sm:$0xff]
        %v779 = vld [vmem:[#allocation2 + $0x750] sm:$0xff]
        %v780 = vld [vmem:[#allocation2 + $0x758] sm:$0xff]
        %v781 = vld [vmem:[#allocation2 + $0x760] sm:$0xff]
        %v782 = vld [vmem:[#allocation2 + $0x768] sm:$0xff]
        %v783 = vld [vmem:[#allocation2 + $0x770] sm:$0xff]
        %v784 = vld [vmem:[#allocation2 + $0x778] sm:$0xff]
        %v785 = vld [vmem:[#allocation2 + $0x780] sm:$0xff]
        %v786 = vld [vmem:[#allocation2 + $0x788] sm:$0xff]
        %v787 = vld [vmem:[#allocation2 + $0x790] sm:$0xff]
        %v788 = vld [vmem:[#allocation2 + $0x798] sm:$0xff]
        %v789 = vld [vmem:[#allocation2 + $0x7a0] sm:$0xff]
        %v790 = vld [vmem:[#allocation2 + $0x7a8] sm:$0xff]
        %v791 = vld [vmem:[#allocation2 + $0x7b0] sm:$0xff]
        %v792 = vld [vmem:[#allocation2 + $0x7b8] sm:$0xff]
        %v793 = vld [vmem:[#allocation2 + $0x7c0] sm:$0xff]
        %v794 = vld [vmem:[#allocation2 + $0x7c8] sm:$0xff]
        %v795 = vld [vmem:[#allocation2 + $0x7d0] sm:$0xff]
        %v796 = vld [vmem:[#allocation2 + $0x7d8] sm:$0xff]
        %v797 = vld [vmem:[#allocation2 + $0x7e0] sm:$0xff]
        %v798 = vld [vmem:[#allocation2 + $0x7e8] sm:$0xff]
        %v799 = vld [vmem:[#allocation2 + $0x7f0] sm:$0xff]
        %v800 = vld [vmem:[#allocation2 + $0x7f8] sm:$0xff]
        %v801 = vld [vmem:[#allocation2 + $0x800] sm:$0xff]
        %v802 = vld [vmem:[#allocation2 + $0x808] sm:$0xff]
        %v803 = vld [vmem:[#allocation2 + $0x810] sm:$0xff]
        %v804 = vld [vmem:[#allocation2 + $0x818] sm:$0xff]
        %v805 = vld [vmem:[#allocation2 + $0x820] sm:$0xff]
        %v806 = vld [vmem:[#allocation2 + $0x828] sm:$0xff]
        %v807 = vld [vmem:[#allocation2 + $0x830] sm:$0xff]
        %v808 = vld [vmem:[#allocation2 + $0x838] sm:$0xff]
        %v809 = vld [vmem:[#allocation2 + $0x840] sm:$0xff]
        %v810 = vld [vmem:[#allocation2 + $0x848] sm:$0xff]
        %v811 = vld [vmem:[#allocation2 + $0x850] sm:$0xff]
        %v812 = vld [vmem:[#allocation2 + $0x858] sm:$0xff]
        %v813 = vld [vmem:[#allocation2 + $0x860] sm:$0xff]
        %v814 = vld [vmem:[#allocation2 + $0x868] sm:$0xff]
        %v815 = vld [vmem:[#allocation2 + $0x870] sm:$0xff]
        %v816 = vld [vmem:[#allocation2 + $0x878] sm:$0xff]
        %v817 = vld [vmem:[#allocation2 + $0x880] sm:$0xff]
        %v818 = vld [vmem:[#allocation2 + $0x888] sm:$0xff]
        %v819 = vld [vmem:[#allocation2 + $0x890] sm:$0xff]
        %v820 = vld [vmem:[#allocation2 + $0x898] sm:$0xff]
        %v821 = vld [vmem:[#allocation2 + $0x8a0] sm:$0xff]
        %v822 = vld [vmem:[#allocation2 + $0x8a8] sm:$0xff]
        %v823 = vld [vmem:[#allocation2 + $0x8b0] sm:$0xff]
        %v824 = vld [vmem:[#allocation2 + $0x8b8] sm:$0xff]
        %v825 = vld [vmem:[#allocation2 + $0x8c0] sm:$0xff]
        %v826 = vld [vmem:[#allocation2 + $0x8c8] sm:$0xff]
        %v827 = vld [vmem:[#allocation2 + $0x8d0] sm:$0xff]
        %v828 = vld [vmem:[#allocation2 + $0x8d8] sm:$0xff]
        %v829 = vld [vmem:[#allocation2 + $0x8e0] sm:$0xff]
        %v830 = vld [vmem:[#allocation2 + $0x8e8] sm:$0xff]
        %v831 = vld [vmem:[#allocation2 + $0x8f0] sm:$0xff]
        %v832 = vld [vmem:[#allocation2 + $0x8f8] sm:$0xff]
        %v833 = vld [vmem:[#allocation2 + $0x900] sm:$0xff]
        %v834 = vld [vmem:[#allocation2 + $0x908] sm:$0xff]
        %v835 = vld [vmem:[#allocation2 + $0x910] sm:$0xff]
        %v836 = vld [vmem:[#allocation2 + $0x918] sm:$0xff]
        %v837 = vld [vmem:[#allocation2 + $0x920] sm:$0xff]
        %v838 = vld [vmem:[#allocation2 + $0x928] sm:$0xff]
        %v839 = vld [vmem:[#allocation2 + $0x930] sm:$0xff]
        %v840 = vld [vmem:[#allocation2 + $0x938] sm:$0xff]
        %v841 = vld [vmem:[#allocation2 + $0x940] sm:$0xff]
        %v842 = vld [vmem:[#allocation2 + $0x948] sm:$0xff]
        %v843 = vld [vmem:[#allocation2 + $0x950] sm:$0xff]
        %v844 = vld [vmem:[#allocation2 + $0x958] sm:$0xff]
        %v845 = vld [vmem:[#allocation4] sm:$0xff]
        %v847 = vlaneseq
        %v848 = vshrl.u32 %v847, 7
        %v849 = vsub.s32 0, %v848
        %v850 = vrot.slane %v845, %v849
        %v851 = vlaneseq
        %v852 = vshrl.u32 %v851, 7
        %v853 = vsub.s32 1, %v852
        %v854 = vrot.slane %v845, %v853
        %v855 = vlaneseq
        %v856 = vshrl.u32 %v855, 7
        %v857 = vsub.s32 2, %v856
        %v858 = vrot.slane %v845, %v857
        %v859 = vlaneseq
        %v860 = vshrl.u32 %v859, 7
        %v861 = vsub.s32 3, %v860
        %v862 = vrot.slane %v845, %v861
        %v863 = vlaneseq
        %v864 = vshrl.u32 %v863, 7
        %v865 = vsub.s32 4, %v864
        %v866 = vrot.slane %v845, %v865
        %v867 = vlaneseq
        %v868 = vshrl.u32 %v867, 7
        %v869 = vsub.s32 5, %v868
        %v870 = vrot.slane %v845, %v869
        %v871 = vlaneseq
        %v872 = vshrl.u32 %v871, 7
        %v873 = vsub.s32 6, %v872
        %v874 = vrot.slane %v845, %v873
        %v875 = vlaneseq
        %v876 = vshrl.u32 %v875, 7
        %v877 = vsub.s32 7, %v876
        %v878 = vrot.slane %v845, %v877
        %v1187 = vunpack.c.l.b16 %v545
        %v1188 = vunpack.c.h.b16 %v545
        %v1189 = vunpack.c.l.b16 %v546
        %v1190 = vunpack.c.h.b16 %v546
        %v1191 = vunpack.c.l.b16 %v547
        %v1192 = vunpack.c.h.b16 %v547
        %v1193 = vunpack.c.l.b16 %v548
        %v1194 = vunpack.c.h.b16 %v548
        %v1195 = vunpack.c.l.b16 %v549
        %v1196 = vunpack.c.h.b16 %v549
        %v1197 = vunpack.c.l.b16 %v550
        %v1198 = vunpack.c.h.b16 %v550
        %v1199 = vunpack.c.l.b16 %v551
        %v1200 = vunpack.c.h.b16 %v551
        %v1201 = vunpack.c.l.b16 %v552
        %v1202 = vunpack.c.h.b16 %v552
        %v1203 = vunpack.c.l.b16 %v553
        %v1204 = vunpack.c.h.b16 %v553
        %v1205 = vunpack.c.l.b16 %v554
        %v1206 = vunpack.c.h.b16 %v554
        %v1207 = vunpack.c.l.b16 %v555
        %v1208 = vunpack.c.h.b16 %v555
        %v1209 = vunpack.c.l.b16 %v556
        %v1210 = vunpack.c.h.b16 %v556
        %v1211 = vunpack.c.l.b16 %v557
        %v1212 = vunpack.c.h.b16 %v557
        %v1213 = vunpack.c.l.b16 %v558
        %v1214 = vunpack.c.h.b16 %v558
        %v1215 = vunpack.c.l.b16 %v559
        %v1216 = vunpack.c.h.b16 %v559
        %v1217 = vunpack.c.l.b16 %v560
        %v1218 = vunpack.c.h.b16 %v560
        %v1219 = vunpack.c.l.b16 %v561
        %v1220 = vunpack.c.h.b16 %v561
        %v1221 = vunpack.c.l.b16 %v562
        %v1222 = vunpack.c.h.b16 %v562
        %v1223 = vunpack.c.l.b16 %v563
        %v1224 = vunpack.c.h.b16 %v563
        %v1225 = vunpack.c.l.b16 %v564
        %v1226 = vunpack.c.h.b16 %v564
        %v1227 = vunpack.c.l.b16 %v565
        %v1228 = vunpack.c.h.b16 %v565
        %v1229 = vunpack.c.l.b16 %v566
        %v1230 = vunpack.c.h.b16 %v566
        %v1231 = vunpack.c.l.b16 %v567
        %v1232 = vunpack.c.h.b16 %v567
        %v1233 = vunpack.c.l.b16 %v568
        %v1234 = vunpack.c.h.b16 %v568
        %v1235 = vunpack.c.l.b16 %v569
        %v1236 = vunpack.c.h.b16 %v569
        %v1237 = vunpack.c.l.b16 %v570
        %v1238 = vunpack.c.h.b16 %v570
        %v1239 = vunpack.c.l.b16 %v571
        %v1240 = vunpack.c.h.b16 %v571
        %v1241 = vunpack.c.l.b16 %v572
        %v1242 = vunpack.c.h.b16 %v572
        %v1243 = vunpack.c.l.b16 %v573
        %v1244 = vunpack.c.h.b16 %v573
        %v1245 = vunpack.c.l.b16 %v574
        %v1246 = vunpack.c.h.b16 %v574
        %v1247 = vunpack.c.l.b16 %v575
        %v1248 = vunpack.c.h.b16 %v575
        %v1249 = vunpack.c.l.b16 %v576
        %v1250 = vunpack.c.h.b16 %v576
        %v1251 = vunpack.c.l.b16 %v577
        %v1252 = vunpack.c.h.b16 %v577
        %v1253 = vunpack.c.l.b16 %v578
        %v1254 = vunpack.c.h.b16 %v578
        %v1255 = vunpack.c.l.b16 %v579
        %v1256 = vunpack.c.h.b16 %v579
        %v1257 = vunpack.c.l.b16 %v580
        %v1258 = vunpack.c.h.b16 %v580
        %v1259 = vunpack.c.l.b16 %v581
        %v1260 = vunpack.c.h.b16 %v581
        %v1261 = vunpack.c.l.b16 %v582
        %v1262 = vunpack.c.h.b16 %v582
        %v1263 = vunpack.c.l.b16 %v583
        %v1264 = vunpack.c.h.b16 %v583
        %v1265 = vunpack.c.l.b16 %v584
        %v1266 = vunpack.c.h.b16 %v584
        %v1267 = vunpack.c.l.b16 %v585
        %v1268 = vunpack.c.h.b16 %v585
        %v1269 = vunpack.c.l.b16 %v586
        %v1270 = vunpack.c.h.b16 %v586
        %v1271 = vunpack.c.l.b16 %v587
        %v1272 = vunpack.c.h.b16 %v587
        %v1273 = vunpack.c.l.b16 %v588
        %v1274 = vunpack.c.h.b16 %v588
        %v1275 = vunpack.c.l.b16 %v589
        %v1276 = vunpack.c.h.b16 %v589
        %v1277 = vunpack.c.l.b16 %v590
        %v1278 = vunpack.c.h.b16 %v590
        %v1279 = vunpack.c.l.b16 %v591
        %v1280 = vunpack.c.h.b16 %v591
        %v1281 = vunpack.c.l.b16 %v592
        %v1282 = vunpack.c.h.b16 %v592
        %v1283 = vunpack.c.l.b16 %v593
        %v1284 = vunpack.c.h.b16 %v593
        %v1285 = vunpack.c.l.b16 %v594
        %v1286 = vunpack.c.h.b16 %v594
        %v1287 = vunpack.c.l.b16 %v595
        %v1288 = vunpack.c.h.b16 %v595
        %v1289 = vunpack.c.l.b16 %v596
        %v1290 = vunpack.c.h.b16 %v596
        %v1291 = vunpack.c.l.b16 %v597
        %v1292 = vunpack.c.h.b16 %v597
        %v1293 = vunpack.c.l.b16 %v598
        %v1294 = vunpack.c.h.b16 %v598
        %v1295 = vunpack.c.l.b16 %v599
        %v1296 = vunpack.c.h.b16 %v599
        %v1297 = vunpack.c.l.b16 %v600
        %v1298 = vunpack.c.h.b16 %v600
        %v1299 = vunpack.c.l.b16 %v601
        %v1300 = vunpack.c.h.b16 %v601
        %v1301 = vunpack.c.l.b16 %v602
        %v1302 = vunpack.c.h.b16 %v602
        %v1303 = vunpack.c.l.b16 %v603
        %v1304 = vunpack.c.h.b16 %v603
        %v1305 = vunpack.c.l.b16 %v604
        %v1306 = vunpack.c.h.b16 %v604
        %v1307 = vunpack.c.l.b16 %v605
        %v1308 = vunpack.c.h.b16 %v605
        %v1309 = vunpack.c.l.b16 %v606
        %v1310 = vunpack.c.h.b16 %v606
        %v1311 = vunpack.c.l.b16 %v607
        %v1312 = vunpack.c.h.b16 %v607
        %v1313 = vunpack.c.l.b16 %v608
        %v1314 = vunpack.c.h.b16 %v608
        %v1315 = vunpack.c.l.b16 %v609
        %v1316 = vunpack.c.h.b16 %v609
        %v1317 = vunpack.c.l.b16 %v610
        %v1318 = vunpack.c.h.b16 %v610
        %v1319 = vunpack.c.l.b16 %v611
        %v1320 = vunpack.c.h.b16 %v611
        %v1321 = vunpack.c.l.b16 %v612
        %v1322 = vunpack.c.h.b16 %v612
        %v1323 = vunpack.c.l.b16 %v613
        %v1324 = vunpack.c.h.b16 %v613
        %v1325 = vunpack.c.l.b16 %v614
        %v1326 = vunpack.c.h.b16 %v614
        %v1327 = vunpack.c.l.b16 %v615
        %v1328 = vunpack.c.h.b16 %v615
        %v1329 = vunpack.c.l.b16 %v616
        %v1330 = vunpack.c.h.b16 %v616
        %v1331 = vunpack.c.l.b16 %v617
        %v1332 = vunpack.c.h.b16 %v617
        %v1333 = vunpack.c.l.b16 %v618
        %v1334 = vunpack.c.h.b16 %v618
        %v1335 = vunpack.c.l.b16 %v619
        %v1336 = vunpack.c.h.b16 %v619
        %v1337 = vunpack.c.l.b16 %v620
        %v1338 = vunpack.c.h.b16 %v620
        %v1339 = vunpack.c.l.b16 %v621
        %v1340 = vunpack.c.h.b16 %v621
        %v1341 = vunpack.c.l.b16 %v622
        %v1342 = vunpack.c.h.b16 %v622
        %v1343 = vunpack.c.l.b16 %v623
        %v1344 = vunpack.c.h.b16 %v623
        %v1345 = vunpack.c.l.b16 %v624
        %v1346 = vunpack.c.h.b16 %v624
        %v1347 = vunpack.c.l.b16 %v625
        %v1348 = vunpack.c.h.b16 %v625
        %v1349 = vunpack.c.l.b16 %v626
        %v1350 = vunpack.c.h.b16 %v626
        %v1351 = vunpack.c.l.b16 %v627
        %v1352 = vunpack.c.h.b16 %v627
        %v1353 = vunpack.c.l.b16 %v628
        %v1354 = vunpack.c.h.b16 %v628
        %v1355 = vunpack.c.l.b16 %v629
        %v1356 = vunpack.c.h.b16 %v629
        %v1357 = vunpack.c.l.b16 %v630
        %v1358 = vunpack.c.h.b16 %v630
        %v1359 = vunpack.c.l.b16 %v631
        %v1360 = vunpack.c.h.b16 %v631
        %v1361 = vunpack.c.l.b16 %v632
        %v1362 = vunpack.c.h.b16 %v632
        %v1363 = vunpack.c.l.b16 %v633
        %v1364 = vunpack.c.h.b16 %v633
        %v1365 = vunpack.c.l.b16 %v634
        %v1366 = vunpack.c.h.b16 %v634
        %v1367 = vunpack.c.l.b16 %v635
        %v1368 = vunpack.c.h.b16 %v635
        %v1369 = vunpack.c.l.b16 %v636
        %v1370 = vunpack.c.h.b16 %v636
        %v1371 = vunpack.c.l.b16 %v637
        %v1372 = vunpack.c.h.b16 %v637
        %v1373 = vunpack.c.l.b16 %v638
        %v1374 = vunpack.c.h.b16 %v638
        %v1375 = vunpack.c.l.b16 %v639
        %v1376 = vunpack.c.h.b16 %v639
        %v1377 = vunpack.c.l.b16 %v640
        %v1378 = vunpack.c.h.b16 %v640
        %v1379 = vunpack.c.l.b16 %v641
        %v1380 = vunpack.c.h.b16 %v641
        %v1381 = vunpack.c.l.b16 %v642
        %v1382 = vunpack.c.h.b16 %v642
        %v1383 = vunpack.c.l.b16 %v643
        %v1384 = vunpack.c.h.b16 %v643
        %v1385 = vunpack.c.l.b16 %v644
        %v1386 = vunpack.c.h.b16 %v644
        %v1387 = vunpack.c.l.b16 %v645
        %v1388 = vunpack.c.h.b16 %v645
        %v1389 = vunpack.c.l.b16 %v646
        %v1390 = vunpack.c.h.b16 %v646
        %v1391 = vunpack.c.l.b16 %v647
        %v1392 = vunpack.c.h.b16 %v647
        %v1393 = vunpack.c.l.b16 %v648
        %v1394 = vunpack.c.h.b16 %v648
        %v1395 = vunpack.c.l.b16 %v649
        %v1396 = vunpack.c.h.b16 %v649
        %v1397 = vunpack.c.l.b16 %v650
        %v1398 = vunpack.c.h.b16 %v650
        %v1399 = vunpack.c.l.b16 %v651
        %v1400 = vunpack.c.h.b16 %v651
        %v1401 = vunpack.c.l.b16 %v652
        %v1402 = vunpack.c.h.b16 %v652
        %v1403 = vunpack.c.l.b16 %v653
        %v1404 = vunpack.c.h.b16 %v653
        %v1405 = vunpack.c.l.b16 %v654
        %v1406 = vunpack.c.h.b16 %v654
        %v1407 = vunpack.c.l.b16 %v655
        %v1408 = vunpack.c.h.b16 %v655
        %v1409 = vunpack.c.l.b16 %v656
        %v1410 = vunpack.c.h.b16 %v656
        %v1411 = vunpack.c.l.b16 %v657
        %v1412 = vunpack.c.h.b16 %v657
        %v1413 = vunpack.c.l.b16 %v658
        %v1414 = vunpack.c.h.b16 %v658
        %v1415 = vunpack.c.l.b16 %v659
        %v1416 = vunpack.c.h.b16 %v659
        %v1417 = vunpack.c.l.b16 %v660
        %v1418 = vunpack.c.h.b16 %v660
        %v1419 = vunpack.c.l.b16 %v661
        %v1420 = vunpack.c.h.b16 %v661
        %v1421 = vunpack.c.l.b16 %v662
        %v1422 = vunpack.c.h.b16 %v662
        %v1423 = vunpack.c.l.b16 %v663
        %v1424 = vunpack.c.h.b16 %v663
        %v1425 = vunpack.c.l.b16 %v664
        %v1426 = vunpack.c.h.b16 %v664
        %v1427 = vunpack.c.l.b16 %v665
        %v1428 = vunpack.c.h.b16 %v665
        %v1429 = vunpack.c.l.b16 %v666
        %v1430 = vunpack.c.h.b16 %v666
        %v1431 = vunpack.c.l.b16 %v667
        %v1432 = vunpack.c.h.b16 %v667
        %v1433 = vunpack.c.l.b16 %v668
        %v1434 = vunpack.c.h.b16 %v668
        %v1435 = vunpack.c.l.b16 %v669
        %v1436 = vunpack.c.h.b16 %v669
        %v1437 = vunpack.c.l.b16 %v670
        %v1438 = vunpack.c.h.b16 %v670
        %v1439 = vunpack.c.l.b16 %v671
        %v1440 = vunpack.c.h.b16 %v671
        %v1441 = vunpack.c.l.b16 %v672
        %v1442 = vunpack.c.h.b16 %v672
        %v1443 = vunpack.c.l.b16 %v673
        %v1444 = vunpack.c.h.b16 %v673
        %v1445 = vunpack.c.l.b16 %v674
        %v1446 = vunpack.c.h.b16 %v674
        %v1447 = vunpack.c.l.b16 %v675
        %v1448 = vunpack.c.h.b16 %v675
        %v1449 = vunpack.c.l.b16 %v676
        %v1450 = vunpack.c.h.b16 %v676
        %v1451 = vunpack.c.l.b16 %v677
        %v1452 = vunpack.c.h.b16 %v677
        %v1453 = vunpack.c.l.b16 %v678
        %v1454 = vunpack.c.h.b16 %v678
        %v1455 = vunpack.c.l.b16 %v679
        %v1456 = vunpack.c.h.b16 %v679
        %v1457 = vunpack.c.l.b16 %v680
        %v1458 = vunpack.c.h.b16 %v680
        %v1459 = vunpack.c.l.b16 %v681
        %v1460 = vunpack.c.h.b16 %v681
        %v1461 = vunpack.c.l.b16 %v682
        %v1462 = vunpack.c.h.b16 %v682
        %v1463 = vunpack.c.l.b16 %v683
        %v1464 = vunpack.c.h.b16 %v683
        %v1465 = vunpack.c.l.b16 %v684
        %v1466 = vunpack.c.h.b16 %v684
        %v1467 = vunpack.c.l.b16 %v685
        %v1468 = vunpack.c.h.b16 %v685
        %v1469 = vunpack.c.l.b16 %v686
        %v1470 = vunpack.c.h.b16 %v686
        %v1471 = vunpack.c.l.b16 %v687
        %v1472 = vunpack.c.h.b16 %v687
        %v1473 = vunpack.c.l.b16 %v688
        %v1474 = vunpack.c.h.b16 %v688
        %v1475 = vunpack.c.l.b16 %v689
        %v1476 = vunpack.c.h.b16 %v689
        %v1477 = vunpack.c.l.b16 %v690
        %v1478 = vunpack.c.h.b16 %v690
        %v1479 = vunpack.c.l.b16 %v691
        %v1480 = vunpack.c.h.b16 %v691
        %v1481 = vunpack.c.l.b16 %v692
        %v1482 = vunpack.c.h.b16 %v692
        %v1483 = vunpack.c.l.b16 %v693
        %v1484 = vunpack.c.h.b16 %v693
        %v1485 = vunpack.c.l.b16 %v694
        %v1486 = vunpack.c.h.b16 %v694
        %v1487 = vunpack.c.l.b16 %v695
        %v1488 = vunpack.c.h.b16 %v695
        %v1489 = vunpack.c.l.b16 %v696
        %v1490 = vunpack.c.h.b16 %v696
        %v1491 = vunpack.c.l.b16 %v697
        %v1492 = vunpack.c.h.b16 %v697
        %v1493 = vunpack.c.l.b16 %v698
        %v1494 = vunpack.c.h.b16 %v698
        %v1495 = vunpack.c.l.b16 %v699
        %v1496 = vunpack.c.h.b16 %v699
        %v1497 = vunpack.c.l.b16 %v700
        %v1498 = vunpack.c.h.b16 %v700
        %v1499 = vunpack.c.l.b16 %v701
        %v1500 = vunpack.c.h.b16 %v701
        %v1501 = vunpack.c.l.b16 %v702
        %v1502 = vunpack.c.h.b16 %v702
        %v1503 = vunpack.c.l.b16 %v703
        %v1504 = vunpack.c.h.b16 %v703
        %v1505 = vunpack.c.l.b16 %v704
        %v1506 = vunpack.c.h.b16 %v704
        %v1507 = vunpack.c.l.b16 %v705
        %v1508 = vunpack.c.h.b16 %v705
        %v1509 = vunpack.c.l.b16 %v706
        %v1510 = vunpack.c.h.b16 %v706
        %v1511 = vunpack.c.l.b16 %v707
        %v1512 = vunpack.c.h.b16 %v707
        %v1513 = vunpack.c.l.b16 %v708
        %v1514 = vunpack.c.h.b16 %v708
        %v1515 = vunpack.c.l.b16 %v709
        %v1516 = vunpack.c.h.b16 %v709
        %v1517 = vunpack.c.l.b16 %v710
        %v1518 = vunpack.c.h.b16 %v710
        %v1519 = vunpack.c.l.b16 %v711
        %v1520 = vunpack.c.h.b16 %v711
        %v1521 = vunpack.c.l.b16 %v712
        %v1522 = vunpack.c.h.b16 %v712
        %v1523 = vunpack.c.l.b16 %v713
        %v1524 = vunpack.c.h.b16 %v713
        %v1525 = vunpack.c.l.b16 %v714
        %v1526 = vunpack.c.h.b16 %v714
        %v1527 = vunpack.c.l.b16 %v715
        %v1528 = vunpack.c.h.b16 %v715
        %v1529 = vunpack.c.l.b16 %v716
        %v1530 = vunpack.c.h.b16 %v716
        %v1531 = vunpack.c.l.b16 %v717
        %v1532 = vunpack.c.h.b16 %v717
        %v1533 = vunpack.c.l.b16 %v718
        %v1534 = vunpack.c.h.b16 %v718
        %v1535 = vunpack.c.l.b16 %v719
        %v1536 = vunpack.c.h.b16 %v719
        %v1537 = vunpack.c.l.b16 %v720
        %v1538 = vunpack.c.h.b16 %v720
        %v1539 = vunpack.c.l.b16 %v721
        %v1540 = vunpack.c.h.b16 %v721
        %v1541 = vunpack.c.l.b16 %v722
        %v1542 = vunpack.c.h.b16 %v722
        %v1543 = vunpack.c.l.b16 %v723
        %v1544 = vunpack.c.h.b16 %v723
        %v1545 = vunpack.c.l.b16 %v724
        %v1546 = vunpack.c.h.b16 %v724
        %v1547 = vunpack.c.l.b16 %v725
        %v1548 = vunpack.c.h.b16 %v725
        %v1549 = vunpack.c.l.b16 %v726
        %v1550 = vunpack.c.h.b16 %v726
        %v1551 = vunpack.c.l.b16 %v727
        %v1552 = vunpack.c.h.b16 %v727
        %v1553 = vunpack.c.l.b16 %v728
        %v1554 = vunpack.c.h.b16 %v728
        %v1555 = vunpack.c.l.b16 %v729
        %v1556 = vunpack.c.h.b16 %v729
        %v1557 = vunpack.c.l.b16 %v730
        %v1558 = vunpack.c.h.b16 %v730
        %v1559 = vunpack.c.l.b16 %v731
        %v1560 = vunpack.c.h.b16 %v731
        %v1561 = vunpack.c.l.b16 %v732
        %v1562 = vunpack.c.h.b16 %v732
        %v1563 = vunpack.c.l.b16 %v733
        %v1564 = vunpack.c.h.b16 %v733
        %v1565 = vunpack.c.l.b16 %v734
        %v1566 = vunpack.c.h.b16 %v734
        %v1567 = vunpack.c.l.b16 %v735
        %v1568 = vunpack.c.h.b16 %v735
        %v1569 = vunpack.c.l.b16 %v736
        %v1570 = vunpack.c.h.b16 %v736
        %v1571 = vunpack.c.l.b16 %v737
        %v1572 = vunpack.c.h.b16 %v737
        %v1573 = vunpack.c.l.b16 %v738
        %v1574 = vunpack.c.h.b16 %v738
        %v1575 = vunpack.c.l.b16 %v739
        %v1576 = vunpack.c.h.b16 %v739
        %v1577 = vunpack.c.l.b16 %v740
        %v1578 = vunpack.c.h.b16 %v740
        %v1579 = vunpack.c.l.b16 %v741
        %v1580 = vunpack.c.h.b16 %v741
        %v1581 = vunpack.c.l.b16 %v742
        %v1582 = vunpack.c.h.b16 %v742
        %v1583 = vunpack.c.l.b16 %v743
        %v1584 = vunpack.c.h.b16 %v743
        %v1585 = vunpack.c.l.b16 %v744
        %v1586 = vunpack.c.h.b16 %v744
        %v1587 = vunpack.c.l.b16 %v745
        %v1588 = vunpack.c.h.b16 %v745
        %v1589 = vunpack.c.l.b16 %v746
        %v1590 = vunpack.c.h.b16 %v746
        %v1591 = vunpack.c.l.b16 %v747
        %v1592 = vunpack.c.h.b16 %v747
        %v1593 = vunpack.c.l.b16 %v748
        %v1594 = vunpack.c.h.b16 %v748
        %v1595 = vunpack.c.l.b16 %v749
        %v1596 = vunpack.c.h.b16 %v749
        %v1597 = vunpack.c.l.b16 %v750
        %v1598 = vunpack.c.h.b16 %v750
        %v1599 = vunpack.c.l.b16 %v751
        %v1600 = vunpack.c.h.b16 %v751
        %v1601 = vunpack.c.l.b16 %v752
        %v1602 = vunpack.c.h.b16 %v752
        %v1603 = vunpack.c.l.b16 %v753
        %v1604 = vunpack.c.h.b16 %v753
        %v1605 = vunpack.c.l.b16 %v754
        %v1606 = vunpack.c.h.b16 %v754
        %v1607 = vunpack.c.l.b16 %v755
        %v1608 = vunpack.c.h.b16 %v755
        %v1609 = vunpack.c.l.b16 %v756
        %v1610 = vunpack.c.h.b16 %v756
        %v1611 = vunpack.c.l.b16 %v757
        %v1612 = vunpack.c.h.b16 %v757
        %v1613 = vunpack.c.l.b16 %v758
        %v1614 = vunpack.c.h.b16 %v758
        %v1615 = vunpack.c.l.b16 %v759
        %v1616 = vunpack.c.h.b16 %v759
        %v1617 = vunpack.c.l.b16 %v760
        %v1618 = vunpack.c.h.b16 %v760
        %v1619 = vunpack.c.l.b16 %v761
        %v1620 = vunpack.c.h.b16 %v761
        %v1621 = vunpack.c.l.b16 %v762
        %v1622 = vunpack.c.h.b16 %v762
        %v1623 = vunpack.c.l.b16 %v763
        %v1624 = vunpack.c.h.b16 %v763
        %v1625 = vunpack.c.l.b16 %v764
        %v1626 = vunpack.c.h.b16 %v764
        %v1627 = vunpack.c.l.b16 %v765
        %v1628 = vunpack.c.h.b16 %v765
        %v1629 = vunpack.c.l.b16 %v766
        %v1630 = vunpack.c.h.b16 %v766
        %v1631 = vunpack.c.l.b16 %v767
        %v1632 = vunpack.c.h.b16 %v767
        %v1633 = vunpack.c.l.b16 %v768
        %v1634 = vunpack.c.h.b16 %v768
        %v1635 = vunpack.c.l.b16 %v769
        %v1636 = vunpack.c.h.b16 %v769
        %v1637 = vunpack.c.l.b16 %v770
        %v1638 = vunpack.c.h.b16 %v770
        %v1639 = vunpack.c.l.b16 %v771
        %v1640 = vunpack.c.h.b16 %v771
        %v1641 = vunpack.c.l.b16 %v772
        %v1642 = vunpack.c.h.b16 %v772
        %v1643 = vunpack.c.l.b16 %v773
        %v1644 = vunpack.c.h.b16 %v773
        %v1645 = vunpack.c.l.b16 %v774
        %v1646 = vunpack.c.h.b16 %v774
        %v1647 = vunpack.c.l.b16 %v775
        %v1648 = vunpack.c.h.b16 %v775
        %v1649 = vunpack.c.l.b16 %v776
        %v1650 = vunpack.c.h.b16 %v776
        %v1651 = vunpack.c.l.b16 %v777
        %v1652 = vunpack.c.h.b16 %v777
        %v1653 = vunpack.c.l.b16 %v778
        %v1654 = vunpack.c.h.b16 %v778
        %v1655 = vunpack.c.l.b16 %v779
        %v1656 = vunpack.c.h.b16 %v779
        %v1657 = vunpack.c.l.b16 %v780
        %v1658 = vunpack.c.h.b16 %v780
        %v1659 = vunpack.c.l.b16 %v781
        %v1660 = vunpack.c.h.b16 %v781
        %v1661 = vunpack.c.l.b16 %v782
        %v1662 = vunpack.c.h.b16 %v782
        %v1663 = vunpack.c.l.b16 %v783
        %v1664 = vunpack.c.h.b16 %v783
        %v1665 = vunpack.c.l.b16 %v784
        %v1666 = vunpack.c.h.b16 %v784
        %v1667 = vunpack.c.l.b16 %v785
        %v1668 = vunpack.c.h.b16 %v785
        %v1669 = vunpack.c.l.b16 %v786
        %v1670 = vunpack.c.h.b16 %v786
        %v1671 = vunpack.c.l.b16 %v787
        %v1672 = vunpack.c.h.b16 %v787
        %v1673 = vunpack.c.l.b16 %v788
        %v1674 = vunpack.c.h.b16 %v788
        %v1675 = vunpack.c.l.b16 %v789
        %v1676 = vunpack.c.h.b16 %v789
        %v1677 = vunpack.c.l.b16 %v790
        %v1678 = vunpack.c.h.b16 %v790
        %v1679 = vunpack.c.l.b16 %v791
        %v1680 = vunpack.c.h.b16 %v791
        %v1681 = vunpack.c.l.b16 %v792
        %v1682 = vunpack.c.h.b16 %v792
        %v1683 = vunpack.c.l.b16 %v793
        %v1684 = vunpack.c.h.b16 %v793
        %v1685 = vunpack.c.l.b16 %v794
        %v1686 = vunpack.c.h.b16 %v794
        %v1687 = vunpack.c.l.b16 %v795
        %v1688 = vunpack.c.h.b16 %v795
        %v1689 = vunpack.c.l.b16 %v796
        %v1690 = vunpack.c.h.b16 %v796
        %v1691 = vunpack.c.l.b16 %v797
        %v1692 = vunpack.c.h.b16 %v797
        %v1693 = vunpack.c.l.b16 %v798
        %v1694 = vunpack.c.h.b16 %v798
        %v1695 = vunpack.c.l.b16 %v799
        %v1696 = vunpack.c.h.b16 %v799
        %v1697 = vunpack.c.l.b16 %v800
        %v1698 = vunpack.c.h.b16 %v800
        %v1699 = vunpack.c.l.b16 %v801
        %v1700 = vunpack.c.h.b16 %v801
        %v1701 = vunpack.c.l.b16 %v802
        %v1702 = vunpack.c.h.b16 %v802
        %v1703 = vunpack.c.l.b16 %v803
        %v1704 = vunpack.c.h.b16 %v803
        %v1705 = vunpack.c.l.b16 %v804
        %v1706 = vunpack.c.h.b16 %v804
        %v1707 = vunpack.c.l.b16 %v805
        %v1708 = vunpack.c.h.b16 %v805
        %v1709 = vunpack.c.l.b16 %v806
        %v1710 = vunpack.c.h.b16 %v806
        %v1711 = vunpack.c.l.b16 %v807
        %v1712 = vunpack.c.h.b16 %v807
        %v1713 = vunpack.c.l.b16 %v808
        %v1714 = vunpack.c.h.b16 %v808
        %v1715 = vunpack.c.l.b16 %v809
        %v1716 = vunpack.c.h.b16 %v809
        %v1717 = vunpack.c.l.b16 %v810
        %v1718 = vunpack.c.h.b16 %v810
        %v1719 = vunpack.c.l.b16 %v811
        %v1720 = vunpack.c.h.b16 %v811
        %v1721 = vunpack.c.l.b16 %v812
        %v1722 = vunpack.c.h.b16 %v812
        %v1723 = vunpack.c.l.b16 %v813
        %v1724 = vunpack.c.h.b16 %v813
        %v1725 = vunpack.c.l.b16 %v814
        %v1726 = vunpack.c.h.b16 %v814
        %v1727 = vunpack.c.l.b16 %v815
        %v1728 = vunpack.c.h.b16 %v815
        %v1729 = vunpack.c.l.b16 %v816
        %v1730 = vunpack.c.h.b16 %v816
        %v1731 = vunpack.c.l.b16 %v817
        %v1732 = vunpack.c.h.b16 %v817
        %v1733 = vunpack.c.l.b16 %v818
        %v1734 = vunpack.c.h.b16 %v818
        %v1735 = vunpack.c.l.b16 %v819
        %v1736 = vunpack.c.h.b16 %v819
        %v1737 = vunpack.c.l.b16 %v820
        %v1738 = vunpack.c.h.b16 %v820
        %v1739 = vunpack.c.l.b16 %v821
        %v1740 = vunpack.c.h.b16 %v821
        %v1741 = vunpack.c.l.b16 %v822
        %v1742 = vunpack.c.h.b16 %v822
        %v1743 = vunpack.c.l.b16 %v823
        %v1744 = vunpack.c.h.b16 %v823
        %v1745 = vunpack.c.l.b16 %v824
        %v1746 = vunpack.c.h.b16 %v824
        %v1747 = vunpack.c.l.b16 %v825
        %v1748 = vunpack.c.h.b16 %v825
        %v1749 = vunpack.c.l.b16 %v826
        %v1750 = vunpack.c.h.b16 %v826
        %v1751 = vunpack.c.l.b16 %v827
        %v1752 = vunpack.c.h.b16 %v827
        %v1753 = vunpack.c.l.b16 %v828
        %v1754 = vunpack.c.h.b16 %v828
        %v1755 = vunpack.c.l.b16 %v829
        %v1756 = vunpack.c.h.b16 %v829
        %v1757 = vunpack.c.l.b16 %v830
        %v1758 = vunpack.c.h.b16 %v830
        %v1759 = vunpack.c.l.b16 %v831
        %v1760 = vunpack.c.h.b16 %v831
        %v1761 = vunpack.c.l.b16 %v832
        %v1762 = vunpack.c.h.b16 %v832
        %v1763 = vunpack.c.l.b16 %v833
        %v1764 = vunpack.c.h.b16 %v833
        %v1765 = vunpack.c.l.b16 %v834
        %v1766 = vunpack.c.h.b16 %v834
        %v1767 = vunpack.c.l.b16 %v835
        %v1768 = vunpack.c.h.b16 %v835
        %v1769 = vunpack.c.l.b16 %v836
        %v1770 = vunpack.c.h.b16 %v836
        %v1771 = vunpack.c.l.b16 %v837
        %v1772 = vunpack.c.h.b16 %v837
        %v1773 = vunpack.c.l.b16 %v838
        %v1774 = vunpack.c.h.b16 %v838
        %v1775 = vunpack.c.l.b16 %v839
        %v1776 = vunpack.c.h.b16 %v839
        %v1777 = vunpack.c.l.b16 %v840
        %v1778 = vunpack.c.h.b16 %v840
        %v1779 = vunpack.c.l.b16 %v841
        %v1780 = vunpack.c.h.b16 %v841
        %v1781 = vunpack.c.l.b16 %v842
        %v1782 = vunpack.c.h.b16 %v842
        %v1783 = vunpack.c.l.b16 %v843
        %v1784 = vunpack.c.h.b16 %v843
        %v1785 = vunpack.c.l.b16 %v844
        %v1786 = vunpack.c.h.b16 %v844
        %v1787 = vpack.c.b16 %v1195, %v1187
        %v1788 = vpack.c.b16 %v1196, %v1188
        %v1789 = vpack.c.b16 %v1197, %v1189
        %v1790 = vpack.c.b16 %v1198, %v1190
        %v1791 = vpack.c.b16 %v1199, %v1191
        %v1792 = vpack.c.b16 %v1200, %v1192
        %v1793 = vpack.c.b16 %v1201, %v1193
        %v1794 = vpack.c.b16 %v1202, %v1194
        %v1795 = vpack.c.b16 %v1211, %v1203
        %v1796 = vpack.c.b16 %v1212, %v1204
        %v1797 = vpack.c.b16 %v1213, %v1205
        %v1798 = vpack.c.b16 %v1214, %v1206
        %v1799 = vpack.c.b16 %v1215, %v1207
        %v1800 = vpack.c.b16 %v1216, %v1208
        %v1801 = vpack.c.b16 %v1217, %v1209
        %v1802 = vpack.c.b16 %v1218, %v1210
        %v1803 = vpack.c.b16 %v1227, %v1219
        %v1804 = vpack.c.b16 %v1228, %v1220
        %v1805 = vpack.c.b16 %v1229, %v1221
        %v1806 = vpack.c.b16 %v1230, %v1222
        %v1807 = vpack.c.b16 %v1231, %v1223
        %v1808 = vpack.c.b16 %v1232, %v1224
        %v1809 = vpack.c.b16 %v1233, %v1225
        %v1810 = vpack.c.b16 %v1234, %v1226
        %v1811 = vpack.c.b16 %v1243, %v1235
        %v1812 = vpack.c.b16 %v1244, %v1236
        %v1813 = vpack.c.b16 %v1245, %v1237
        %v1814 = vpack.c.b16 %v1246, %v1238
        %v1815 = vpack.c.b16 %v1247, %v1239
        %v1816 = vpack.c.b16 %v1248, %v1240
        %v1817 = vpack.c.b16 %v1249, %v1241
        %v1818 = vpack.c.b16 %v1250, %v1242
        %v1819 = vpack.c.b16 %v1259, %v1251
        %v1820 = vpack.c.b16 %v1260, %v1252
        %v1821 = vpack.c.b16 %v1261, %v1253
        %v1822 = vpack.c.b16 %v1262, %v1254
        %v1823 = vpack.c.b16 %v1263, %v1255
        %v1824 = vpack.c.b16 %v1264, %v1256
        %v1825 = vpack.c.b16 %v1265, %v1257
        %v1826 = vpack.c.b16 %v1266, %v1258
        %v1827 = vpack.c.b16 %v1275, %v1267
        %v1828 = vpack.c.b16 %v1276, %v1268
        %v1829 = vpack.c.b16 %v1277, %v1269
        %v1830 = vpack.c.b16 %v1278, %v1270
        %v1831 = vpack.c.b16 %v1279, %v1271
        %v1832 = vpack.c.b16 %v1280, %v1272
        %v1833 = vpack.c.b16 %v1281, %v1273
        %v1834 = vpack.c.b16 %v1282, %v1274
        %v1835 = vpack.c.b16 %v1291, %v1283
        %v1836 = vpack.c.b16 %v1292, %v1284
        %v1837 = vpack.c.b16 %v1293, %v1285
        %v1838 = vpack.c.b16 %v1294, %v1286
        %v1839 = vpack.c.b16 %v1295, %v1287
        %v1840 = vpack.c.b16 %v1296, %v1288
        %v1841 = vpack.c.b16 %v1297, %v1289
        %v1842 = vpack.c.b16 %v1298, %v1290
        %v1843 = vpack.c.b16 %v1307, %v1299
        %v1844 = vpack.c.b16 %v1308, %v1300
        %v1845 = vpack.c.b16 %v1309, %v1301
        %v1846 = vpack.c.b16 %v1310, %v1302
        %v1847 = vpack.c.b16 %v1311, %v1303
        %v1848 = vpack.c.b16 %v1312, %v1304
        %v1849 = vpack.c.b16 %v1313, %v1305
        %v1850 = vpack.c.b16 %v1314, %v1306
        %v1851 = vpack.c.b16 %v1323, %v1315
        %v1852 = vpack.c.b16 %v1324, %v1316
        %v1853 = vpack.c.b16 %v1325, %v1317
        %v1854 = vpack.c.b16 %v1326, %v1318
        %v1855 = vpack.c.b16 %v1327, %v1319
        %v1856 = vpack.c.b16 %v1328, %v1320
        %v1857 = vpack.c.b16 %v1329, %v1321
        %v1858 = vpack.c.b16 %v1330, %v1322
        %v1859 = vpack.c.b16 %v1339, %v1331
        %v1860 = vpack.c.b16 %v1340, %v1332
        %v1861 = vpack.c.b16 %v1341, %v1333
        %v1862 = vpack.c.b16 %v1342, %v1334
        %v1863 = vpack.c.b16 %v1343, %v1335
        %v1864 = vpack.c.b16 %v1344, %v1336
        %v1865 = vpack.c.b16 %v1345, %v1337
        %v1866 = vpack.c.b16 %v1346, %v1338
        %v1867 = vpack.c.b16 %v1355, %v1347
        %v1868 = vpack.c.b16 %v1356, %v1348
        %v1869 = vpack.c.b16 %v1357, %v1349
        %v1870 = vpack.c.b16 %v1358, %v1350
        %v1871 = vpack.c.b16 %v1359, %v1351
        %v1872 = vpack.c.b16 %v1360, %v1352
        %v1873 = vpack.c.b16 %v1361, %v1353
        %v1874 = vpack.c.b16 %v1362, %v1354
        %v1875 = vpack.c.b16 %v1371, %v1363
        %v1876 = vpack.c.b16 %v1372, %v1364
        %v1877 = vpack.c.b16 %v1373, %v1365
        %v1878 = vpack.c.b16 %v1374, %v1366
        %v1879 = vpack.c.b16 %v1375, %v1367
        %v1880 = vpack.c.b16 %v1376, %v1368
        %v1881 = vpack.c.b16 %v1377, %v1369
        %v1882 = vpack.c.b16 %v1378, %v1370
        %v1883 = vpack.c.b16 %v1387, %v1379
        %v1884 = vpack.c.b16 %v1388, %v1380
        %v1885 = vpack.c.b16 %v1389, %v1381
        %v1886 = vpack.c.b16 %v1390, %v1382
        %v1887 = vpack.c.b16 %v1391, %v1383
        %v1888 = vpack.c.b16 %v1392, %v1384
        %v1889 = vpack.c.b16 %v1393, %v1385
        %v1890 = vpack.c.b16 %v1394, %v1386
        %v1891 = vpack.c.b16 %v1403, %v1395
        %v1892 = vpack.c.b16 %v1404, %v1396
        %v1893 = vpack.c.b16 %v1405, %v1397
        %v1894 = vpack.c.b16 %v1406, %v1398
        %v1895 = vpack.c.b16 %v1407, %v1399
        %v1896 = vpack.c.b16 %v1408, %v1400
        %v1897 = vpack.c.b16 %v1409, %v1401
        %v1898 = vpack.c.b16 %v1410, %v1402
        %v1899 = vpack.c.b16 %v1419, %v1411
        %v1900 = vpack.c.b16 %v1420, %v1412
        %v1901 = vpack.c.b16 %v1421, %v1413
        %v1902 = vpack.c.b16 %v1422, %v1414
        %v1903 = vpack.c.b16 %v1423, %v1415
        %v1904 = vpack.c.b16 %v1424, %v1416
        %v1905 = vpack.c.b16 %v1425, %v1417
        %v1906 = vpack.c.b16 %v1426, %v1418
        %v1907 = vpack.c.b16 %v1435, %v1427
        %v1908 = vpack.c.b16 %v1436, %v1428
        %v1909 = vpack.c.b16 %v1437, %v1429
        %v1910 = vpack.c.b16 %v1438, %v1430
        %v1911 = vpack.c.b16 %v1439, %v1431
        %v1912 = vpack.c.b16 %v1440, %v1432
        %v1913 = vpack.c.b16 %v1441, %v1433
        %v1914 = vpack.c.b16 %v1442, %v1434
        %v1915 = vpack.c.b16 %v1451, %v1443
        %v1916 = vpack.c.b16 %v1452, %v1444
        %v1917 = vpack.c.b16 %v1453, %v1445
        %v1918 = vpack.c.b16 %v1454, %v1446
        %v1919 = vpack.c.b16 %v1455, %v1447
        %v1920 = vpack.c.b16 %v1456, %v1448
        %v1921 = vpack.c.b16 %v1457, %v1449
        %v1922 = vpack.c.b16 %v1458, %v1450
        %v1923 = vpack.c.b16 %v1467, %v1459
        %v1924 = vpack.c.b16 %v1468, %v1460
        %v1925 = vpack.c.b16 %v1469, %v1461
        %v1926 = vpack.c.b16 %v1470, %v1462
        %v1927 = vpack.c.b16 %v1471, %v1463
        %v1928 = vpack.c.b16 %v1472, %v1464
        %v1929 = vpack.c.b16 %v1473, %v1465
        %v1930 = vpack.c.b16 %v1474, %v1466
        %v1931 = vpack.c.b16 %v1483, %v1475
        %v1932 = vpack.c.b16 %v1484, %v1476
        %v1933 = vpack.c.b16 %v1485, %v1477
        %v1934 = vpack.c.b16 %v1486, %v1478
        %v1935 = vpack.c.b16 %v1487, %v1479
        %v1936 = vpack.c.b16 %v1488, %v1480
        %v1937 = vpack.c.b16 %v1489, %v1481
        %v1938 = vpack.c.b16 %v1490, %v1482
        %v1939 = vpack.c.b16 %v1499, %v1491
        %v1940 = vpack.c.b16 %v1500, %v1492
        %v1941 = vpack.c.b16 %v1501, %v1493
        %v1942 = vpack.c.b16 %v1502, %v1494
        %v1943 = vpack.c.b16 %v1503, %v1495
        %v1944 = vpack.c.b16 %v1504, %v1496
        %v1945 = vpack.c.b16 %v1505, %v1497
        %v1946 = vpack.c.b16 %v1506, %v1498
        %v1947 = vpack.c.b16 %v1515, %v1507
        %v1948 = vpack.c.b16 %v1516, %v1508
        %v1949 = vpack.c.b16 %v1517, %v1509
        %v1950 = vpack.c.b16 %v1518, %v1510
        %v1951 = vpack.c.b16 %v1519, %v1511
        %v1952 = vpack.c.b16 %v1520, %v1512
        %v1953 = vpack.c.b16 %v1521, %v1513
        %v1954 = vpack.c.b16 %v1522, %v1514
        %v1955 = vpack.c.b16 %v1531, %v1523
        %v1956 = vpack.c.b16 %v1532, %v1524
        %v1957 = vpack.c.b16 %v1533, %v1525
        %v1958 = vpack.c.b16 %v1534, %v1526
        %v1959 = vpack.c.b16 %v1535, %v1527
        %v1960 = vpack.c.b16 %v1536, %v1528
        %v1961 = vpack.c.b16 %v1537, %v1529
        %v1962 = vpack.c.b16 %v1538, %v1530
        %v1963 = vpack.c.b16 %v1547, %v1539
        %v1964 = vpack.c.b16 %v1548, %v1540
        %v1965 = vpack.c.b16 %v1549, %v1541
        %v1966 = vpack.c.b16 %v1550, %v1542
        %v1967 = vpack.c.b16 %v1551, %v1543
        %v1968 = vpack.c.b16 %v1552, %v1544
        %v1969 = vpack.c.b16 %v1553, %v1545
        %v1970 = vpack.c.b16 %v1554, %v1546
        %v1971 = vpack.c.b16 %v1563, %v1555
        %v1972 = vpack.c.b16 %v1564, %v1556
        %v1973 = vpack.c.b16 %v1565, %v1557
        %v1974 = vpack.c.b16 %v1566, %v1558
        %v1975 = vpack.c.b16 %v1567, %v1559
        %v1976 = vpack.c.b16 %v1568, %v1560
        %v1977 = vpack.c.b16 %v1569, %v1561
        %v1978 = vpack.c.b16 %v1570, %v1562
        %v1979 = vpack.c.b16 %v1579, %v1571
        %v1980 = vpack.c.b16 %v1580, %v1572
        %v1981 = vpack.c.b16 %v1581, %v1573
        %v1982 = vpack.c.b16 %v1582, %v1574
        %v1983 = vpack.c.b16 %v1583, %v1575
        %v1984 = vpack.c.b16 %v1584, %v1576
        %v1985 = vpack.c.b16 %v1585, %v1577
        %v1986 = vpack.c.b16 %v1586, %v1578
        %v1987 = vpack.c.b16 %v1595, %v1587
        %v1988 = vpack.c.b16 %v1596, %v1588
        %v1989 = vpack.c.b16 %v1597, %v1589
        %v1990 = vpack.c.b16 %v1598, %v1590
        %v1991 = vpack.c.b16 %v1599, %v1591
        %v1992 = vpack.c.b16 %v1600, %v1592
        %v1993 = vpack.c.b16 %v1601, %v1593
        %v1994 = vpack.c.b16 %v1602, %v1594
        %v1995 = vpack.c.b16 %v1611, %v1603
        %v1996 = vpack.c.b16 %v1612, %v1604
        %v1997 = vpack.c.b16 %v1613, %v1605
        %v1998 = vpack.c.b16 %v1614, %v1606
        %v1999 = vpack.c.b16 %v1615, %v1607
        %v2000 = vpack.c.b16 %v1616, %v1608
        %v2001 = vpack.c.b16 %v1617, %v1609
        %v2002 = vpack.c.b16 %v1618, %v1610
        %v2003 = vpack.c.b16 %v1627, %v1619
        %v2004 = vpack.c.b16 %v1628, %v1620
        %v2005 = vpack.c.b16 %v1629, %v1621
        %v2006 = vpack.c.b16 %v1630, %v1622
        %v2007 = vpack.c.b16 %v1631, %v1623
        %v2008 = vpack.c.b16 %v1632, %v1624
        %v2009 = vpack.c.b16 %v1633, %v1625
        %v2010 = vpack.c.b16 %v1634, %v1626
        %v2011 = vpack.c.b16 %v1643, %v1635
        %v2012 = vpack.c.b16 %v1644, %v1636
        %v2013 = vpack.c.b16 %v1645, %v1637
        %v2014 = vpack.c.b16 %v1646, %v1638
        %v2015 = vpack.c.b16 %v1647, %v1639
        %v2016 = vpack.c.b16 %v1648, %v1640
        %v2017 = vpack.c.b16 %v1649, %v1641
        %v2018 = vpack.c.b16 %v1650, %v1642
        %v2019 = vpack.c.b16 %v1659, %v1651
        %v2020 = vpack.c.b16 %v1660, %v1652
        %v2021 = vpack.c.b16 %v1661, %v1653
        %v2022 = vpack.c.b16 %v1662, %v1654
        %v2023 = vpack.c.b16 %v1663, %v1655
        %v2024 = vpack.c.b16 %v1664, %v1656
        %v2025 = vpack.c.b16 %v1665, %v1657
        %v2026 = vpack.c.b16 %v1666, %v1658
        %v2027 = vpack.c.b16 %v1675, %v1667
        %v2028 = vpack.c.b16 %v1676, %v1668
        %v2029 = vpack.c.b16 %v1677, %v1669
        %v2030 = vpack.c.b16 %v1678, %v1670
        %v2031 = vpack.c.b16 %v1679, %v1671
        %v2032 = vpack.c.b16 %v1680, %v1672
        %v2033 = vpack.c.b16 %v1681, %v1673
        %v2034 = vpack.c.b16 %v1682, %v1674
        %v2035 = vpack.c.b16 %v1691, %v1683
        %v2036 = vpack.c.b16 %v1692, %v1684
        %v2037 = vpack.c.b16 %v1693, %v1685
        %v2038 = vpack.c.b16 %v1694, %v1686
        %v2039 = vpack.c.b16 %v1695, %v1687
        %v2040 = vpack.c.b16 %v1696, %v1688
        %v2041 = vpack.c.b16 %v1697, %v1689
        %v2042 = vpack.c.b16 %v1698, %v1690
        %v2043 = vpack.c.b16 %v1707, %v1699
        %v2044 = vpack.c.b16 %v1708, %v1700
        %v2045 = vpack.c.b16 %v1709, %v1701
        %v2046 = vpack.c.b16 %v1710, %v1702
        %v2047 = vpack.c.b16 %v1711, %v1703
        %v2048 = vpack.c.b16 %v1712, %v1704
        %v2049 = vpack.c.b16 %v1713, %v1705
        %v2050 = vpack.c.b16 %v1714, %v1706
        %v2051 = vpack.c.b16 %v1723, %v1715
        %v2052 = vpack.c.b16 %v1724, %v1716
        %v2053 = vpack.c.b16 %v1725, %v1717
        %v2054 = vpack.c.b16 %v1726, %v1718
        %v2055 = vpack.c.b16 %v1727, %v1719
        %v2056 = vpack.c.b16 %v1728, %v1720
        %v2057 = vpack.c.b16 %v1729, %v1721
        %v2058 = vpack.c.b16 %v1730, %v1722
        %v2059 = vpack.c.b16 %v1739, %v1731
        %v2060 = vpack.c.b16 %v1740, %v1732
        %v2061 = vpack.c.b16 %v1741, %v1733
        %v2062 = vpack.c.b16 %v1742, %v1734
        %v2063 = vpack.c.b16 %v1743, %v1735
        %v2064 = vpack.c.b16 %v1744, %v1736
        %v2065 = vpack.c.b16 %v1745, %v1737
        %v2066 = vpack.c.b16 %v1746, %v1738
        %v2067 = vpack.c.b16 %v1755, %v1747
        %v2068 = vpack.c.b16 %v1756, %v1748
        %v2069 = vpack.c.b16 %v1757, %v1749
        %v2070 = vpack.c.b16 %v1758, %v1750
        %v2071 = vpack.c.b16 %v1759, %v1751
        %v2072 = vpack.c.b16 %v1760, %v1752
        %v2073 = vpack.c.b16 %v1761, %v1753
        %v2074 = vpack.c.b16 %v1762, %v1754
        %v2075 = vpack.c.b16 %v1771, %v1763
        %v2076 = vpack.c.b16 %v1772, %v1764
        %v2077 = vpack.c.b16 %v1773, %v1765
        %v2078 = vpack.c.b16 %v1774, %v1766
        %v2079 = vpack.c.b16 %v1775, %v1767
        %v2080 = vpack.c.b16 %v1776, %v1768
        %v2081 = vpack.c.b16 %v1777, %v1769
        %v2082 = vpack.c.b16 %v1778, %v1770
        %v2083 = vpack.c.b16 %v1779, %v1779
        %v2084 = vpack.c.b16 %v1780, %v1780
        %v2085 = vpack.c.b16 %v1781, %v1781
        %v2086 = vpack.c.b16 %v1782, %v1782
        %v2087 = vpack.c.b16 %v1783, %v1783
        %v2088 = vpack.c.b16 %v1784, %v1784
        %v2089 = vpack.c.b16 %v1785, %v1785
        %v2090 = vpack.c.b16 %v1786, %v1786
        %vm2387 = vcmask 719872
        %v2389 = vsel %vm2387, %v544, 0
        %vm2391 = vcmask 1043456
        %v2393 = vsel %vm2391, %v2083, 0
        %v2396 = vsel %vm2391, %v2084, 0
        %v2399 = vsel %vm2391, %v2085, 0
        %v2402 = vsel %vm2391, %v2086, 0
        %v2405 = vsel %vm2391, %v2087, 0
        %v2408 = vsel %vm2391, %v2088, 0
        %v2411 = vsel %vm2391, %v2089, 0
        %v2414 = vsel %vm2391, %v2090, 0
        %2416 = vmatprep.subr.bf16.mxu0 %v1844
        %2417 = vmatpush1.bf16.msra.mxu0 %v1843
        %2418 = vmatprep.subr.bf16.mxu0 %v1836
        %2419 = vmatpush1.bf16.msra.mxu0 %v1835
        %2420 = vmatprep.subr.bf16.mxu0 %v1828
        %2421 = vmatpush1.bf16.msra.mxu0 %v1827
        %2422 = vmatprep.subr.bf16.mxu0 %v1820
        %2423 = vmatpush1.bf16.msra.mxu0 %v1819
        %2424 = vmatprep.subr.bf16.mxu0 %v1812
        %2425 = vmatpush1.bf16.msra.mxu0 %v1811
        %2426 = vmatprep.subr.bf16.mxu0 %v1804
        %2427 = vmatpush1.bf16.msra.mxu0 %v1803
        %2428 = vmatprep.subr.bf16.mxu0 %v1796
        %2429 = vmatpush1.bf16.msra.mxu0 %v1795
        %2430 = vmatprep.subr.bf16.mxu0 %v1788
        %2431 = vmatpush1.bf16.msra.mxu0 %v1787
        %2432 = vmatprep.subr.bf16.mxu0 %v1908
        %2433 = vmatpush2.bf16.msra.mxu0 %v1907
        %2434 = vmatprep.subr.bf16.mxu0 %v1900
        %2435 = vmatpush2.bf16.msra.mxu0 %v1899
        %2436 = vmatprep.subr.bf16.mxu0 %v1892
        %2437 = vmatpush2.bf16.msra.mxu0 %v1891
        %2438 = vmatprep.subr.bf16.mxu0 %v1884
        %2439 = vmatpush2.bf16.msra.mxu0 %v1883
        %2440 = vmatprep.subr.bf16.mxu0 %v1876
        %2441 = vmatpush2.bf16.msra.mxu0 %v1875
        %2442 = vmatprep.subr.bf16.mxu0 %v1868
        %2443 = vmatpush2.bf16.msra.mxu0 %v1867
        %2444 = vmatprep.subr.bf16.mxu0 %v1860
        %2445 = vmatpush2.bf16.msra.mxu0 %v1859
        %2446 = vmatprep.subr.bf16.mxu0 %v1852
        %2447 = vmatpush2.bf16.msra.mxu0 %v1851
        %2448 = vmatprep.mubr.bf16.mxu0 %v541
        %2449 = vmatmul.mubr.bf16.gmra.mxu0 %v540
        %v2450 = vpop.f32.mrf.mxu0
        %v2451 = vadd.f32 %v850, %v2450
        %v2452 = vpop.f32.mrf.mxu0
        %v2453 = vadd.f32 %v854, %v2452
        %v2454 = vpop.f32.mrf.mxu0
        %v2455 = vadd.f32 %v850, %v2454
        %v2456 = vpop.f32.mrf.mxu0
        %v2457 = vadd.f32 %v854, %v2456
        %2458 = vdwg.mxu0
        %2459 = vmatprep.subr.bf16.mxu0 %v1972
        %2460 = vmatpush1.bf16.msra.mxu0 %v1971
        %2461 = vmatprep.subr.bf16.mxu0 %v1964
        %2462 = vmatpush1.bf16.msra.mxu0 %v1963
        %2463 = vmatprep.subr.bf16.mxu0 %v1956
        %2464 = vmatpush1.bf16.msra.mxu0 %v1955
        %2465 = vmatprep.subr.bf16.mxu0 %v1948
        %2466 = vmatpush1.bf16.msra.mxu0 %v1947
        %2467 = vmatprep.subr.bf16.mxu0 %v1940
        %2468 = vmatpush1.bf16.msra.mxu0 %v1939
        %2469 = vmatprep.subr.bf16.mxu0 %v1932
        %2470 = vmatpush1.bf16.msra.mxu0 %v1931
        %2471 = vmatprep.subr.bf16.mxu0 %v1924
        %2472 = vmatpush1.bf16.msra.mxu0 %v1923
        %2473 = vmatprep.subr.bf16.mxu0 %v1916
        %2474 = vmatpush1.bf16.msra.mxu0 %v1915
        %2475 = vmatprep.subr.bf16.mxu0 %v2036
        %2476 = vmatpush2.bf16.msra.mxu0 %v2035
        %2477 = vmatprep.subr.bf16.mxu0 %v2028
        %2478 = vmatpush2.bf16.msra.mxu0 %v2027
        %2479 = vmatprep.subr.bf16.mxu0 %v2020
        %2480 = vmatpush2.bf16.msra.mxu0 %v2019
        %2481 = vmatprep.subr.bf16.mxu0 %v2012
        %2482 = vmatpush2.bf16.msra.mxu0 %v2011
        %2483 = vmatprep.subr.bf16.mxu0 %v2004
        %2484 = vmatpush2.bf16.msra.mxu0 %v2003
        %2485 = vmatprep.subr.bf16.mxu0 %v1996
        %2486 = vmatpush2.bf16.msra.mxu0 %v1995
        %2487 = vmatprep.subr.bf16.mxu0 %v1988
        %2488 = vmatpush2.bf16.msra.mxu0 %v1987
        %2489 = vmatprep.subr.bf16.mxu0 %v1980
        %2490 = vmatpush2.bf16.msra.mxu0 %v1979
        %2491 = vmatprep.mubr.bf16.mxu0 %v543
        %2492 = vmatmul.mubr.bf16.gmra.mxu0 %v542
        %v2493 = vpop.f32.mrf.mxu0
        %v2494 = vadd.f32 %v2451, %v2493
        %v2495 = vpop.f32.mrf.mxu0
        %v2496 = vadd.f32 %v2453, %v2495
        %v2497 = vpop.f32.mrf.mxu0
        %v2498 = vadd.f32 %v2455, %v2497
        %v2499 = vpop.f32.mrf.mxu0
        %v2500 = vadd.f32 %v2457, %v2499
        %2501 = vdwg.mxu0
        %2502 = vmatprep.subr.bf16.mxu0 0
        %2503 = vmatpush1.bf16.msra.mxu0 0
        %2504 = vmatprep.subr.bf16.mxu0 0
        %2505 = vmatpush1.bf16.msra.mxu0 0
        %2506 = vmatprep.subr.bf16.mxu0 %v2396
        %2507 = vmatpush1.bf16.msra.mxu0 %v2393
        %2508 = vmatprep.subr.bf16.mxu0 %v2076
        %2509 = vmatpush1.bf16.msra.mxu0 %v2075
        %2510 = vmatprep.subr.bf16.mxu0 %v2068
        %2511 = vmatpush1.bf16.msra.mxu0 %v2067
        %2512 = vmatprep.subr.bf16.mxu0 %v2060
        %2513 = vmatpush1.bf16.msra.mxu0 %v2059
        %2514 = vmatprep.subr.bf16.mxu0 %v2052
        %2515 = vmatpush1.bf16.msra.mxu0 %v2051
        %2516 = vmatprep.subr.bf16.mxu0 %v2044
        %2517 = vmatpush1.bf16.msra.mxu0 %v2043
        %2518 = vmatprep.subr.bf16.mxu0 0
        %2519 = vmatpush2.bf16.msra.mxu0 0
        %2520 = vmatprep.subr.bf16.mxu0 0
        %2521 = vmatpush2.bf16.msra.mxu0 0
        %2522 = vmatprep.subr.bf16.mxu0 0
        %2523 = vmatpush2.bf16.msra.mxu0 0
        %2524 = vmatprep.subr.bf16.mxu0 0
        %2525 = vmatpush2.bf16.msra.mxu0 0
        %2526 = vmatprep.subr.bf16.mxu0 0
        %2527 = vmatpush2.bf16.msra.mxu0 0
        %2528 = vmatprep.subr.bf16.mxu0 0
        %2529 = vmatpush2.bf16.msra.mxu0 0
        %2530 = vmatprep.subr.bf16.mxu0 0
        %2531 = vmatpush2.bf16.msra.mxu0 0
        %2532 = vmatprep.subr.bf16.mxu0 0
        %2533 = vmatpush2.bf16.msra.mxu0 0
        %2534 = vmatprep.mubr.bf16.mxu0 0
        %2535 = vmatmul.mubr.bf16.gmra.mxu0 %v2389
        %v2536 = vpop.f32.mrf.mxu0
        %v2537 = vadd.f32 %v2494, %v2536
        %v2538 = vpop.f32.mrf.mxu0
        %v2539 = vadd.f32 %v2496, %v2538
        %v2540 = vpop.f32.mrf.mxu0
        %v2541 = vadd.f32 %v2498, %v2540
        %v2542 = vpop.f32.mrf.mxu0
        %v2543 = vadd.f32 %v2500, %v2542
        %2544 = vdwg.mxu0
        %2545 = vmatprep.subr.bf16.mxu0 %v1846
        %2546 = vmatpush1.bf16.msra.mxu0 %v1845
        %2547 = vmatprep.subr.bf16.mxu0 %v1838
        %2548 = vmatpush1.bf16.msra.mxu0 %v1837
        %2549 = vmatprep.subr.bf16.mxu0 %v1830
        %2550 = vmatpush1.bf16.msra.mxu0 %v1829
        %2551 = vmatprep.subr.bf16.mxu0 %v1822
        %2552 = vmatpush1.bf16.msra.mxu0 %v1821
        %2553 = vmatprep.subr.bf16.mxu0 %v1814
        %2554 = vmatpush1.bf16.msra.mxu0 %v1813
        %2555 = vmatprep.subr.bf16.mxu0 %v1806
        %2556 = vmatpush1.bf16.msra.mxu0 %v1805
        %2557 = vmatprep.subr.bf16.mxu0 %v1798
        %2558 = vmatpush1.bf16.msra.mxu0 %v1797
        %2559 = vmatprep.subr.bf16.mxu0 %v1790
        %2560 = vmatpush1.bf16.msra.mxu0 %v1789
        %2561 = vmatprep.subr.bf16.mxu0 %v1910
        %2562 = vmatpush2.bf16.msra.mxu0 %v1909
        %2563 = vmatprep.subr.bf16.mxu0 %v1902
        %2564 = vmatpush2.bf16.msra.mxu0 %v1901
        %2565 = vmatprep.subr.bf16.mxu0 %v1894
        %2566 = vmatpush2.bf16.msra.mxu0 %v1893
        %2567 = vmatprep.subr.bf16.mxu0 %v1886
        %2568 = vmatpush2.bf16.msra.mxu0 %v1885
        %2569 = vmatprep.subr.bf16.mxu0 %v1878
        %2570 = vmatpush2.bf16.msra.mxu0 %v1877
        %2571 = vmatprep.subr.bf16.mxu0 %v1870
        %2572 = vmatpush2.bf16.msra.mxu0 %v1869
        %2573 = vmatprep.subr.bf16.mxu0 %v1862
        %2574 = vmatpush2.bf16.msra.mxu0 %v1861
        %2575 = vmatprep.subr.bf16.mxu0 %v1854
        %2576 = vmatpush2.bf16.msra.mxu0 %v1853
        %2577 = vmatprep.mubr.bf16.mxu0 %v541
        %2578 = vmatmul.mubr.bf16.gmra.mxu0 %v540
        %v2579 = vpop.f32.mrf.mxu0
        %v2580 = vadd.f32 %v858, %v2579
        %v2581 = vpop.f32.mrf.mxu0
        %v2582 = vadd.f32 %v862, %v2581
        %v2583 = vpop.f32.mrf.mxu0
        %v2584 = vadd.f32 %v858, %v2583
        %v2585 = vpop.f32.mrf.mxu0
        %v2586 = vadd.f32 %v862, %v2585
        %2587 = vdwg.mxu0
        %2588 = vmatprep.subr.bf16.mxu0 %v1974
        %2589 = vmatpush1.bf16.msra.mxu0 %v1973
        %2590 = vmatprep.subr.bf16.mxu0 %v1966
        %2591 = vmatpush1.bf16.msra.mxu0 %v1965
        %2592 = vmatprep.subr.bf16.mxu0 %v1958
        %2593 = vmatpush1.bf16.msra.mxu0 %v1957
        %2594 = vmatprep.subr.bf16.mxu0 %v1950
        %2595 = vmatpush1.bf16.msra.mxu0 %v1949
        %2596 = vmatprep.subr.bf16.mxu0 %v1942
        %2597 = vmatpush1.bf16.msra.mxu0 %v1941
        %2598 = vmatprep.subr.bf16.mxu0 %v1934
        %2599 = vmatpush1.bf16.msra.mxu0 %v1933
        %2600 = vmatprep.subr.bf16.mxu0 %v1926
        %2601 = vmatpush1.bf16.msra.mxu0 %v1925
        %2602 = vmatprep.subr.bf16.mxu0 %v1918
        %2603 = vmatpush1.bf16.msra.mxu0 %v1917
        %2604 = vmatprep.subr.bf16.mxu0 %v2038
        %2605 = vmatpush2.bf16.msra.mxu0 %v2037
        %2606 = vmatprep.subr.bf16.mxu0 %v2030
        %2607 = vmatpush2.bf16.msra.mxu0 %v2029
        %2608 = vmatprep.subr.bf16.mxu0 %v2022
        %2609 = vmatpush2.bf16.msra.mxu0 %v2021
        %2610 = vmatprep.subr.bf16.mxu0 %v2014
        %2611 = vmatpush2.bf16.msra.mxu0 %v2013
        %2612 = vmatprep.subr.bf16.mxu0 %v2006
        %2613 = vmatpush2.bf16.msra.mxu0 %v2005
        %2614 = vmatprep.subr.bf16.mxu0 %v1998
        %2615 = vmatpush2.bf16.msra.mxu0 %v1997
        %2616 = vmatprep.subr.bf16.mxu0 %v1990
        %2617 = vmatpush2.bf16.msra.mxu0 %v1989
        %2618 = vmatprep.subr.bf16.mxu0 %v1982
        %2619 = vmatpush2.bf16.msra.mxu0 %v1981
        %2620 = vmatprep.mubr.bf16.mxu0 %v543
        %2621 = vmatmul.mubr.bf16.gmra.mxu0 %v542
        %v2622 = vpop.f32.mrf.mxu0
        %v2623 = vadd.f32 %v2580, %v2622
        %v2624 = vpop.f32.mrf.mxu0
        %v2625 = vadd.f32 %v2582, %v2624
        %v2626 = vpop.f32.mrf.mxu0
        %v2627 = vadd.f32 %v2584, %v2626
        %v2628 = vpop.f32.mrf.mxu0
        %v2629 = vadd.f32 %v2586, %v2628
        %2630 = vdwg.mxu0
        %2631 = vmatprep.subr.bf16.mxu0 0
        %2632 = vmatpush1.bf16.msra.mxu0 0
        %2633 = vmatprep.subr.bf16.mxu0 0
        %2634 = vmatpush1.bf16.msra.mxu0 0
        %2635 = vmatprep.subr.bf16.mxu0 %v2402
        %2636 = vmatpush1.bf16.msra.mxu0 %v2399
        %2637 = vmatprep.subr.bf16.mxu0 %v2078
        %2638 = vmatpush1.bf16.msra.mxu0 %v2077
        %2639 = vmatprep.subr.bf16.mxu0 %v2070
        %2640 = vmatpush1.bf16.msra.mxu0 %v2069
        %2641 = vmatprep.subr.bf16.mxu0 %v2062
        %2642 = vmatpush1.bf16.msra.mxu0 %v2061
        %2643 = vmatprep.subr.bf16.mxu0 %v2054
        %2644 = vmatpush1.bf16.msra.mxu0 %v2053
        %2645 = vmatprep.subr.bf16.mxu0 %v2046
        %2646 = vmatpush1.bf16.msra.mxu0 %v2045
        %2647 = vmatprep.subr.bf16.mxu0 0
        %2648 = vmatpush2.bf16.msra.mxu0 0
        %2649 = vmatprep.subr.bf16.mxu0 0
        %2650 = vmatpush2.bf16.msra.mxu0 0
        %2651 = vmatprep.subr.bf16.mxu0 0
        %2652 = vmatpush2.bf16.msra.mxu0 0
        %2653 = vmatprep.subr.bf16.mxu0 0
        %2654 = vmatpush2.bf16.msra.mxu0 0
        %2655 = vmatprep.subr.bf16.mxu0 0
        %2656 = vmatpush2.bf16.msra.mxu0 0
        %2657 = vmatprep.subr.bf16.mxu0 0
        %2658 = vmatpush2.bf16.msra.mxu0 0
        %2659 = vmatprep.subr.bf16.mxu0 0
        %2660 = vmatpush2.bf16.msra.mxu0 0
        %2661 = vmatprep.subr.bf16.mxu0 0
        %2662 = vmatpush2.bf16.msra.mxu0 0
        %2663 = vmatprep.mubr.bf16.mxu0 0
        %2664 = vmatmul.mubr.bf16.gmra.mxu0 %v2389
        %v2665 = vpop.f32.mrf.mxu0
        %v2666 = vadd.f32 %v2623, %v2665
        %v2667 = vpop.f32.mrf.mxu0
        %v2668 = vadd.f32 %v2625, %v2667
        %v2669 = vpop.f32.mrf.mxu0
        %v2670 = vadd.f32 %v2627, %v2669
        %v2671 = vpop.f32.mrf.mxu0
        %v2672 = vadd.f32 %v2629, %v2671
        %2673 = vdwg.mxu0
        %2674 = vmatprep.subr.bf16.mxu0 %v1848
        %2675 = vmatpush1.bf16.msra.mxu0 %v1847
        %2676 = vmatprep.subr.bf16.mxu0 %v1840
        %2677 = vmatpush1.bf16.msra.mxu0 %v1839
        %2678 = vmatprep.subr.bf16.mxu0 %v1832
        %2679 = vmatpush1.bf16.msra.mxu0 %v1831
        %2680 = vmatprep.subr.bf16.mxu0 %v1824
        %2681 = vmatpush1.bf16.msra.mxu0 %v1823
        %2682 = vmatprep.subr.bf16.mxu0 %v1816
        %2683 = vmatpush1.bf16.msra.mxu0 %v1815
        %2684 = vmatprep.subr.bf16.mxu0 %v1808
        %2685 = vmatpush1.bf16.msra.mxu0 %v1807
        %2686 = vmatprep.subr.bf16.mxu0 %v1800
        %2687 = vmatpush1.bf16.msra.mxu0 %v1799
        %2688 = vmatprep.subr.bf16.mxu0 %v1792
        %2689 = vmatpush1.bf16.msra.mxu0 %v1791
        %2690 = vmatprep.subr.bf16.mxu0 %v1912
        %2691 = vmatpush2.bf16.msra.mxu0 %v1911
        %2692 = vmatprep.subr.bf16.mxu0 %v1904
        %2693 = vmatpush2.bf16.msra.mxu0 %v1903
        %2694 = vmatprep.subr.bf16.mxu0 %v1896
        %2695 = vmatpush2.bf16.msra.mxu0 %v1895
        %2696 = vmatprep.subr.bf16.mxu0 %v1888
        %2697 = vmatpush2.bf16.msra.mxu0 %v1887
        %2698 = vmatprep.subr.bf16.mxu0 %v1880
        %2699 = vmatpush2.bf16.msra.mxu0 %v1879
        %2700 = vmatprep.subr.bf16.mxu0 %v1872
        %2701 = vmatpush2.bf16.msra.mxu0 %v1871
        %2702 = vmatprep.subr.bf16.mxu0 %v1864
        %2703 = vmatpush2.bf16.msra.mxu0 %v1863
        %2704 = vmatprep.subr.bf16.mxu0 %v1856
        %2705 = vmatpush2.bf16.msra.mxu0 %v1855
        %2706 = vmatprep.mubr.bf16.mxu0 %v541
        %2707 = vmatmul.mubr.bf16.gmra.mxu0 %v540
        %v2708 = vpop.f32.mrf.mxu0
        %v2709 = vadd.f32 %v866, %v2708
        %v2710 = vpop.f32.mrf.mxu0
        %v2711 = vadd.f32 %v870, %v2710
        %v2712 = vpop.f32.mrf.mxu0
        %v2713 = vadd.f32 %v866, %v2712
        %v2714 = vpop.f32.mrf.mxu0
        %v2715 = vadd.f32 %v870, %v2714
        %2716 = vdwg.mxu0
        %2717 = vmatprep.subr.bf16.mxu0 %v1976
        %2718 = vmatpush1.bf16.msra.mxu0 %v1975
        %2719 = vmatprep.subr.bf16.mxu0 %v1968
        %2720 = vmatpush1.bf16.msra.mxu0 %v1967
        %2721 = vmatprep.subr.bf16.mxu0 %v1960
        %2722 = vmatpush1.bf16.msra.mxu0 %v1959
        %2723 = vmatprep.subr.bf16.mxu0 %v1952
        %2724 = vmatpush1.bf16.msra.mxu0 %v1951
        %2725 = vmatprep.subr.bf16.mxu0 %v1944
        %2726 = vmatpush1.bf16.msra.mxu0 %v1943
        %2727 = vmatprep.subr.bf16.mxu0 %v1936
        %2728 = vmatpush1.bf16.msra.mxu0 %v1935
        %2729 = vmatprep.subr.bf16.mxu0 %v1928
        %2730 = vmatpush1.bf16.msra.mxu0 %v1927
        %2731 = vmatprep.subr.bf16.mxu0 %v1920
        %2732 = vmatpush1.bf16.msra.mxu0 %v1919
        %2733 = vmatprep.subr.bf16.mxu0 %v2040
        %2734 = vmatpush2.bf16.msra.mxu0 %v2039
        %2735 = vmatprep.subr.bf16.mxu0 %v2032
        %2736 = vmatpush2.bf16.msra.mxu0 %v2031
        %2737 = vmatprep.subr.bf16.mxu0 %v2024
        %2738 = vmatpush2.bf16.msra.mxu0 %v2023
        %2739 = vmatprep.subr.bf16.mxu0 %v2016
        %2740 = vmatpush2.bf16.msra.mxu0 %v2015
        %2741 = vmatprep.subr.bf16.mxu0 %v2008
        %2742 = vmatpush2.bf16.msra.mxu0 %v2007
        %2743 = vmatprep.subr.bf16.mxu0 %v2000
        %2744 = vmatpush2.bf16.msra.mxu0 %v1999
        %2745 = vmatprep.subr.bf16.mxu0 %v1992
        %2746 = vmatpush2.bf16.msra.mxu0 %v1991
        %2747 = vmatprep.subr.bf16.mxu0 %v1984
        %2748 = vmatpush2.bf16.msra.mxu0 %v1983
        %2749 = vmatprep.mubr.bf16.mxu0 %v543
        %2750 = vmatmul.mubr.bf16.gmra.mxu0 %v542
        %v2751 = vpop.f32.mrf.mxu0
        %v2752 = vadd.f32 %v2709, %v2751
        %v2753 = vpop.f32.mrf.mxu0
        %v2754 = vadd.f32 %v2711, %v2753
        %v2755 = vpop.f32.mrf.mxu0
        %v2756 = vadd.f32 %v2713, %v2755
        %v2757 = vpop.f32.mrf.mxu0
        %v2758 = vadd.f32 %v2715, %v2757
        %2759 = vdwg.mxu0
        %2760 = vmatprep.subr.bf16.mxu0 0
        %2761 = vmatpush1.bf16.msra.mxu0 0
        %2762 = vmatprep.subr.bf16.mxu0 0
        %2763 = vmatpush1.bf16.msra.mxu0 0
        %2764 = vmatprep.subr.bf16.mxu0 %v2408
        %2765 = vmatpush1.bf16.msra.mxu0 %v2405
        %2766 = vmatprep.subr.bf16.mxu0 %v2080
        %2767 = vmatpush1.bf16.msra.mxu0 %v2079
        %2768 = vmatprep.subr.bf16.mxu0 %v2072
        %2769 = vmatpush1.bf16.msra.mxu0 %v2071
        %2770 = vmatprep.subr.bf16.mxu0 %v2064
        %2771 = vmatpush1.bf16.msra.mxu0 %v2063
        %2772 = vmatprep.subr.bf16.mxu0 %v2056
        %2773 = vmatpush1.bf16.msra.mxu0 %v2055
        %2774 = vmatprep.subr.bf16.mxu0 %v2048
        %2775 = vmatpush1.bf16.msra.mxu0 %v2047
        %2776 = vmatprep.subr.bf16.mxu0 0
        %2777 = vmatpush2.bf16.msra.mxu0 0
        %2778 = vmatprep.subr.bf16.mxu0 0
        %2779 = vmatpush2.bf16.msra.mxu0 0
        %2780 = vmatprep.subr.bf16.mxu0 0
        %2781 = vmatpush2.bf16.msra.mxu0 0
        %2782 = vmatprep.subr.bf16.mxu0 0
        %2783 = vmatpush2.bf16.msra.mxu0 0
        %2784 = vmatprep.subr.bf16.mxu0 0
        %2785 = vmatpush2.bf16.msra.mxu0 0
        %2786 = vmatprep.subr.bf16.mxu0 0
        %2787 = vmatpush2.bf16.msra.mxu0 0
        %2788 = vmatprep.subr.bf16.mxu0 0
        %2789 = vmatpush2.bf16.msra.mxu0 0
        %2790 = vmatprep.subr.bf16.mxu0 0
        %2791 = vmatpush2.bf16.msra.mxu0 0
        %2792 = vmatprep.mubr.bf16.mxu0 0
        %2793 = vmatmul.mubr.bf16.gmra.mxu0 %v2389
        %v2794 = vpop.f32.mrf.mxu0
        %v2795 = vadd.f32 %v2752, %v2794
        %v2796 = vpop.f32.mrf.mxu0
        %v2797 = vadd.f32 %v2754, %v2796
        %v2798 = vpop.f32.mrf.mxu0
        %v2799 = vadd.f32 %v2756, %v2798
        %v2800 = vpop.f32.mrf.mxu0
        %v2801 = vadd.f32 %v2758, %v2800
        %2802 = vdwg.mxu0
        %2803 = vmatprep.subr.bf16.mxu0 %v1850
        %2804 = vmatpush1.bf16.msra.mxu0 %v1849
        %2805 = vmatprep.subr.bf16.mxu0 %v1842
        %2806 = vmatpush1.bf16.msra.mxu0 %v1841
        %2807 = vmatprep.subr.bf16.mxu0 %v1834
        %2808 = vmatpush1.bf16.msra.mxu0 %v1833
        %2809 = vmatprep.subr.bf16.mxu0 %v1826
        %2810 = vmatpush1.bf16.msra.mxu0 %v1825
        %2811 = vmatprep.subr.bf16.mxu0 %v1818
        %2812 = vmatpush1.bf16.msra.mxu0 %v1817
        %2813 = vmatprep.subr.bf16.mxu0 %v1810
        %2814 = vmatpush1.bf16.msra.mxu0 %v1809
        %2815 = vmatprep.subr.bf16.mxu0 %v1802
        %2816 = vmatpush1.bf16.msra.mxu0 %v1801
        %2817 = vmatprep.subr.bf16.mxu0 %v1794
        %2818 = vmatpush1.bf16.msra.mxu0 %v1793
        %2819 = vmatprep.subr.bf16.mxu0 %v1914
        %2820 = vmatpush2.bf16.msra.mxu0 %v1913
        %2821 = vmatprep.subr.bf16.mxu0 %v1906
        %2822 = vmatpush2.bf16.msra.mxu0 %v1905
        %2823 = vmatprep.subr.bf16.mxu0 %v1898
        %2824 = vmatpush2.bf16.msra.mxu0 %v1897
        %2825 = vmatprep.subr.bf16.mxu0 %v1890
        %2826 = vmatpush2.bf16.msra.mxu0 %v1889
        %2827 = vmatprep.subr.bf16.mxu0 %v1882
        %2828 = vmatpush2.bf16.msra.mxu0 %v1881
        %2829 = vmatprep.subr.bf16.mxu0 %v1874
        %2830 = vmatpush2.bf16.msra.mxu0 %v1873
        %2831 = vmatprep.subr.bf16.mxu0 %v1866
        %2832 = vmatpush2.bf16.msra.mxu0 %v1865
        %2833 = vmatprep.subr.bf16.mxu0 %v1858
        %2834 = vmatpush2.bf16.msra.mxu0 %v1857
        %2835 = vmatprep.mubr.bf16.mxu0 %v541
        %2836 = vmatmul.mubr.bf16.gmra.mxu0 %v540
        %v2837 = vpop.f32.mrf.mxu0
        %v2838 = vadd.f32 %v874, %v2837
        %v2839 = vpop.f32.mrf.mxu0
        %v2840 = vadd.f32 %v878, %v2839
        %v2841 = vpop.f32.mrf.mxu0
        %v2842 = vadd.f32 %v874, %v2841
        %v2843 = vpop.f32.mrf.mxu0
        %v2844 = vadd.f32 %v878, %v2843
        %2845 = vdwg.mxu0
        %2846 = vmatprep.subr.bf16.mxu0 %v1978
        %2847 = vmatpush1.bf16.msra.mxu0 %v1977
        %2848 = vmatprep.subr.bf16.mxu0 %v1970
        %2849 = vmatpush1.bf16.msra.mxu0 %v1969
        %2850 = vmatprep.subr.bf16.mxu0 %v1962
        %2851 = vmatpush1.bf16.msra.mxu0 %v1961
        %2852 = vmatprep.subr.bf16.mxu0 %v1954
        %2853 = vmatpush1.bf16.msra.mxu0 %v1953
        %2854 = vmatprep.subr.bf16.mxu0 %v1946
        %2855 = vmatpush1.bf16.msra.mxu0 %v1945
        %2856 = vmatprep.subr.bf16.mxu0 %v1938
        %2857 = vmatpush1.bf16.msra.mxu0 %v1937
        %2858 = vmatprep.subr.bf16.mxu0 %v1930
        %2859 = vmatpush1.bf16.msra.mxu0 %v1929
        %2860 = vmatprep.subr.bf16.mxu0 %v1922
        %2861 = vmatpush1.bf16.msra.mxu0 %v1921
        %2862 = vmatprep.subr.bf16.mxu0 %v2042
        %2863 = vmatpush2.bf16.msra.mxu0 %v2041
        %2864 = vmatprep.subr.bf16.mxu0 %v2034
        %2865 = vmatpush2.bf16.msra.mxu0 %v2033
        %2866 = vmatprep.subr.bf16.mxu0 %v2026
        %2867 = vmatpush2.bf16.msra.mxu0 %v2025
        %2868 = vmatprep.subr.bf16.mxu0 %v2018
        %2869 = vmatpush2.bf16.msra.mxu0 %v2017
        %2870 = vmatprep.subr.bf16.mxu0 %v2010
        %2871 = vmatpush2.bf16.msra.mxu0 %v2009
        %2872 = vmatprep.subr.bf16.mxu0 %v2002
        %2873 = vmatpush2.bf16.msra.mxu0 %v2001
        %2874 = vmatprep.subr.bf16.mxu0 %v1994
        %2875 = vmatpush2.bf16.msra.mxu0 %v1993
        %2876 = vmatprep.subr.bf16.mxu0 %v1986
        %2877 = vmatpush2.bf16.msra.mxu0 %v1985
        %2878 = vmatprep.mubr.bf16.mxu0 %v543
        %2879 = vmatmul.mubr.bf16.gmra.mxu0 %v542
        %v2880 = vpop.f32.mrf.mxu0
        %v2881 = vadd.f32 %v2838, %v2880
        %v2882 = vpop.f32.mrf.mxu0
        %v2883 = vadd.f32 %v2840, %v2882
        %v2884 = vpop.f32.mrf.mxu0
        %v2885 = vadd.f32 %v2842, %v2884
        %v2886 = vpop.f32.mrf.mxu0
        %v2887 = vadd.f32 %v2844, %v2886
        %2888 = vdwg.mxu0
        %2889 = vmatprep.subr.bf16.mxu0 0
        %2890 = vmatpush1.bf16.msra.mxu0 0
        %2891 = vmatprep.subr.bf16.mxu0 0
        %2892 = vmatpush1.bf16.msra.mxu0 0
        %2893 = vmatprep.subr.bf16.mxu0 %v2414
        %2894 = vmatpush1.bf16.msra.mxu0 %v2411
        %2895 = vmatprep.subr.bf16.mxu0 %v2082
        %2896 = vmatpush1.bf16.msra.mxu0 %v2081
        %2897 = vmatprep.subr.bf16.mxu0 %v2074
        %2898 = vmatpush1.bf16.msra.mxu0 %v2073
        %2899 = vmatprep.subr.bf16.mxu0 %v2066
        %2900 = vmatpush1.bf16.msra.mxu0 %v2065
        %2901 = vmatprep.subr.bf16.mxu0 %v2058
        %2902 = vmatpush1.bf16.msra.mxu0 %v2057
        %2903 = vmatprep.subr.bf16.mxu0 %v2050
        %2904 = vmatpush1.bf16.msra.mxu0 %v2049
        %2905 = vmatprep.subr.bf16.mxu0 0
        %2906 = vmatpush2.bf16.msra.mxu0 0
        %2907 = vmatprep.subr.bf16.mxu0 0
        %2908 = vmatpush2.bf16.msra.mxu0 0
        %2909 = vmatprep.subr.bf16.mxu0 0
        %2910 = vmatpush2.bf16.msra.mxu0 0
        %2911 = vmatprep.subr.bf16.mxu0 0
        %2912 = vmatpush2.bf16.msra.mxu0 0
        %2913 = vmatprep.subr.bf16.mxu0 0
        %2914 = vmatpush2.bf16.msra.mxu0 0
        %2915 = vmatprep.subr.bf16.mxu0 0
        %2916 = vmatpush2.bf16.msra.mxu0 0
        %2917 = vmatprep.subr.bf16.mxu0 0
        %2918 = vmatpush2.bf16.msra.mxu0 0
        %2919 = vmatprep.subr.bf16.mxu0 0
        %2920 = vmatpush2.bf16.msra.mxu0 0
        %2921 = vmatprep.mubr.bf16.mxu0 0
        %2922 = vmatmul.mubr.bf16.gmra.mxu0 %v2389
        %v2923 = vpop.f32.mrf.mxu0
        %v2924 = vadd.f32 %v2881, %v2923
        %v2925 = vpop.f32.mrf.mxu0
        %v2926 = vadd.f32 %v2883, %v2925
        %v2927 = vpop.f32.mrf.mxu0
        %v2928 = vadd.f32 %v2885, %v2927
        %v2929 = vpop.f32.mrf.mxu0
        %v2930 = vadd.f32 %v2887, %v2929
        %2931 = vdwg.mxu0
        %v2932 = vpack.c.bf16 %v2541, %v2537
        %v2933 = vpack.c.bf16 %v2543, %v2539
        %v2934 = vpack.c.bf16 %v2670, %v2666
        %v2935 = vpack.c.bf16 %v2672, %v2668
        %v2936 = vpack.c.bf16 %v2799, %v2795
        %v2937 = vpack.c.bf16 %v2801, %v2797
        %v2938 = vpack.c.bf16 %v2928, %v2924
        %v2939 = vpack.c.bf16 %v2930, %v2926
        %v2940 = vtanh.bf16.pop %v2932
        %v2941 = vtanh.bf16.pop %v2933
        %v2942 = vtanh.bf16.pop %v2934
        %v2943 = vtanh.bf16.pop %v2935
        %v2944 = vtanh.bf16.pop %v2936
        %v2945 = vtanh.bf16.pop %v2937
        %v2946 = vtanh.bf16.pop %v2938
        %v2947 = vtanh.bf16.pop %v2939
        %v2948 = vld [vmem:[#allocation6] sm:$0xff]
        %v2949 = vld [vmem:[#allocation6 + $0x8] sm:$0xff]
        %v2950 = vld [vmem:[#allocation6 + $0x10] sm:$0xff]
        %v2951 = vld [vmem:[#allocation6 + $0x18] sm:$0xff]
        %v2952 = vld [vmem:[#allocation6 + $0x20] sm:$0xff]
        %v2953 = vld [vmem:[#allocation6 + $0x28] sm:$0xff]
        %v2954 = vld [vmem:[#allocation6 + $0x30] sm:$0xff]
        %v2955 = vld [vmem:[#allocation6 + $0x38] sm:$0xff]
        %v2956 = vld [vmem:[#allocation6 + $0x40] sm:$0xff]
        %v2957 = vld [vmem:[#allocation6 + $0x48] sm:$0xff]
        %v2958 = vld [vmem:[#allocation6 + $0x50] sm:$0xff]
        %v2959 = vld [vmem:[#allocation6 + $0x58] sm:$0xff]
        %v2960 = vld [vmem:[#allocation6 + $0x60] sm:$0xff]
        %v2961 = vld [vmem:[#allocation6 + $0x68] sm:$0xff]
        %v2962 = vld [vmem:[#allocation6 + $0x70] sm:$0xff]
        %v2963 = vld [vmem:[#allocation6 + $0x78] sm:$0xff]
        %v2964 = vld [vmem:[#allocation6 + $0x80] sm:$0xff]
        %v2965 = vld [vmem:[#allocation6 + $0x88] sm:$0xff]
        %v2966 = vld [vmem:[#allocation6 + $0x90] sm:$0xff]
        %v2967 = vld [vmem:[#allocation6 + $0x98] sm:$0xff]
        %v2968 = vld [vmem:[#allocation6 + $0xa0] sm:$0xff]
        %v2969 = vld [vmem:[#allocation6 + $0xa8] sm:$0xff]
        %v2970 = vld [vmem:[#allocation6 + $0xb0] sm:$0xff]
        %v2971 = vld [vmem:[#allocation6 + $0xb8] sm:$0xff]
        %v2972 = vld [vmem:[#allocation6 + $0xc0] sm:$0xff]
        %v2973 = vld [vmem:[#allocation6 + $0xc8] sm:$0xff]
        %v2974 = vld [vmem:[#allocation6 + $0xd0] sm:$0xff]
        %v2975 = vld [vmem:[#allocation6 + $0xd8] sm:$0xff]
        %v2976 = vld [vmem:[#allocation6 + $0xe0] sm:$0xff]
        %v2977 = vld [vmem:[#allocation6 + $0xe8] sm:$0xff]
        %v2978 = vld [vmem:[#allocation6 + $0xf0] sm:$0xff]
        %v2979 = vld [vmem:[#allocation6 + $0xf8] sm:$0xff]
        %v2980 = vld [vmem:[#allocation6 + $0x100] sm:$0xff]
        %v2981 = vld [vmem:[#allocation6 + $0x108] sm:$0xff]
        %v2982 = vld [vmem:[#allocation6 + $0x110] sm:$0xff]
        %v2983 = vld [vmem:[#allocation6 + $0x118] sm:$0xff]
        %v2984 = vld [vmem:[#allocation6 + $0x120] sm:$0xff]
        %v2985 = vld [vmem:[#allocation6 + $0x128] sm:$0xff]
        %v2986 = vld [vmem:[#allocation6 + $0x130] sm:$0xff]
        %v2987 = vld [vmem:[#allocation6 + $0x138] sm:$0xff]
        %v2988 = vld [vmem:[#allocation6 + $0x140] sm:$0xff]
        %v2989 = vld [vmem:[#allocation6 + $0x148] sm:$0xff]
        %v2990 = vld [vmem:[#allocation6 + $0x150] sm:$0xff]
        %v2991 = vld [vmem:[#allocation6 + $0x158] sm:$0xff]
        %v2992 = vld [vmem:[#allocation6 + $0x160] sm:$0xff]
        %v2993 = vld [vmem:[#allocation6 + $0x168] sm:$0xff]
        %v2994 = vld [vmem:[#allocation6 + $0x170] sm:$0xff]
        %v2995 = vld [vmem:[#allocation6 + $0x178] sm:$0xff]
        %v2996 = vld [vmem:[#allocation6 + $0x180] sm:$0xff]
        %v2997 = vld [vmem:[#allocation6 + $0x188] sm:$0xff]
        %v2998 = vld [vmem:[#allocation6 + $0x190] sm:$0xff]
        %v2999 = vld [vmem:[#allocation6 + $0x198] sm:$0xff]
        %v3000 = vld [vmem:[#allocation6 + $0x1a0] sm:$0xff]
        %v3001 = vld [vmem:[#allocation6 + $0x1a8] sm:$0xff]
        %v3002 = vld [vmem:[#allocation6 + $0x1b0] sm:$0xff]
        %v3003 = vld [vmem:[#allocation6 + $0x1b8] sm:$0xff]
        %v3004 = vld [vmem:[#allocation6 + $0x1c0] sm:$0xff]
        %v3005 = vld [vmem:[#allocation6 + $0x1c8] sm:$0xff]
        %v3006 = vld [vmem:[#allocation6 + $0x1d0] sm:$0xff]
        %v3007 = vld [vmem:[#allocation6 + $0x1d8] sm:$0xff]
        %v3008 = vld [vmem:[#allocation6 + $0x1e0] sm:$0xff]
        %v3009 = vld [vmem:[#allocation6 + $0x1e8] sm:$0xff]
        %v3010 = vld [vmem:[#allocation6 + $0x1f0] sm:$0xff]
        %v3011 = vld [vmem:[#allocation6 + $0x1f8] sm:$0xff]
        %v3012 = vld [vmem:[#allocation6 + $0x200] sm:$0xff]
        %v3013 = vld [vmem:[#allocation6 + $0x208] sm:$0xff]
        %v3014 = vld [vmem:[#allocation6 + $0x210] sm:$0xff]
        %v3015 = vld [vmem:[#allocation6 + $0x218] sm:$0xff]
        %v3016 = vld [vmem:[#allocation6 + $0x220] sm:$0xff]
        %v3017 = vld [vmem:[#allocation6 + $0x228] sm:$0xff]
        %v3018 = vld [vmem:[#allocation6 + $0x230] sm:$0xff]
        %v3019 = vld [vmem:[#allocation6 + $0x238] sm:$0xff]
        %v3020 = vld [vmem:[#allocation6 + $0x240] sm:$0xff]
        %v3021 = vld [vmem:[#allocation6 + $0x248] sm:$0xff]
        %v3022 = vld [vmem:[#allocation6 + $0x250] sm:$0xff]
        %v3023 = vld [vmem:[#allocation6 + $0x258] sm:$0xff]
        %v3024 = vld [vmem:[#allocation6 + $0x260] sm:$0xff]
        %v3025 = vld [vmem:[#allocation6 + $0x268] sm:$0xff]
        %v3026 = vld [vmem:[#allocation6 + $0x270] sm:$0xff]
        %v3027 = vld [vmem:[#allocation6 + $0x278] sm:$0xff]
        %v3028 = vld [vmem:[#allocation6 + $0x280] sm:$0xff]
        %v3029 = vld [vmem:[#allocation6 + $0x288] sm:$0xff]
        %v3030 = vld [vmem:[#allocation6 + $0x290] sm:$0xff]
        %v3031 = vld [vmem:[#allocation6 + $0x298] sm:$0xff]
        %v3032 = vld [vmem:[#allocation6 + $0x2a0] sm:$0xff]
        %v3033 = vld [vmem:[#allocation6 + $0x2a8] sm:$0xff]
        %v3034 = vld [vmem:[#allocation6 + $0x2b0] sm:$0xff]
        %v3035 = vld [vmem:[#allocation6 + $0x2b8] sm:$0xff]
        %v3036 = vld [vmem:[#allocation6 + $0x2c0] sm:$0xff]
        %v3037 = vld [vmem:[#allocation6 + $0x2c8] sm:$0xff]
        %v3038 = vld [vmem:[#allocation6 + $0x2d0] sm:$0xff]
        %v3039 = vld [vmem:[#allocation6 + $0x2d8] sm:$0xff]
        %v3040 = vld [vmem:[#allocation6 + $0x2e0] sm:$0xff]
        %v3041 = vld [vmem:[#allocation6 + $0x2e8] sm:$0xff]
        %v3042 = vld [vmem:[#allocation6 + $0x2f0] sm:$0xff]
        %v3043 = vld [vmem:[#allocation6 + $0x2f8] sm:$0xff]
        %v3044 = vld [vmem:[#allocation6 + $0x300] sm:$0xff]
        %v3045 = vld [vmem:[#allocation6 + $0x308] sm:$0xff]
        %v3046 = vld [vmem:[#allocation6 + $0x310] sm:$0xff]
        %v3047 = vld [vmem:[#allocation6 + $0x318] sm:$0xff]
        %v3048 = vld [vmem:[#allocation6 + $0x320] sm:$0xff]
        %v3049 = vld [vmem:[#allocation6 + $0x328] sm:$0xff]
        %v3050 = vld [vmem:[#allocation6 + $0x330] sm:$0xff]
        %v3051 = vld [vmem:[#allocation6 + $0x338] sm:$0xff]
        %v3052 = vld [vmem:[#allocation6 + $0x340] sm:$0xff]
        %v3053 = vld [vmem:[#allocation6 + $0x348] sm:$0xff]
        %v3054 = vld [vmem:[#allocation6 + $0x350] sm:$0xff]
        %v3055 = vld [vmem:[#allocation6 + $0x358] sm:$0xff]
        %v3056 = vld [vmem:[#allocation6 + $0x360] sm:$0xff]
        %v3057 = vld [vmem:[#allocation6 + $0x368] sm:$0xff]
        %v3058 = vld [vmem:[#allocation6 + $0x370] sm:$0xff]
        %v3059 = vld [vmem:[#allocation6 + $0x378] sm:$0xff]
        %v3060 = vld [vmem:[#allocation6 + $0x380] sm:$0xff]
        %v3061 = vld [vmem:[#allocation6 + $0x388] sm:$0xff]
        %v3062 = vld [vmem:[#allocation6 + $0x390] sm:$0xff]
        %v3063 = vld [vmem:[#allocation6 + $0x398] sm:$0xff]
        %v3064 = vld [vmem:[#allocation6 + $0x3a0] sm:$0xff]
        %v3065 = vld [vmem:[#allocation6 + $0x3a8] sm:$0xff]
        %v3066 = vld [vmem:[#allocation6 + $0x3b0] sm:$0xff]
        %v3067 = vld [vmem:[#allocation6 + $0x3b8] sm:$0xff]
        %v3068 = vld [vmem:[#allocation6 + $0x3c0] sm:$0xff]
        %v3069 = vld [vmem:[#allocation6 + $0x3c8] sm:$0xff]
        %v3070 = vld [vmem:[#allocation6 + $0x3d0] sm:$0xff]
        %v3071 = vld [vmem:[#allocation6 + $0x3d8] sm:$0xff]
        %v3072 = vld [vmem:[#allocation6 + $0x3e0] sm:$0xff]
        %v3073 = vld [vmem:[#allocation6 + $0x3e8] sm:$0xff]
        %v3074 = vld [vmem:[#allocation6 + $0x3f0] sm:$0xff]
        %v3075 = vld [vmem:[#allocation6 + $0x3f8] sm:$0xff]
        %v3076 = vld [vmem:[#allocation6 + $0x400] sm:$0xff]
        %v3077 = vld [vmem:[#allocation6 + $0x408] sm:$0xff]
        %v3078 = vld [vmem:[#allocation6 + $0x410] sm:$0xff]
        %v3079 = vld [vmem:[#allocation6 + $0x418] sm:$0xff]
        %v3080 = vld [vmem:[#allocation6 + $0x420] sm:$0xff]
        %v3081 = vld [vmem:[#allocation6 + $0x428] sm:$0xff]
        %v3082 = vld [vmem:[#allocation6 + $0x430] sm:$0xff]
        %v3083 = vld [vmem:[#allocation6 + $0x438] sm:$0xff]
        %v3084 = vld [vmem:[#allocation6 + $0x440] sm:$0xff]
        %v3085 = vld [vmem:[#allocation6 + $0x448] sm:$0xff]
        %v3086 = vld [vmem:[#allocation6 + $0x450] sm:$0xff]
        %v3087 = vld [vmem:[#allocation6 + $0x458] sm:$0xff]
        %v3088 = vld [vmem:[#allocation6 + $0x460] sm:$0xff]
        %v3089 = vld [vmem:[#allocation6 + $0x468] sm:$0xff]
        %v3090 = vld [vmem:[#allocation6 + $0x470] sm:$0xff]
        %v3091 = vld [vmem:[#allocation6 + $0x478] sm:$0xff]
        %v3092 = vld [vmem:[#allocation6 + $0x480] sm:$0xff]
        %v3093 = vld [vmem:[#allocation6 + $0x488] sm:$0xff]
        %v3094 = vld [vmem:[#allocation6 + $0x490] sm:$0xff]
        %v3095 = vld [vmem:[#allocation6 + $0x498] sm:$0xff]
        %v3096 = vld [vmem:[#allocation6 + $0x4a0] sm:$0xff]
        %v3097 = vld [vmem:[#allocation6 + $0x4a8] sm:$0xff]
        %v3098 = vld [vmem:[#allocation6 + $0x4b0] sm:$0xff]
        %v3099 = vld [vmem:[#allocation6 + $0x4b8] sm:$0xff]
        %v3100 = vld [vmem:[#allocation6 + $0x4c0] sm:$0xff]
        %v3101 = vld [vmem:[#allocation6 + $0x4c8] sm:$0xff]
        %v3102 = vld [vmem:[#allocation6 + $0x4d0] sm:$0xff]
        %v3103 = vld [vmem:[#allocation6 + $0x4d8] sm:$0xff]
        %v3104 = vld [vmem:[#allocation6 + $0x4e0] sm:$0xff]
        %v3105 = vld [vmem:[#allocation6 + $0x4e8] sm:$0xff]
        %v3106 = vld [vmem:[#allocation6 + $0x4f0] sm:$0xff]
        %v3107 = vld [vmem:[#allocation6 + $0x4f8] sm:$0xff]
        %v3108 = vld [vmem:[#allocation6 + $0x500] sm:$0xff]
        %v3109 = vld [vmem:[#allocation6 + $0x508] sm:$0xff]
        %v3110 = vld [vmem:[#allocation6 + $0x510] sm:$0xff]
        %v3111 = vld [vmem:[#allocation6 + $0x518] sm:$0xff]
        %v3112 = vld [vmem:[#allocation6 + $0x520] sm:$0xff]
        %v3113 = vld [vmem:[#allocation6 + $0x528] sm:$0xff]
        %v3114 = vld [vmem:[#allocation6 + $0x530] sm:$0xff]
        %v3115 = vld [vmem:[#allocation6 + $0x538] sm:$0xff]
        %v3116 = vld [vmem:[#allocation6 + $0x540] sm:$0xff]
        %v3117 = vld [vmem:[#allocation6 + $0x548] sm:$0xff]
        %v3118 = vld [vmem:[#allocation6 + $0x550] sm:$0xff]
        %v3119 = vld [vmem:[#allocation6 + $0x558] sm:$0xff]
        %v3120 = vld [vmem:[#allocation6 + $0x560] sm:$0xff]
        %v3121 = vld [vmem:[#allocation6 + $0x568] sm:$0xff]
        %v3122 = vld [vmem:[#allocation6 + $0x570] sm:$0xff]
        %v3123 = vld [vmem:[#allocation6 + $0x578] sm:$0xff]
        %v3124 = vld [vmem:[#allocation6 + $0x580] sm:$0xff]
        %v3125 = vld [vmem:[#allocation6 + $0x588] sm:$0xff]
        %v3126 = vld [vmem:[#allocation6 + $0x590] sm:$0xff]
        %v3127 = vld [vmem:[#allocation6 + $0x598] sm:$0xff]
        %v3128 = vld [vmem:[#allocation6 + $0x5a0] sm:$0xff]
        %v3129 = vld [vmem:[#allocation6 + $0x5a8] sm:$0xff]
        %v3130 = vld [vmem:[#allocation6 + $0x5b0] sm:$0xff]
        %v3131 = vld [vmem:[#allocation6 + $0x5b8] sm:$0xff]
        %v3132 = vld [vmem:[#allocation6 + $0x5c0] sm:$0xff]
        %v3133 = vld [vmem:[#allocation6 + $0x5c8] sm:$0xff]
        %v3134 = vld [vmem:[#allocation6 + $0x5d0] sm:$0xff]
        %v3135 = vld [vmem:[#allocation6 + $0x5d8] sm:$0xff]
        %v3136 = vld [vmem:[#allocation6 + $0x5e0] sm:$0xff]
        %v3137 = vld [vmem:[#allocation6 + $0x5e8] sm:$0xff]
        %v3138 = vld [vmem:[#allocation6 + $0x5f0] sm:$0xff]
        %v3139 = vld [vmem:[#allocation6 + $0x5f8] sm:$0xff]
        %v3140 = vld [vmem:[#allocation6 + $0x600] sm:$0xff]
        %v3141 = vld [vmem:[#allocation6 + $0x608] sm:$0xff]
        %v3142 = vld [vmem:[#allocation6 + $0x610] sm:$0xff]
        %v3143 = vld [vmem:[#allocation6 + $0x618] sm:$0xff]
        %v3144 = vld [vmem:[#allocation6 + $0x620] sm:$0xff]
        %v3145 = vld [vmem:[#allocation6 + $0x628] sm:$0xff]
        %v3146 = vld [vmem:[#allocation6 + $0x630] sm:$0xff]
        %v3147 = vld [vmem:[#allocation6 + $0x638] sm:$0xff]
        %v3148 = vld [vmem:[#allocation6 + $0x640] sm:$0xff]
        %v3149 = vld [vmem:[#allocation6 + $0x648] sm:$0xff]
        %v3150 = vld [vmem:[#allocation6 + $0x650] sm:$0xff]
        %v3151 = vld [vmem:[#allocation6 + $0x658] sm:$0xff]
        %v3152 = vld [vmem:[#allocation6 + $0x660] sm:$0xff]
        %v3153 = vld [vmem:[#allocation6 + $0x668] sm:$0xff]
        %v3154 = vld [vmem:[#allocation6 + $0x670] sm:$0xff]
        %v3155 = vld [vmem:[#allocation6 + $0x678] sm:$0xff]
        %v3156 = vld [vmem:[#allocation6 + $0x680] sm:$0xff]
        %v3157 = vld [vmem:[#allocation6 + $0x688] sm:$0xff]
        %v3158 = vld [vmem:[#allocation6 + $0x690] sm:$0xff]
        %v3159 = vld [vmem:[#allocation6 + $0x698] sm:$0xff]
        %v3160 = vld [vmem:[#allocation6 + $0x6a0] sm:$0xff]
        %v3161 = vld [vmem:[#allocation6 + $0x6a8] sm:$0xff]
        %v3162 = vld [vmem:[#allocation6 + $0x6b0] sm:$0xff]
        %v3163 = vld [vmem:[#allocation6 + $0x6b8] sm:$0xff]
        %v3164 = vld [vmem:[#allocation6 + $0x6c0] sm:$0xff]
        %v3165 = vld [vmem:[#allocation6 + $0x6c8] sm:$0xff]
        %v3166 = vld [vmem:[#allocation6 + $0x6d0] sm:$0xff]
        %v3167 = vld [vmem:[#allocation6 + $0x6d8] sm:$0xff]
        %v3168 = vld [vmem:[#allocation6 + $0x6e0] sm:$0xff]
        %v3169 = vld [vmem:[#allocation6 + $0x6e8] sm:$0xff]
        %v3170 = vld [vmem:[#allocation6 + $0x6f0] sm:$0xff]
        %v3171 = vld [vmem:[#allocation6 + $0x6f8] sm:$0xff]
        %v3172 = vld [vmem:[#allocation6 + $0x700] sm:$0xff]
        %v3173 = vld [vmem:[#allocation6 + $0x708] sm:$0xff]
        %v3174 = vld [vmem:[#allocation6 + $0x710] sm:$0xff]
        %v3175 = vld [vmem:[#allocation6 + $0x718] sm:$0xff]
        %v3176 = vld [vmem:[#allocation6 + $0x720] sm:$0xff]
        %v3177 = vld [vmem:[#allocation6 + $0x728] sm:$0xff]
        %v3178 = vld [vmem:[#allocation6 + $0x730] sm:$0xff]
        %v3179 = vld [vmem:[#allocation6 + $0x738] sm:$0xff]
        %v3180 = vld [vmem:[#allocation6 + $0x740] sm:$0xff]
        %v3181 = vld [vmem:[#allocation6 + $0x748] sm:$0xff]
        %v3182 = vld [vmem:[#allocation6 + $0x750] sm:$0xff]
        %v3183 = vld [vmem:[#allocation6 + $0x758] sm:$0xff]
        %v3184 = vld [vmem:[#allocation6 + $0x760] sm:$0xff]
        %v3185 = vld [vmem:[#allocation6 + $0x768] sm:$0xff]
        %v3186 = vld [vmem:[#allocation6 + $0x770] sm:$0xff]
        %v3187 = vld [vmem:[#allocation6 + $0x778] sm:$0xff]
        %v3188 = vld [vmem:[#allocation6 + $0x780] sm:$0xff]
        %v3189 = vld [vmem:[#allocation6 + $0x788] sm:$0xff]
        %v3190 = vld [vmem:[#allocation6 + $0x790] sm:$0xff]
        %v3191 = vld [vmem:[#allocation6 + $0x798] sm:$0xff]
        %v3192 = vld [vmem:[#allocation6 + $0x7a0] sm:$0xff]
        %v3193 = vld [vmem:[#allocation6 + $0x7a8] sm:$0xff]
        %v3194 = vld [vmem:[#allocation6 + $0x7b0] sm:$0xff]
        %v3195 = vld [vmem:[#allocation6 + $0x7b8] sm:$0xff]
        %v3196 = vld [vmem:[#allocation6 + $0x7c0] sm:$0xff]
        %v3197 = vld [vmem:[#allocation6 + $0x7c8] sm:$0xff]
        %v3198 = vld [vmem:[#allocation6 + $0x7d0] sm:$0xff]
        %v3199 = vld [vmem:[#allocation6 + $0x7d8] sm:$0xff]
        %v3200 = vld [vmem:[#allocation6 + $0x7e0] sm:$0xff]
        %v3201 = vld [vmem:[#allocation6 + $0x7e8] sm:$0xff]
        %v3202 = vld [vmem:[#allocation6 + $0x7f0] sm:$0xff]
        %v3203 = vld [vmem:[#allocation6 + $0x7f8] sm:$0xff]
        %v3204 = vld [vmem:[#allocation7] sm:$0xf]
        %v3206 = vlaneseq
        %v3207 = vshrl.u32 %v3206, 7
        %v3208 = vsub.s32 0, %v3207
        %v3209 = vrot.slane %v3204, %v3208
        %v3210 = vlaneseq
        %v3211 = vshrl.u32 %v3210, 7
        %v3212 = vsub.s32 1, %v3211
        %v3213 = vrot.slane %v3204, %v3212
        %v3214 = vlaneseq
        %v3215 = vshrl.u32 %v3214, 7
        %v3216 = vsub.s32 2, %v3215
        %v3217 = vrot.slane %v3204, %v3216
        %v3218 = vlaneseq
        %v3219 = vshrl.u32 %v3218, 7
        %v3220 = vsub.s32 3, %v3219
        %v3221 = vrot.slane %v3204, %v3220
        %v3482 = vunpack.c.l.b16 %v2948
        %v3483 = vunpack.c.h.b16 %v2948
        %v3484 = vunpack.c.l.b16 %v2949
        %v3485 = vunpack.c.h.b16 %v2949
        %v3486 = vunpack.c.l.b16 %v2950
        %v3487 = vunpack.c.h.b16 %v2950
        %v3488 = vunpack.c.l.b16 %v2951
        %v3489 = vunpack.c.h.b16 %v2951
        %v3490 = vunpack.c.l.b16 %v2952
        %v3491 = vunpack.c.h.b16 %v2952
        %v3492 = vunpack.c.l.b16 %v2953
        %v3493 = vunpack.c.h.b16 %v2953
        %v3494 = vunpack.c.l.b16 %v2954
        %v3495 = vunpack.c.h.b16 %v2954
        %v3496 = vunpack.c.l.b16 %v2955
        %v3497 = vunpack.c.h.b16 %v2955
        %v3498 = vunpack.c.l.b16 %v2956
        %v3499 = vunpack.c.h.b16 %v2956
        %v3500 = vunpack.c.l.b16 %v2957
        %v3501 = vunpack.c.h.b16 %v2957
        %v3502 = vunpack.c.l.b16 %v2958
        %v3503 = vunpack.c.h.b16 %v2958
        %v3504 = vunpack.c.l.b16 %v2959
        %v3505 = vunpack.c.h.b16 %v2959
        %v3506 = vunpack.c.l.b16 %v2960
        %v3507 = vunpack.c.h.b16 %v2960
        %v3508 = vunpack.c.l.b16 %v2961
        %v3509 = vunpack.c.h.b16 %v2961
        %v3510 = vunpack.c.l.b16 %v2962
        %v3511 = vunpack.c.h.b16 %v2962
        %v3512 = vunpack.c.l.b16 %v2963
        %v3513 = vunpack.c.h.b16 %v2963
        %v3514 = vunpack.c.l.b16 %v2964
        %v3515 = vunpack.c.h.b16 %v2964
        %v3516 = vunpack.c.l.b16 %v2965
        %v3517 = vunpack.c.h.b16 %v2965
        %v3518 = vunpack.c.l.b16 %v2966
        %v3519 = vunpack.c.h.b16 %v2966
        %v3520 = vunpack.c.l.b16 %v2967
        %v3521 = vunpack.c.h.b16 %v2967
        %v3522 = vunpack.c.l.b16 %v2968
        %v3523 = vunpack.c.h.b16 %v2968
        %v3524 = vunpack.c.l.b16 %v2969
        %v3525 = vunpack.c.h.b16 %v2969
        %v3526 = vunpack.c.l.b16 %v2970
        %v3527 = vunpack.c.h.b16 %v2970
        %v3528 = vunpack.c.l.b16 %v2971
        %v3529 = vunpack.c.h.b16 %v2971
        %v3530 = vunpack.c.l.b16 %v2972
        %v3531 = vunpack.c.h.b16 %v2972
        %v3532 = vunpack.c.l.b16 %v2973
        %v3533 = vunpack.c.h.b16 %v2973
        %v3534 = vunpack.c.l.b16 %v2974
        %v3535 = vunpack.c.h.b16 %v2974
        %v3536 = vunpack.c.l.b16 %v2975
        %v3537 = vunpack.c.h.b16 %v2975
        %v3538 = vunpack.c.l.b16 %v2976
        %v3539 = vunpack.c.h.b16 %v2976
        %v3540 = vunpack.c.l.b16 %v2977
        %v3541 = vunpack.c.h.b16 %v2977
        %v3542 = vunpack.c.l.b16 %v2978
        %v3543 = vunpack.c.h.b16 %v2978
        %v3544 = vunpack.c.l.b16 %v2979
        %v3545 = vunpack.c.h.b16 %v2979
        %v3546 = vunpack.c.l.b16 %v2980
        %v3547 = vunpack.c.h.b16 %v2980
        %v3548 = vunpack.c.l.b16 %v2981
        %v3549 = vunpack.c.h.b16 %v2981
        %v3550 = vunpack.c.l.b16 %v2982
        %v3551 = vunpack.c.h.b16 %v2982
        %v3552 = vunpack.c.l.b16 %v2983
        %v3553 = vunpack.c.h.b16 %v2983
        %v3554 = vunpack.c.l.b16 %v2984
        %v3555 = vunpack.c.h.b16 %v2984
        %v3556 = vunpack.c.l.b16 %v2985
        %v3557 = vunpack.c.h.b16 %v2985
        %v3558 = vunpack.c.l.b16 %v2986
        %v3559 = vunpack.c.h.b16 %v2986
        %v3560 = vunpack.c.l.b16 %v2987
        %v3561 = vunpack.c.h.b16 %v2987
        %v3562 = vunpack.c.l.b16 %v2988
        %v3563 = vunpack.c.h.b16 %v2988
        %v3564 = vunpack.c.l.b16 %v2989
        %v3565 = vunpack.c.h.b16 %v2989
        %v3566 = vunpack.c.l.b16 %v2990
        %v3567 = vunpack.c.h.b16 %v2990
        %v3568 = vunpack.c.l.b16 %v2991
        %v3569 = vunpack.c.h.b16 %v2991
        %v3570 = vunpack.c.l.b16 %v2992
        %v3571 = vunpack.c.h.b16 %v2992
        %v3572 = vunpack.c.l.b16 %v2993
        %v3573 = vunpack.c.h.b16 %v2993
        %v3574 = vunpack.c.l.b16 %v2994
        %v3575 = vunpack.c.h.b16 %v2994
        %v3576 = vunpack.c.l.b16 %v2995
        %v3577 = vunpack.c.h.b16 %v2995
        %v3578 = vunpack.c.l.b16 %v2996
        %v3579 = vunpack.c.h.b16 %v2996
        %v3580 = vunpack.c.l.b16 %v2997
        %v3581 = vunpack.c.h.b16 %v2997
        %v3582 = vunpack.c.l.b16 %v2998
        %v3583 = vunpack.c.h.b16 %v2998
        %v3584 = vunpack.c.l.b16 %v2999
        %v3585 = vunpack.c.h.b16 %v2999
        %v3586 = vunpack.c.l.b16 %v3000
        %v3587 = vunpack.c.h.b16 %v3000
        %v3588 = vunpack.c.l.b16 %v3001
        %v3589 = vunpack.c.h.b16 %v3001
        %v3590 = vunpack.c.l.b16 %v3002
        %v3591 = vunpack.c.h.b16 %v3002
        %v3592 = vunpack.c.l.b16 %v3003
        %v3593 = vunpack.c.h.b16 %v3003
        %v3594 = vunpack.c.l.b16 %v3004
        %v3595 = vunpack.c.h.b16 %v3004
        %v3596 = vunpack.c.l.b16 %v3005
        %v3597 = vunpack.c.h.b16 %v3005
        %v3598 = vunpack.c.l.b16 %v3006
        %v3599 = vunpack.c.h.b16 %v3006
        %v3600 = vunpack.c.l.b16 %v3007
        %v3601 = vunpack.c.h.b16 %v3007
        %v3602 = vunpack.c.l.b16 %v3008
        %v3603 = vunpack.c.h.b16 %v3008
        %v3604 = vunpack.c.l.b16 %v3009
        %v3605 = vunpack.c.h.b16 %v3009
        %v3606 = vunpack.c.l.b16 %v3010
        %v3607 = vunpack.c.h.b16 %v3010
        %v3608 = vunpack.c.l.b16 %v3011
        %v3609 = vunpack.c.h.b16 %v3011
        %v3610 = vunpack.c.l.b16 %v3012
        %v3611 = vunpack.c.h.b16 %v3012
        %v3612 = vunpack.c.l.b16 %v3013
        %v3613 = vunpack.c.h.b16 %v3013
        %v3614 = vunpack.c.l.b16 %v3014
        %v3615 = vunpack.c.h.b16 %v3014
        %v3616 = vunpack.c.l.b16 %v3015
        %v3617 = vunpack.c.h.b16 %v3015
        %v3618 = vunpack.c.l.b16 %v3016
        %v3619 = vunpack.c.h.b16 %v3016
        %v3620 = vunpack.c.l.b16 %v3017
        %v3621 = vunpack.c.h.b16 %v3017
        %v3622 = vunpack.c.l.b16 %v3018
        %v3623 = vunpack.c.h.b16 %v3018
        %v3624 = vunpack.c.l.b16 %v3019
        %v3625 = vunpack.c.h.b16 %v3019
        %v3626 = vunpack.c.l.b16 %v3020
        %v3627 = vunpack.c.h.b16 %v3020
        %v3628 = vunpack.c.l.b16 %v3021
        %v3629 = vunpack.c.h.b16 %v3021
        %v3630 = vunpack.c.l.b16 %v3022
        %v3631 = vunpack.c.h.b16 %v3022
        %v3632 = vunpack.c.l.b16 %v3023
        %v3633 = vunpack.c.h.b16 %v3023
        %v3634 = vunpack.c.l.b16 %v3024
        %v3635 = vunpack.c.h.b16 %v3024
        %v3636 = vunpack.c.l.b16 %v3025
        %v3637 = vunpack.c.h.b16 %v3025
        %v3638 = vunpack.c.l.b16 %v3026
        %v3639 = vunpack.c.h.b16 %v3026
        %v3640 = vunpack.c.l.b16 %v3027
        %v3641 = vunpack.c.h.b16 %v3027
        %v3642 = vunpack.c.l.b16 %v3028
        %v3643 = vunpack.c.h.b16 %v3028
        %v3644 = vunpack.c.l.b16 %v3029
        %v3645 = vunpack.c.h.b16 %v3029
        %v3646 = vunpack.c.l.b16 %v3030
        %v3647 = vunpack.c.h.b16 %v3030
        %v3648 = vunpack.c.l.b16 %v3031
        %v3649 = vunpack.c.h.b16 %v3031
        %v3650 = vunpack.c.l.b16 %v3032
        %v3651 = vunpack.c.h.b16 %v3032
        %v3652 = vunpack.c.l.b16 %v3033
        %v3653 = vunpack.c.h.b16 %v3033
        %v3654 = vunpack.c.l.b16 %v3034
        %v3655 = vunpack.c.h.b16 %v3034
        %v3656 = vunpack.c.l.b16 %v3035
        %v3657 = vunpack.c.h.b16 %v3035
        %v3658 = vunpack.c.l.b16 %v3036
        %v3659 = vunpack.c.h.b16 %v3036
        %v3660 = vunpack.c.l.b16 %v3037
        %v3661 = vunpack.c.h.b16 %v3037
        %v3662 = vunpack.c.l.b16 %v3038
        %v3663 = vunpack.c.h.b16 %v3038
        %v3664 = vunpack.c.l.b16 %v3039
        %v3665 = vunpack.c.h.b16 %v3039
        %v3666 = vunpack.c.l.b16 %v3040
        %v3667 = vunpack.c.h.b16 %v3040
        %v3668 = vunpack.c.l.b16 %v3041
        %v3669 = vunpack.c.h.b16 %v3041
        %v3670 = vunpack.c.l.b16 %v3042
        %v3671 = vunpack.c.h.b16 %v3042
        %v3672 = vunpack.c.l.b16 %v3043
        %v3673 = vunpack.c.h.b16 %v3043
        %v3674 = vunpack.c.l.b16 %v3044
        %v3675 = vunpack.c.h.b16 %v3044
        %v3676 = vunpack.c.l.b16 %v3045
        %v3677 = vunpack.c.h.b16 %v3045
        %v3678 = vunpack.c.l.b16 %v3046
        %v3679 = vunpack.c.h.b16 %v3046
        %v3680 = vunpack.c.l.b16 %v3047
        %v3681 = vunpack.c.h.b16 %v3047
        %v3682 = vunpack.c.l.b16 %v3048
        %v3683 = vunpack.c.h.b16 %v3048
        %v3684 = vunpack.c.l.b16 %v3049
        %v3685 = vunpack.c.h.b16 %v3049
        %v3686 = vunpack.c.l.b16 %v3050
        %v3687 = vunpack.c.h.b16 %v3050
        %v3688 = vunpack.c.l.b16 %v3051
        %v3689 = vunpack.c.h.b16 %v3051
        %v3690 = vunpack.c.l.b16 %v3052
        %v3691 = vunpack.c.h.b16 %v3052
        %v3692 = vunpack.c.l.b16 %v3053
        %v3693 = vunpack.c.h.b16 %v3053
        %v3694 = vunpack.c.l.b16 %v3054
        %v3695 = vunpack.c.h.b16 %v3054
        %v3696 = vunpack.c.l.b16 %v3055
        %v3697 = vunpack.c.h.b16 %v3055
        %v3698 = vunpack.c.l.b16 %v3056
        %v3699 = vunpack.c.h.b16 %v3056
        %v3700 = vunpack.c.l.b16 %v3057
        %v3701 = vunpack.c.h.b16 %v3057
        %v3702 = vunpack.c.l.b16 %v3058
        %v3703 = vunpack.c.h.b16 %v3058
        %v3704 = vunpack.c.l.b16 %v3059
        %v3705 = vunpack.c.h.b16 %v3059
        %v3706 = vunpack.c.l.b16 %v3060
        %v3707 = vunpack.c.h.b16 %v3060
        %v3708 = vunpack.c.l.b16 %v3061
        %v3709 = vunpack.c.h.b16 %v3061
        %v3710 = vunpack.c.l.b16 %v3062
        %v3711 = vunpack.c.h.b16 %v3062
        %v3712 = vunpack.c.l.b16 %v3063
        %v3713 = vunpack.c.h.b16 %v3063
        %v3714 = vunpack.c.l.b16 %v3064
        %v3715 = vunpack.c.h.b16 %v3064
        %v3716 = vunpack.c.l.b16 %v3065
        %v3717 = vunpack.c.h.b16 %v3065
        %v3718 = vunpack.c.l.b16 %v3066
        %v3719 = vunpack.c.h.b16 %v3066
        %v3720 = vunpack.c.l.b16 %v3067
        %v3721 = vunpack.c.h.b16 %v3067
        %v3722 = vunpack.c.l.b16 %v3068
        %v3723 = vunpack.c.h.b16 %v3068
        %v3724 = vunpack.c.l.b16 %v3069
        %v3725 = vunpack.c.h.b16 %v3069
        %v3726 = vunpack.c.l.b16 %v3070
        %v3727 = vunpack.c.h.b16 %v3070
        %v3728 = vunpack.c.l.b16 %v3071
        %v3729 = vunpack.c.h.b16 %v3071
        %v3730 = vunpack.c.l.b16 %v3072
        %v3731 = vunpack.c.h.b16 %v3072
        %v3732 = vunpack.c.l.b16 %v3073
        %v3733 = vunpack.c.h.b16 %v3073
        %v3734 = vunpack.c.l.b16 %v3074
        %v3735 = vunpack.c.h.b16 %v3074
        %v3736 = vunpack.c.l.b16 %v3075
        %v3737 = vunpack.c.h.b16 %v3075
        %v3738 = vunpack.c.l.b16 %v3076
        %v3739 = vunpack.c.h.b16 %v3076
        %v3740 = vunpack.c.l.b16 %v3077
        %v3741 = vunpack.c.h.b16 %v3077
        %v3742 = vunpack.c.l.b16 %v3078
        %v3743 = vunpack.c.h.b16 %v3078
        %v3744 = vunpack.c.l.b16 %v3079
        %v3745 = vunpack.c.h.b16 %v3079
        %v3746 = vunpack.c.l.b16 %v3080
        %v3747 = vunpack.c.h.b16 %v3080
        %v3748 = vunpack.c.l.b16 %v3081
        %v3749 = vunpack.c.h.b16 %v3081
        %v3750 = vunpack.c.l.b16 %v3082
        %v3751 = vunpack.c.h.b16 %v3082
        %v3752 = vunpack.c.l.b16 %v3083
        %v3753 = vunpack.c.h.b16 %v3083
        %v3754 = vunpack.c.l.b16 %v3084
        %v3755 = vunpack.c.h.b16 %v3084
        %v3756 = vunpack.c.l.b16 %v3085
        %v3757 = vunpack.c.h.b16 %v3085
        %v3758 = vunpack.c.l.b16 %v3086
        %v3759 = vunpack.c.h.b16 %v3086
        %v3760 = vunpack.c.l.b16 %v3087
        %v3761 = vunpack.c.h.b16 %v3087
        %v3762 = vunpack.c.l.b16 %v3088
        %v3763 = vunpack.c.h.b16 %v3088
        %v3764 = vunpack.c.l.b16 %v3089
        %v3765 = vunpack.c.h.b16 %v3089
        %v3766 = vunpack.c.l.b16 %v3090
        %v3767 = vunpack.c.h.b16 %v3090
        %v3768 = vunpack.c.l.b16 %v3091
        %v3769 = vunpack.c.h.b16 %v3091
        %v3770 = vunpack.c.l.b16 %v3092
        %v3771 = vunpack.c.h.b16 %v3092
        %v3772 = vunpack.c.l.b16 %v3093
        %v3773 = vunpack.c.h.b16 %v3093
        %v3774 = vunpack.c.l.b16 %v3094
        %v3775 = vunpack.c.h.b16 %v3094
        %v3776 = vunpack.c.l.b16 %v3095
        %v3777 = vunpack.c.h.b16 %v3095
        %v3778 = vunpack.c.l.b16 %v3096
        %v3779 = vunpack.c.h.b16 %v3096
        %v3780 = vunpack.c.l.b16 %v3097
        %v3781 = vunpack.c.h.b16 %v3097
        %v3782 = vunpack.c.l.b16 %v3098
        %v3783 = vunpack.c.h.b16 %v3098
        %v3784 = vunpack.c.l.b16 %v3099
        %v3785 = vunpack.c.h.b16 %v3099
        %v3786 = vunpack.c.l.b16 %v3100
        %v3787 = vunpack.c.h.b16 %v3100
        %v3788 = vunpack.c.l.b16 %v3101
        %v3789 = vunpack.c.h.b16 %v3101
        %v3790 = vunpack.c.l.b16 %v3102
        %v3791 = vunpack.c.h.b16 %v3102
        %v3792 = vunpack.c.l.b16 %v3103
        %v3793 = vunpack.c.h.b16 %v3103
        %v3794 = vunpack.c.l.b16 %v3104
        %v3795 = vunpack.c.h.b16 %v3104
        %v3796 = vunpack.c.l.b16 %v3105
        %v3797 = vunpack.c.h.b16 %v3105
        %v3798 = vunpack.c.l.b16 %v3106
        %v3799 = vunpack.c.h.b16 %v3106
        %v3800 = vunpack.c.l.b16 %v3107
        %v3801 = vunpack.c.h.b16 %v3107
        %v3802 = vunpack.c.l.b16 %v3108
        %v3803 = vunpack.c.h.b16 %v3108
        %v3804 = vunpack.c.l.b16 %v3109
        %v3805 = vunpack.c.h.b16 %v3109
        %v3806 = vunpack.c.l.b16 %v3110
        %v3807 = vunpack.c.h.b16 %v3110
        %v3808 = vunpack.c.l.b16 %v3111
        %v3809 = vunpack.c.h.b16 %v3111
        %v3810 = vunpack.c.l.b16 %v3112
        %v3811 = vunpack.c.h.b16 %v3112
        %v3812 = vunpack.c.l.b16 %v3113
        %v3813 = vunpack.c.h.b16 %v3113
        %v3814 = vunpack.c.l.b16 %v3114
        %v3815 = vunpack.c.h.b16 %v3114
        %v3816 = vunpack.c.l.b16 %v3115
        %v3817 = vunpack.c.h.b16 %v3115
        %v3818 = vunpack.c.l.b16 %v3116
        %v3819 = vunpack.c.h.b16 %v3116
        %v3820 = vunpack.c.l.b16 %v3117
        %v3821 = vunpack.c.h.b16 %v3117
        %v3822 = vunpack.c.l.b16 %v3118
        %v3823 = vunpack.c.h.b16 %v3118
        %v3824 = vunpack.c.l.b16 %v3119
        %v3825 = vunpack.c.h.b16 %v3119
        %v3826 = vunpack.c.l.b16 %v3120
        %v3827 = vunpack.c.h.b16 %v3120
        %v3828 = vunpack.c.l.b16 %v3121
        %v3829 = vunpack.c.h.b16 %v3121
        %v3830 = vunpack.c.l.b16 %v3122
        %v3831 = vunpack.c.h.b16 %v3122
        %v3832 = vunpack.c.l.b16 %v3123
        %v3833 = vunpack.c.h.b16 %v3123
        %v3834 = vunpack.c.l.b16 %v3124
        %v3835 = vunpack.c.h.b16 %v3124
        %v3836 = vunpack.c.l.b16 %v3125
        %v3837 = vunpack.c.h.b16 %v3125
        %v3838 = vunpack.c.l.b16 %v3126
        %v3839 = vunpack.c.h.b16 %v3126
        %v3840 = vunpack.c.l.b16 %v3127
        %v3841 = vunpack.c.h.b16 %v3127
        %v3842 = vunpack.c.l.b16 %v3128
        %v3843 = vunpack.c.h.b16 %v3128
        %v3844 = vunpack.c.l.b16 %v3129
        %v3845 = vunpack.c.h.b16 %v3129
        %v3846 = vunpack.c.l.b16 %v3130
        %v3847 = vunpack.c.h.b16 %v3130
        %v3848 = vunpack.c.l.b16 %v3131
        %v3849 = vunpack.c.h.b16 %v3131
        %v3850 = vunpack.c.l.b16 %v3132
        %v3851 = vunpack.c.h.b16 %v3132
        %v3852 = vunpack.c.l.b16 %v3133
        %v3853 = vunpack.c.h.b16 %v3133
        %v3854 = vunpack.c.l.b16 %v3134
        %v3855 = vunpack.c.h.b16 %v3134
        %v3856 = vunpack.c.l.b16 %v3135
        %v3857 = vunpack.c.h.b16 %v3135
        %v3858 = vunpack.c.l.b16 %v3136
        %v3859 = vunpack.c.h.b16 %v3136
        %v3860 = vunpack.c.l.b16 %v3137
        %v3861 = vunpack.c.h.b16 %v3137
        %v3862 = vunpack.c.l.b16 %v3138
        %v3863 = vunpack.c.h.b16 %v3138
        %v3864 = vunpack.c.l.b16 %v3139
        %v3865 = vunpack.c.h.b16 %v3139
        %v3866 = vunpack.c.l.b16 %v3140
        %v3867 = vunpack.c.h.b16 %v3140
        %v3868 = vunpack.c.l.b16 %v3141
        %v3869 = vunpack.c.h.b16 %v3141
        %v3870 = vunpack.c.l.b16 %v3142
        %v3871 = vunpack.c.h.b16 %v3142
        %v3872 = vunpack.c.l.b16 %v3143
        %v3873 = vunpack.c.h.b16 %v3143
        %v3874 = vunpack.c.l.b16 %v3144
        %v3875 = vunpack.c.h.b16 %v3144
        %v3876 = vunpack.c.l.b16 %v3145
        %v3877 = vunpack.c.h.b16 %v3145
        %v3878 = vunpack.c.l.b16 %v3146
        %v3879 = vunpack.c.h.b16 %v3146
        %v3880 = vunpack.c.l.b16 %v3147
        %v3881 = vunpack.c.h.b16 %v3147
        %v3882 = vunpack.c.l.b16 %v3148
        %v3883 = vunpack.c.h.b16 %v3148
        %v3884 = vunpack.c.l.b16 %v3149
        %v3885 = vunpack.c.h.b16 %v3149
        %v3886 = vunpack.c.l.b16 %v3150
        %v3887 = vunpack.c.h.b16 %v3150
        %v3888 = vunpack.c.l.b16 %v3151
        %v3889 = vunpack.c.h.b16 %v3151
        %v3890 = vunpack.c.l.b16 %v3152
        %v3891 = vunpack.c.h.b16 %v3152
        %v3892 = vunpack.c.l.b16 %v3153
        %v3893 = vunpack.c.h.b16 %v3153
        %v3894 = vunpack.c.l.b16 %v3154
        %v3895 = vunpack.c.h.b16 %v3154
        %v3896 = vunpack.c.l.b16 %v3155
        %v3897 = vunpack.c.h.b16 %v3155
        %v3898 = vunpack.c.l.b16 %v3156
        %v3899 = vunpack.c.h.b16 %v3156
        %v3900 = vunpack.c.l.b16 %v3157
        %v3901 = vunpack.c.h.b16 %v3157
        %v3902 = vunpack.c.l.b16 %v3158
        %v3903 = vunpack.c.h.b16 %v3158
        %v3904 = vunpack.c.l.b16 %v3159
        %v3905 = vunpack.c.h.b16 %v3159
        %v3906 = vunpack.c.l.b16 %v3160
        %v3907 = vunpack.c.h.b16 %v3160
        %v3908 = vunpack.c.l.b16 %v3161
        %v3909 = vunpack.c.h.b16 %v3161
        %v3910 = vunpack.c.l.b16 %v3162
        %v3911 = vunpack.c.h.b16 %v3162
        %v3912 = vunpack.c.l.b16 %v3163
        %v3913 = vunpack.c.h.b16 %v3163
        %v3914 = vunpack.c.l.b16 %v3164
        %v3915 = vunpack.c.h.b16 %v3164
        %v3916 = vunpack.c.l.b16 %v3165
        %v3917 = vunpack.c.h.b16 %v3165
        %v3918 = vunpack.c.l.b16 %v3166
        %v3919 = vunpack.c.h.b16 %v3166
        %v3920 = vunpack.c.l.b16 %v3167
        %v3921 = vunpack.c.h.b16 %v3167
        %v3922 = vunpack.c.l.b16 %v3168
        %v3923 = vunpack.c.h.b16 %v3168
        %v3924 = vunpack.c.l.b16 %v3169
        %v3925 = vunpack.c.h.b16 %v3169
        %v3926 = vunpack.c.l.b16 %v3170
        %v3927 = vunpack.c.h.b16 %v3170
        %v3928 = vunpack.c.l.b16 %v3171
        %v3929 = vunpack.c.h.b16 %v3171
        %v3930 = vunpack.c.l.b16 %v3172
        %v3931 = vunpack.c.h.b16 %v3172
        %v3932 = vunpack.c.l.b16 %v3173
        %v3933 = vunpack.c.h.b16 %v3173
        %v3934 = vunpack.c.l.b16 %v3174
        %v3935 = vunpack.c.h.b16 %v3174
        %v3936 = vunpack.c.l.b16 %v3175
        %v3937 = vunpack.c.h.b16 %v3175
        %v3938 = vunpack.c.l.b16 %v3176
        %v3939 = vunpack.c.h.b16 %v3176
        %v3940 = vunpack.c.l.b16 %v3177
        %v3941 = vunpack.c.h.b16 %v3177
        %v3942 = vunpack.c.l.b16 %v3178
        %v3943 = vunpack.c.h.b16 %v3178
        %v3944 = vunpack.c.l.b16 %v3179
        %v3945 = vunpack.c.h.b16 %v3179
        %v3946 = vunpack.c.l.b16 %v3180
        %v3947 = vunpack.c.h.b16 %v3180
        %v3948 = vunpack.c.l.b16 %v3181
        %v3949 = vunpack.c.h.b16 %v3181
        %v3950 = vunpack.c.l.b16 %v3182
        %v3951 = vunpack.c.h.b16 %v3182
        %v3952 = vunpack.c.l.b16 %v3183
        %v3953 = vunpack.c.h.b16 %v3183
        %v3954 = vunpack.c.l.b16 %v3184
        %v3955 = vunpack.c.h.b16 %v3184
        %v3956 = vunpack.c.l.b16 %v3185
        %v3957 = vunpack.c.h.b16 %v3185
        %v3958 = vunpack.c.l.b16 %v3186
        %v3959 = vunpack.c.h.b16 %v3186
        %v3960 = vunpack.c.l.b16 %v3187
        %v3961 = vunpack.c.h.b16 %v3187
        %v3962 = vunpack.c.l.b16 %v3188
        %v3963 = vunpack.c.h.b16 %v3188
        %v3964 = vunpack.c.l.b16 %v3189
        %v3965 = vunpack.c.h.b16 %v3189
        %v3966 = vunpack.c.l.b16 %v3190
        %v3967 = vunpack.c.h.b16 %v3190
        %v3968 = vunpack.c.l.b16 %v3191
        %v3969 = vunpack.c.h.b16 %v3191
        %v3970 = vunpack.c.l.b16 %v3192
        %v3971 = vunpack.c.h.b16 %v3192
        %v3972 = vunpack.c.l.b16 %v3193
        %v3973 = vunpack.c.h.b16 %v3193
        %v3974 = vunpack.c.l.b16 %v3194
        %v3975 = vunpack.c.h.b16 %v3194
        %v3976 = vunpack.c.l.b16 %v3195
        %v3977 = vunpack.c.h.b16 %v3195
        %v3978 = vunpack.c.l.b16 %v3196
        %v3979 = vunpack.c.h.b16 %v3196
        %v3980 = vunpack.c.l.b16 %v3197
        %v3981 = vunpack.c.h.b16 %v3197
        %v3982 = vunpack.c.l.b16 %v3198
        %v3983 = vunpack.c.h.b16 %v3198
        %v3984 = vunpack.c.l.b16 %v3199
        %v3985 = vunpack.c.h.b16 %v3199
        %v3986 = vunpack.c.l.b16 %v3200
        %v3987 = vunpack.c.h.b16 %v3200
        %v3988 = vunpack.c.l.b16 %v3201
        %v3989 = vunpack.c.h.b16 %v3201
        %v3990 = vunpack.c.l.b16 %v3202
        %v3991 = vunpack.c.h.b16 %v3202
        %v3992 = vunpack.c.l.b16 %v3203
        %v3993 = vunpack.c.h.b16 %v3203
        %v3994 = vpack.c.b16 %v3486, %v3482
        %v3995 = vpack.c.b16 %v3487, %v3483
        %v3996 = vpack.c.b16 %v3488, %v3484
        %v3997 = vpack.c.b16 %v3489, %v3485
        %v3998 = vpack.c.b16 %v3494, %v3490
        %v3999 = vpack.c.b16 %v3495, %v3491
        %v4000 = vpack.c.b16 %v3496, %v3492
        %v4001 = vpack.c.b16 %v3497, %v3493
        %v4002 = vpack.c.b16 %v3502, %v3498
        %v4003 = vpack.c.b16 %v3503, %v3499
        %v4004 = vpack.c.b16 %v3504, %v3500
        %v4005 = vpack.c.b16 %v3505, %v3501
        %v4006 = vpack.c.b16 %v3510, %v3506
        %v4007 = vpack.c.b16 %v3511, %v3507
        %v4008 = vpack.c.b16 %v3512, %v3508
        %v4009 = vpack.c.b16 %v3513, %v3509
        %v4010 = vpack.c.b16 %v3518, %v3514
        %v4011 = vpack.c.b16 %v3519, %v3515
        %v4012 = vpack.c.b16 %v3520, %v3516
        %v4013 = vpack.c.b16 %v3521, %v3517
        %v4014 = vpack.c.b16 %v3526, %v3522
        %v4015 = vpack.c.b16 %v3527, %v3523
        %v4016 = vpack.c.b16 %v3528, %v3524
        %v4017 = vpack.c.b16 %v3529, %v3525
        %v4018 = vpack.c.b16 %v3534, %v3530
        %v4019 = vpack.c.b16 %v3535, %v3531
        %v4020 = vpack.c.b16 %v3536, %v3532
        %v4021 = vpack.c.b16 %v3537, %v3533
        %v4022 = vpack.c.b16 %v3542, %v3538
        %v4023 = vpack.c.b16 %v3543, %v3539
        %v4024 = vpack.c.b16 %v3544, %v3540
        %v4025 = vpack.c.b16 %v3545, %v3541
        %v4026 = vpack.c.b16 %v3550, %v3546
        %v4027 = vpack.c.b16 %v3551, %v3547
        %v4028 = vpack.c.b16 %v3552, %v3548
        %v4029 = vpack.c.b16 %v3553, %v3549
        %v4030 = vpack.c.b16 %v3558, %v3554
        %v4031 = vpack.c.b16 %v3559, %v3555
        %v4032 = vpack.c.b16 %v3560, %v3556
        %v4033 = vpack.c.b16 %v3561, %v3557
        %v4034 = vpack.c.b16 %v3566, %v3562
        %v4035 = vpack.c.b16 %v3567, %v3563
        %v4036 = vpack.c.b16 %v3568, %v3564
        %v4037 = vpack.c.b16 %v3569, %v3565
        %v4038 = vpack.c.b16 %v3574, %v3570
        %v4039 = vpack.c.b16 %v3575, %v3571
        %v4040 = vpack.c.b16 %v3576, %v3572
        %v4041 = vpack.c.b16 %v3577, %v3573
        %v4042 = vpack.c.b16 %v3582, %v3578
        %v4043 = vpack.c.b16 %v3583, %v3579
        %v4044 = vpack.c.b16 %v3584, %v3580
        %v4045 = vpack.c.b16 %v3585, %v3581
        %v4046 = vpack.c.b16 %v3590, %v3586
        %v4047 = vpack.c.b16 %v3591, %v3587
        %v4048 = vpack.c.b16 %v3592, %v3588
        %v4049 = vpack.c.b16 %v3593, %v3589
        %v4050 = vpack.c.b16 %v3598, %v3594
        %v4051 = vpack.c.b16 %v3599, %v3595
        %v4052 = vpack.c.b16 %v3600, %v3596
        %v4053 = vpack.c.b16 %v3601, %v3597
        %v4054 = vpack.c.b16 %v3606, %v3602
        %v4055 = vpack.c.b16 %v3607, %v3603
        %v4056 = vpack.c.b16 %v3608, %v3604
        %v4057 = vpack.c.b16 %v3609, %v3605
        %v4058 = vpack.c.b16 %v3614, %v3610
        %v4059 = vpack.c.b16 %v3615, %v3611
        %v4060 = vpack.c.b16 %v3616, %v3612
        %v4061 = vpack.c.b16 %v3617, %v3613
        %v4062 = vpack.c.b16 %v3622, %v3618
        %v4063 = vpack.c.b16 %v3623, %v3619
        %v4064 = vpack.c.b16 %v3624, %v3620
        %v4065 = vpack.c.b16 %v3625, %v3621
        %v4066 = vpack.c.b16 %v3630, %v3626
        %v4067 = vpack.c.b16 %v3631, %v3627
        %v4068 = vpack.c.b16 %v3632, %v3628
        %v4069 = vpack.c.b16 %v3633, %v3629
        %v4070 = vpack.c.b16 %v3638, %v3634
        %v4071 = vpack.c.b16 %v3639, %v3635
        %v4072 = vpack.c.b16 %v3640, %v3636
        %v4073 = vpack.c.b16 %v3641, %v3637
        %v4074 = vpack.c.b16 %v3646, %v3642
        %v4075 = vpack.c.b16 %v3647, %v3643
        %v4076 = vpack.c.b16 %v3648, %v3644
        %v4077 = vpack.c.b16 %v3649, %v3645
        %v4078 = vpack.c.b16 %v3654, %v3650
        %v4079 = vpack.c.b16 %v3655, %v3651
        %v4080 = vpack.c.b16 %v3656, %v3652
        %v4081 = vpack.c.b16 %v3657, %v3653
        %v4082 = vpack.c.b16 %v3662, %v3658
        %v4083 = vpack.c.b16 %v3663, %v3659
        %v4084 = vpack.c.b16 %v3664, %v3660
        %v4085 = vpack.c.b16 %v3665, %v3661
        %v4086 = vpack.c.b16 %v3670, %v3666
        %v4087 = vpack.c.b16 %v3671, %v3667
        %v4088 = vpack.c.b16 %v3672, %v3668
        %v4089 = vpack.c.b16 %v3673, %v3669
        %v4090 = vpack.c.b16 %v3678, %v3674
        %v4091 = vpack.c.b16 %v3679, %v3675
        %v4092 = vpack.c.b16 %v3680, %v3676
        %v4093 = vpack.c.b16 %v3681, %v3677
        %v4094 = vpack.c.b16 %v3686, %v3682
        %v4095 = vpack.c.b16 %v3687, %v3683
        %v4096 = vpack.c.b16 %v3688, %v3684
        %v4097 = vpack.c.b16 %v3689, %v3685
        %v4098 = vpack.c.b16 %v3694, %v3690
        %v4099 = vpack.c.b16 %v3695, %v3691
        %v4100 = vpack.c.b16 %v3696, %v3692
        %v4101 = vpack.c.b16 %v3697, %v3693
        %v4102 = vpack.c.b16 %v3702, %v3698
        %v4103 = vpack.c.b16 %v3703, %v3699
        %v4104 = vpack.c.b16 %v3704, %v3700
        %v4105 = vpack.c.b16 %v3705, %v3701
        %v4106 = vpack.c.b16 %v3710, %v3706
        %v4107 = vpack.c.b16 %v3711, %v3707
        %v4108 = vpack.c.b16 %v3712, %v3708
        %v4109 = vpack.c.b16 %v3713, %v3709
        %v4110 = vpack.c.b16 %v3718, %v3714
        %v4111 = vpack.c.b16 %v3719, %v3715
        %v4112 = vpack.c.b16 %v3720, %v3716
        %v4113 = vpack.c.b16 %v3721, %v3717
        %v4114 = vpack.c.b16 %v3726, %v3722
        %v4115 = vpack.c.b16 %v3727, %v3723
        %v4116 = vpack.c.b16 %v3728, %v3724
        %v4117 = vpack.c.b16 %v3729, %v3725
        %v4118 = vpack.c.b16 %v3734, %v3730
        %v4119 = vpack.c.b16 %v3735, %v3731
        %v4120 = vpack.c.b16 %v3736, %v3732
        %v4121 = vpack.c.b16 %v3737, %v3733
        %v4122 = vpack.c.b16 %v3742, %v3738
        %v4123 = vpack.c.b16 %v3743, %v3739
        %v4124 = vpack.c.b16 %v3744, %v3740
        %v4125 = vpack.c.b16 %v3745, %v3741
        %v4126 = vpack.c.b16 %v3750, %v3746
        %v4127 = vpack.c.b16 %v3751, %v3747
        %v4128 = vpack.c.b16 %v3752, %v3748
        %v4129 = vpack.c.b16 %v3753, %v3749
        %v4130 = vpack.c.b16 %v3758, %v3754
        %v4131 = vpack.c.b16 %v3759, %v3755
        %v4132 = vpack.c.b16 %v3760, %v3756
        %v4133 = vpack.c.b16 %v3761, %v3757
        %v4134 = vpack.c.b16 %v3766, %v3762
        %v4135 = vpack.c.b16 %v3767, %v3763
        %v4136 = vpack.c.b16 %v3768, %v3764
        %v4137 = vpack.c.b16 %v3769, %v3765
        %v4138 = vpack.c.b16 %v3774, %v3770
        %v4139 = vpack.c.b16 %v3775, %v3771
        %v4140 = vpack.c.b16 %v3776, %v3772
        %v4141 = vpack.c.b16 %v3777, %v3773
        %v4142 = vpack.c.b16 %v3782, %v3778
        %v4143 = vpack.c.b16 %v3783, %v3779
        %v4144 = vpack.c.b16 %v3784, %v3780
        %v4145 = vpack.c.b16 %v3785, %v3781
        %v4146 = vpack.c.b16 %v3790, %v3786
        %v4147 = vpack.c.b16 %v3791, %v3787
        %v4148 = vpack.c.b16 %v3792, %v3788
        %v4149 = vpack.c.b16 %v3793, %v3789
        %v4150 = vpack.c.b16 %v3798, %v3794
        %v4151 = vpack.c.b16 %v3799, %v3795
        %v4152 = vpack.c.b16 %v3800, %v3796
        %v4153 = vpack.c.b16 %v3801, %v3797
        %v4154 = vpack.c.b16 %v3806, %v3802
        %v4155 = vpack.c.b16 %v3807, %v3803
        %v4156 = vpack.c.b16 %v3808, %v3804
        %v4157 = vpack.c.b16 %v3809, %v3805
        %v4158 = vpack.c.b16 %v3814, %v3810
        %v4159 = vpack.c.b16 %v3815, %v3811
        %v4160 = vpack.c.b16 %v3816, %v3812
        %v4161 = vpack.c.b16 %v3817, %v3813
        %v4162 = vpack.c.b16 %v3822, %v3818
        %v4163 = vpack.c.b16 %v3823, %v3819
        %v4164 = vpack.c.b16 %v3824, %v3820
        %v4165 = vpack.c.b16 %v3825, %v3821
        %v4166 = vpack.c.b16 %v3830, %v3826
        %v4167 = vpack.c.b16 %v3831, %v3827
        %v4168 = vpack.c.b16 %v3832, %v3828
        %v4169 = vpack.c.b16 %v3833, %v3829
        %v4170 = vpack.c.b16 %v3838, %v3834
        %v4171 = vpack.c.b16 %v3839, %v3835
        %v4172 = vpack.c.b16 %v3840, %v3836
        %v4173 = vpack.c.b16 %v3841, %v3837
        %v4174 = vpack.c.b16 %v3846, %v3842
        %v4175 = vpack.c.b16 %v3847, %v3843
        %v4176 = vpack.c.b16 %v3848, %v3844
        %v4177 = vpack.c.b16 %v3849, %v3845
        %v4178 = vpack.c.b16 %v3854, %v3850
        %v4179 = vpack.c.b16 %v3855, %v3851
        %v4180 = vpack.c.b16 %v3856, %v3852
        %v4181 = vpack.c.b16 %v3857, %v3853
        %v4182 = vpack.c.b16 %v3862, %v3858
        %v4183 = vpack.c.b16 %v3863, %v3859
        %v4184 = vpack.c.b16 %v3864, %v3860
        %v4185 = vpack.c.b16 %v3865, %v3861
        %v4186 = vpack.c.b16 %v3870, %v3866
        %v4187 = vpack.c.b16 %v3871, %v3867
        %v4188 = vpack.c.b16 %v3872, %v3868
        %v4189 = vpack.c.b16 %v3873, %v3869
        %v4190 = vpack.c.b16 %v3878, %v3874
        %v4191 = vpack.c.b16 %v3879, %v3875
        %v4192 = vpack.c.b16 %v3880, %v3876
        %v4193 = vpack.c.b16 %v3881, %v3877
        %v4194 = vpack.c.b16 %v3886, %v3882
        %v4195 = vpack.c.b16 %v3887, %v3883
        %v4196 = vpack.c.b16 %v3888, %v3884
        %v4197 = vpack.c.b16 %v3889, %v3885
        %v4198 = vpack.c.b16 %v3894, %v3890
        %v4199 = vpack.c.b16 %v3895, %v3891
        %v4200 = vpack.c.b16 %v3896, %v3892
        %v4201 = vpack.c.b16 %v3897, %v3893
        %v4202 = vpack.c.b16 %v3902, %v3898
        %v4203 = vpack.c.b16 %v3903, %v3899
        %v4204 = vpack.c.b16 %v3904, %v3900
        %v4205 = vpack.c.b16 %v3905, %v3901
        %v4206 = vpack.c.b16 %v3910, %v3906
        %v4207 = vpack.c.b16 %v3911, %v3907
        %v4208 = vpack.c.b16 %v3912, %v3908
        %v4209 = vpack.c.b16 %v3913, %v3909
        %v4210 = vpack.c.b16 %v3918, %v3914
        %v4211 = vpack.c.b16 %v3919, %v3915
        %v4212 = vpack.c.b16 %v3920, %v3916
        %v4213 = vpack.c.b16 %v3921, %v3917
        %v4214 = vpack.c.b16 %v3926, %v3922
        %v4215 = vpack.c.b16 %v3927, %v3923
        %v4216 = vpack.c.b16 %v3928, %v3924
        %v4217 = vpack.c.b16 %v3929, %v3925
        %v4218 = vpack.c.b16 %v3934, %v3930
        %v4219 = vpack.c.b16 %v3935, %v3931
        %v4220 = vpack.c.b16 %v3936, %v3932
        %v4221 = vpack.c.b16 %v3937, %v3933
        %v4222 = vpack.c.b16 %v3942, %v3938
        %v4223 = vpack.c.b16 %v3943, %v3939
        %v4224 = vpack.c.b16 %v3944, %v3940
        %v4225 = vpack.c.b16 %v3945, %v3941
        %v4226 = vpack.c.b16 %v3950, %v3946
        %v4227 = vpack.c.b16 %v3951, %v3947
        %v4228 = vpack.c.b16 %v3952, %v3948
        %v4229 = vpack.c.b16 %v3953, %v3949
        %v4230 = vpack.c.b16 %v3958, %v3954
        %v4231 = vpack.c.b16 %v3959, %v3955
        %v4232 = vpack.c.b16 %v3960, %v3956
        %v4233 = vpack.c.b16 %v3961, %v3957
        %v4234 = vpack.c.b16 %v3966, %v3962
        %v4235 = vpack.c.b16 %v3967, %v3963
        %v4236 = vpack.c.b16 %v3968, %v3964
        %v4237 = vpack.c.b16 %v3969, %v3965
        %v4238 = vpack.c.b16 %v3974, %v3970
        %v4239 = vpack.c.b16 %v3975, %v3971
        %v4240 = vpack.c.b16 %v3976, %v3972
        %v4241 = vpack.c.b16 %v3977, %v3973
        %v4242 = vpack.c.b16 %v3982, %v3978
        %v4243 = vpack.c.b16 %v3983, %v3979
        %v4244 = vpack.c.b16 %v3984, %v3980
        %v4245 = vpack.c.b16 %v3985, %v3981
        %v4246 = vpack.c.b16 %v3990, %v3986
        %v4247 = vpack.c.b16 %v3991, %v3987
        %v4248 = vpack.c.b16 %v3992, %v3988
        %v4249 = vpack.c.b16 %v3993, %v3989
        %4506 = vmatprep.subr.bf16.mxu0 %v4023
        %4507 = vmatpush1.bf16.msra.mxu0 %v4022
        %4508 = vmatprep.subr.bf16.mxu0 %v4019
        %4509 = vmatpush1.bf16.msra.mxu0 %v4018
        %4510 = vmatprep.subr.bf16.mxu0 %v4015
        %4511 = vmatpush1.bf16.msra.mxu0 %v4014
        %4512 = vmatprep.subr.bf16.mxu0 %v4011
        %4513 = vmatpush1.bf16.msra.mxu0 %v4010
        %4514 = vmatprep.subr.bf16.mxu0 %v4007
        %4515 = vmatpush1.bf16.msra.mxu0 %v4006
        %4516 = vmatprep.subr.bf16.mxu0 %v4003
        %4517 = vmatpush1.bf16.msra.mxu0 %v4002
        %4518 = vmatprep.subr.bf16.mxu0 %v3999
        %4519 = vmatpush1.bf16.msra.mxu0 %v3998
        %4520 = vmatprep.subr.bf16.mxu0 %v3995
        %4521 = vmatpush1.bf16.msra.mxu0 %v3994
        %4522 = vmatprep.subr.bf16.mxu0 %v4055
        %4523 = vmatpush2.bf16.msra.mxu0 %v4054
        %4524 = vmatprep.subr.bf16.mxu0 %v4051
        %4525 = vmatpush2.bf16.msra.mxu0 %v4050
        %4526 = vmatprep.subr.bf16.mxu0 %v4047
        %4527 = vmatpush2.bf16.msra.mxu0 %v4046
        %4528 = vmatprep.subr.bf16.mxu0 %v4043
        %4529 = vmatpush2.bf16.msra.mxu0 %v4042
        %4530 = vmatprep.subr.bf16.mxu0 %v4039
        %4531 = vmatpush2.bf16.msra.mxu0 %v4038
        %4532 = vmatprep.subr.bf16.mxu0 %v4035
        %4533 = vmatpush2.bf16.msra.mxu0 %v4034
        %4534 = vmatprep.subr.bf16.mxu0 %v4031
        %4535 = vmatpush2.bf16.msra.mxu0 %v4030
        %4536 = vmatprep.subr.bf16.mxu0 %v4027
        %4537 = vmatpush2.bf16.msra.mxu0 %v4026
        %4538 = vmatprep.mubr.bf16.mxu0 %v2941
        %4539 = vmatmul.mubr.bf16.gmra.mxu0 %v2940
        %v4540 = vpop.f32.mrf.mxu0
        %v4541 = vadd.f32 %v3209, %v4540
        %v4542 = vpop.f32.mrf.mxu0
        %v4543 = vadd.f32 %v3213, %v4542
        %v4544 = vpop.f32.mrf.mxu0
        %v4545 = vadd.f32 %v3209, %v4544
        %v4546 = vpop.f32.mrf.mxu0
        %v4547 = vadd.f32 %v3213, %v4546
        %4548 = vdwg.mxu0
        %4549 = vmatprep.subr.bf16.mxu0 %v4087
        %4550 = vmatpush1.bf16.msra.mxu0 %v4086
        %4551 = vmatprep.subr.bf16.mxu0 %v4083
        %4552 = vmatpush1.bf16.msra.mxu0 %v4082
        %4553 = vmatprep.subr.bf16.mxu0 %v4079
        %4554 = vmatpush1.bf16.msra.mxu0 %v4078
        %4555 = vmatprep.subr.bf16.mxu0 %v4075
        %4556 = vmatpush1.bf16.msra.mxu0 %v4074
        %4557 = vmatprep.subr.bf16.mxu0 %v4071
        %4558 = vmatpush1.bf16.msra.mxu0 %v4070
        %4559 = vmatprep.subr.bf16.mxu0 %v4067
        %4560 = vmatpush1.bf16.msra.mxu0 %v4066
        %4561 = vmatprep.subr.bf16.mxu0 %v4063
        %4562 = vmatpush1.bf16.msra.mxu0 %v4062
        %4563 = vmatprep.subr.bf16.mxu0 %v4059
        %4564 = vmatpush1.bf16.msra.mxu0 %v4058
        %4565 = vmatprep.subr.bf16.mxu0 %v4119
        %4566 = vmatpush2.bf16.msra.mxu0 %v4118
        %4567 = vmatprep.subr.bf16.mxu0 %v4115
        %4568 = vmatpush2.bf16.msra.mxu0 %v4114
        %4569 = vmatprep.subr.bf16.mxu0 %v4111
        %4570 = vmatpush2.bf16.msra.mxu0 %v4110
        %4571 = vmatprep.subr.bf16.mxu0 %v4107
        %4572 = vmatpush2.bf16.msra.mxu0 %v4106
        %4573 = vmatprep.subr.bf16.mxu0 %v4103
        %4574 = vmatpush2.bf16.msra.mxu0 %v4102
        %4575 = vmatprep.subr.bf16.mxu0 %v4099
        %4576 = vmatpush2.bf16.msra.mxu0 %v4098
        %4577 = vmatprep.subr.bf16.mxu0 %v4095
        %4578 = vmatpush2.bf16.msra.mxu0 %v4094
        %4579 = vmatprep.subr.bf16.mxu0 %v4091
        %4580 = vmatpush2.bf16.msra.mxu0 %v4090
        %4581 = vmatprep.mubr.bf16.mxu0 %v2943
        %4582 = vmatmul.mubr.bf16.gmra.mxu0 %v2942
        %v4583 = vpop.f32.mrf.mxu0
        %v4584 = vadd.f32 %v4541, %v4583
        %v4585 = vpop.f32.mrf.mxu0
        %v4586 = vadd.f32 %v4543, %v4585
        %v4587 = vpop.f32.mrf.mxu0
        %v4588 = vadd.f32 %v4545, %v4587
        %v4589 = vpop.f32.mrf.mxu0
        %v4590 = vadd.f32 %v4547, %v4589
        %4591 = vdwg.mxu0
        %4592 = vmatprep.subr.bf16.mxu0 %v4151
        %4593 = vmatpush1.bf16.msra.mxu0 %v4150
        %4594 = vmatprep.subr.bf16.mxu0 %v4147
        %4595 = vmatpush1.bf16.msra.mxu0 %v4146
        %4596 = vmatprep.subr.bf16.mxu0 %v4143
        %4597 = vmatpush1.bf16.msra.mxu0 %v4142
        %4598 = vmatprep.subr.bf16.mxu0 %v4139
        %4599 = vmatpush1.bf16.msra.mxu0 %v4138
        %4600 = vmatprep.subr.bf16.mxu0 %v4135
        %4601 = vmatpush1.bf16.msra.mxu0 %v4134
        %4602 = vmatprep.subr.bf16.mxu0 %v4131
        %4603 = vmatpush1.bf16.msra.mxu0 %v4130
        %4604 = vmatprep.subr.bf16.mxu0 %v4127
        %4605 = vmatpush1.bf16.msra.mxu0 %v4126
        %4606 = vmatprep.subr.bf16.mxu0 %v4123
        %4607 = vmatpush1.bf16.msra.mxu0 %v4122
        %4608 = vmatprep.subr.bf16.mxu0 %v4183
        %4609 = vmatpush2.bf16.msra.mxu0 %v4182
        %4610 = vmatprep.subr.bf16.mxu0 %v4179
        %4611 = vmatpush2.bf16.msra.mxu0 %v4178
        %4612 = vmatprep.subr.bf16.mxu0 %v4175
        %4613 = vmatpush2.bf16.msra.mxu0 %v4174
        %4614 = vmatprep.subr.bf16.mxu0 %v4171
        %4615 = vmatpush2.bf16.msra.mxu0 %v4170
        %4616 = vmatprep.subr.bf16.mxu0 %v4167
        %4617 = vmatpush2.bf16.msra.mxu0 %v4166
        %4618 = vmatprep.subr.bf16.mxu0 %v4163
        %4619 = vmatpush2.bf16.msra.mxu0 %v4162
        %4620 = vmatprep.subr.bf16.mxu0 %v4159
        %4621 = vmatpush2.bf16.msra.mxu0 %v4158
        %4622 = vmatprep.subr.bf16.mxu0 %v4155
        %4623 = vmatpush2.bf16.msra.mxu0 %v4154
        %4624 = vmatprep.mubr.bf16.mxu0 %v2945
        %4625 = vmatmul.mubr.bf16.gmra.mxu0 %v2944
        %v4626 = vpop.f32.mrf.mxu0
        %v4627 = vadd.f32 %v4584, %v4626
        %v4628 = vpop.f32.mrf.mxu0
        %v4629 = vadd.f32 %v4586, %v4628
        %v4630 = vpop.f32.mrf.mxu0
        %v4631 = vadd.f32 %v4588, %v4630
        %v4632 = vpop.f32.mrf.mxu0
        %v4633 = vadd.f32 %v4590, %v4632
        %4634 = vdwg.mxu0
        %4635 = vmatprep.subr.bf16.mxu0 %v4215
        %4636 = vmatpush1.bf16.msra.mxu0 %v4214
        %4637 = vmatprep.subr.bf16.mxu0 %v4211
        %4638 = vmatpush1.bf16.msra.mxu0 %v4210
        %4639 = vmatprep.subr.bf16.mxu0 %v4207
        %4640 = vmatpush1.bf16.msra.mxu0 %v4206
        %4641 = vmatprep.subr.bf16.mxu0 %v4203
        %4642 = vmatpush1.bf16.msra.mxu0 %v4202
        %4643 = vmatprep.subr.bf16.mxu0 %v4199
        %4644 = vmatpush1.bf16.msra.mxu0 %v4198
        %4645 = vmatprep.subr.bf16.mxu0 %v4195
        %4646 = vmatpush1.bf16.msra.mxu0 %v4194
        %4647 = vmatprep.subr.bf16.mxu0 %v4191
        %4648 = vmatpush1.bf16.msra.mxu0 %v4190
        %4649 = vmatprep.subr.bf16.mxu0 %v4187
        %4650 = vmatpush1.bf16.msra.mxu0 %v4186
        %4651 = vmatprep.subr.bf16.mxu0 %v4247
        %4652 = vmatpush2.bf16.msra.mxu0 %v4246
        %4653 = vmatprep.subr.bf16.mxu0 %v4243
        %4654 = vmatpush2.bf16.msra.mxu0 %v4242
        %4655 = vmatprep.subr.bf16.mxu0 %v4239
        %4656 = vmatpush2.bf16.msra.mxu0 %v4238
        %4657 = vmatprep.subr.bf16.mxu0 %v4235
        %4658 = vmatpush2.bf16.msra.mxu0 %v4234
        %4659 = vmatprep.subr.bf16.mxu0 %v4231
        %4660 = vmatpush2.bf16.msra.mxu0 %v4230
        %4661 = vmatprep.subr.bf16.mxu0 %v4227
        %4662 = vmatpush2.bf16.msra.mxu0 %v4226
        %4663 = vmatprep.subr.bf16.mxu0 %v4223
        %4664 = vmatpush2.bf16.msra.mxu0 %v4222
        %4665 = vmatprep.subr.bf16.mxu0 %v4219
        %4666 = vmatpush2.bf16.msra.mxu0 %v4218
        %4667 = vmatprep.mubr.bf16.mxu0 %v2947
        %4668 = vmatmul.mubr.bf16.gmra.mxu0 %v2946
        %v4669 = vpop.f32.mrf.mxu0
        %v4670 = vadd.f32 %v4627, %v4669
        %v4671 = vpop.f32.mrf.mxu0
        %v4672 = vadd.f32 %v4629, %v4671
        %v4673 = vpop.f32.mrf.mxu0
        %v4674 = vadd.f32 %v4631, %v4673
        %v4675 = vpop.f32.mrf.mxu0
        %v4676 = vadd.f32 %v4633, %v4675
        %4677 = vdwg.mxu0
        %4678 = vmatprep.subr.bf16.mxu0 %v4025
        %4679 = vmatpush1.bf16.msra.mxu0 %v4024
        %4680 = vmatprep.subr.bf16.mxu0 %v4021
        %4681 = vmatpush1.bf16.msra.mxu0 %v4020
        %4682 = vmatprep.subr.bf16.mxu0 %v4017
        %4683 = vmatpush1.bf16.msra.mxu0 %v4016
        %4684 = vmatprep.subr.bf16.mxu0 %v4013
        %4685 = vmatpush1.bf16.msra.mxu0 %v4012
        %4686 = vmatprep.subr.bf16.mxu0 %v4009
        %4687 = vmatpush1.bf16.msra.mxu0 %v4008
        %4688 = vmatprep.subr.bf16.mxu0 %v4005
        %4689 = vmatpush1.bf16.msra.mxu0 %v4004
        %4690 = vmatprep.subr.bf16.mxu0 %v4001
        %4691 = vmatpush1.bf16.msra.mxu0 %v4000
        %4692 = vmatprep.subr.bf16.mxu0 %v3997
        %4693 = vmatpush1.bf16.msra.mxu0 %v3996
        %4694 = vmatprep.subr.bf16.mxu0 %v4057
        %4695 = vmatpush2.bf16.msra.mxu0 %v4056
        %4696 = vmatprep.subr.bf16.mxu0 %v4053
        %4697 = vmatpush2.bf16.msra.mxu0 %v4052
        %4698 = vmatprep.subr.bf16.mxu0 %v4049
        %4699 = vmatpush2.bf16.msra.mxu0 %v4048
        %4700 = vmatprep.subr.bf16.mxu0 %v4045
        %4701 = vmatpush2.bf16.msra.mxu0 %v4044
        %4702 = vmatprep.subr.bf16.mxu0 %v4041
        %4703 = vmatpush2.bf16.msra.mxu0 %v4040
        %4704 = vmatprep.subr.bf16.mxu0 %v4037
        %4705 = vmatpush2.bf16.msra.mxu0 %v4036
        %4706 = vmatprep.subr.bf16.mxu0 %v4033
        %4707 = vmatpush2.bf16.msra.mxu0 %v4032
        %4708 = vmatprep.subr.bf16.mxu0 %v4029
        %4709 = vmatpush2.bf16.msra.mxu0 %v4028
        %4710 = vmatprep.mubr.bf16.mxu0 %v2941
        %4711 = vmatmul.mubr.bf16.gmra.mxu0 %v2940
        %v4712 = vpop.f32.mrf.mxu0
        %v4713 = vadd.f32 %v3217, %v4712
        %v4714 = vpop.f32.mrf.mxu0
        %v4715 = vadd.f32 %v3221, %v4714
        %v4716 = vpop.f32.mrf.mxu0
        %v4717 = vadd.f32 %v3217, %v4716
        %v4718 = vpop.f32.mrf.mxu0
        %v4719 = vadd.f32 %v3221, %v4718
        %4720 = vdwg.mxu0
        %4721 = vmatprep.subr.bf16.mxu0 %v4089
        %4722 = vmatpush1.bf16.msra.mxu0 %v4088
        %4723 = vmatprep.subr.bf16.mxu0 %v4085
        %4724 = vmatpush1.bf16.msra.mxu0 %v4084
        %4725 = vmatprep.subr.bf16.mxu0 %v4081
        %4726 = vmatpush1.bf16.msra.mxu0 %v4080
        %4727 = vmatprep.subr.bf16.mxu0 %v4077
        %4728 = vmatpush1.bf16.msra.mxu0 %v4076
        %4729 = vmatprep.subr.bf16.mxu0 %v4073
        %4730 = vmatpush1.bf16.msra.mxu0 %v4072
        %4731 = vmatprep.subr.bf16.mxu0 %v4069
        %4732 = vmatpush1.bf16.msra.mxu0 %v4068
        %4733 = vmatprep.subr.bf16.mxu0 %v4065
        %4734 = vmatpush1.bf16.msra.mxu0 %v4064
        %4735 = vmatprep.subr.bf16.mxu0 %v4061
        %4736 = vmatpush1.bf16.msra.mxu0 %v4060
        %4737 = vmatprep.subr.bf16.mxu0 %v4121
        %4738 = vmatpush2.bf16.msra.mxu0 %v4120
        %4739 = vmatprep.subr.bf16.mxu0 %v4117
        %4740 = vmatpush2.bf16.msra.mxu0 %v4116
        %4741 = vmatprep.subr.bf16.mxu0 %v4113
        %4742 = vmatpush2.bf16.msra.mxu0 %v4112
        %4743 = vmatprep.subr.bf16.mxu0 %v4109
        %4744 = vmatpush2.bf16.msra.mxu0 %v4108
        %4745 = vmatprep.subr.bf16.mxu0 %v4105
        %4746 = vmatpush2.bf16.msra.mxu0 %v4104
        %4747 = vmatprep.subr.bf16.mxu0 %v4101
        %4748 = vmatpush2.bf16.msra.mxu0 %v4100
        %4749 = vmatprep.subr.bf16.mxu0 %v4097
        %4750 = vmatpush2.bf16.msra.mxu0 %v4096
        %4751 = vmatprep.subr.bf16.mxu0 %v4093
        %4752 = vmatpush2.bf16.msra.mxu0 %v4092
        %4753 = vmatprep.mubr.bf16.mxu0 %v2943
        %4754 = vmatmul.mubr.bf16.gmra.mxu0 %v2942
        %v4755 = vpop.f32.mrf.mxu0
        %v4756 = vadd.f32 %v4713, %v4755
        %v4757 = vpop.f32.mrf.mxu0
        %v4758 = vadd.f32 %v4715, %v4757
        %v4759 = vpop.f32.mrf.mxu0
        %v4760 = vadd.f32 %v4717, %v4759
        %v4761 = vpop.f32.mrf.mxu0
        %v4762 = vadd.f32 %v4719, %v4761
        %4763 = vdwg.mxu0
        %4764 = vmatprep.subr.bf16.mxu0 %v4153
        %4765 = vmatpush1.bf16.msra.mxu0 %v4152
        %4766 = vmatprep.subr.bf16.mxu0 %v4149
        %4767 = vmatpush1.bf16.msra.mxu0 %v4148
        %4768 = vmatprep.subr.bf16.mxu0 %v4145
        %4769 = vmatpush1.bf16.msra.mxu0 %v4144
        %4770 = vmatprep.subr.bf16.mxu0 %v4141
        %4771 = vmatpush1.bf16.msra.mxu0 %v4140
        %4772 = vmatprep.subr.bf16.mxu0 %v4137
        %4773 = vmatpush1.bf16.msra.mxu0 %v4136
        %4774 = vmatprep.subr.bf16.mxu0 %v4133
        %4775 = vmatpush1.bf16.msra.mxu0 %v4132
        %4776 = vmatprep.subr.bf16.mxu0 %v4129
        %4777 = vmatpush1.bf16.msra.mxu0 %v4128
        %4778 = vmatprep.subr.bf16.mxu0 %v4125
        %4779 = vmatpush1.bf16.msra.mxu0 %v4124
        %4780 = vmatprep.subr.bf16.mxu0 %v4185
        %4781 = vmatpush2.bf16.msra.mxu0 %v4184
        %4782 = vmatprep.subr.bf16.mxu0 %v4181
        %4783 = vmatpush2.bf16.msra.mxu0 %v4180
        %4784 = vmatprep.subr.bf16.mxu0 %v4177
        %4785 = vmatpush2.bf16.msra.mxu0 %v4176
        %4786 = vmatprep.subr.bf16.mxu0 %v4173
        %4787 = vmatpush2.bf16.msra.mxu0 %v4172
        %4788 = vmatprep.subr.bf16.mxu0 %v4169
        %4789 = vmatpush2.bf16.msra.mxu0 %v4168
        %4790 = vmatprep.subr.bf16.mxu0 %v4165
        %4791 = vmatpush2.bf16.msra.mxu0 %v4164
        %4792 = vmatprep.subr.bf16.mxu0 %v4161
        %4793 = vmatpush2.bf16.msra.mxu0 %v4160
        %4794 = vmatprep.subr.bf16.mxu0 %v4157
        %4795 = vmatpush2.bf16.msra.mxu0 %v4156
        %4796 = vmatprep.mubr.bf16.mxu0 %v2945
        %4797 = vmatmul.mubr.bf16.gmra.mxu0 %v2944
        %v4798 = vpop.f32.mrf.mxu0
        %v4799 = vadd.f32 %v4756, %v4798
        %v4800 = vpop.f32.mrf.mxu0
        %v4801 = vadd.f32 %v4758, %v4800
        %v4802 = vpop.f32.mrf.mxu0
        %v4803 = vadd.f32 %v4760, %v4802
        %v4804 = vpop.f32.mrf.mxu0
        %v4805 = vadd.f32 %v4762, %v4804
        %4806 = vdwg.mxu0
        %4807 = vmatprep.subr.bf16.mxu0 %v4217
        %4808 = vmatpush1.bf16.msra.mxu0 %v4216
        %4809 = vmatprep.subr.bf16.mxu0 %v4213
        %4810 = vmatpush1.bf16.msra.mxu0 %v4212
        %4811 = vmatprep.subr.bf16.mxu0 %v4209
        %4812 = vmatpush1.bf16.msra.mxu0 %v4208
        %4813 = vmatprep.subr.bf16.mxu0 %v4205
        %4814 = vmatpush1.bf16.msra.mxu0 %v4204
        %4815 = vmatprep.subr.bf16.mxu0 %v4201
        %4816 = vmatpush1.bf16.msra.mxu0 %v4200
        %4817 = vmatprep.subr.bf16.mxu0 %v4197
        %4818 = vmatpush1.bf16.msra.mxu0 %v4196
        %4819 = vmatprep.subr.bf16.mxu0 %v4193
        %4820 = vmatpush1.bf16.msra.mxu0 %v4192
        %4821 = vmatprep.subr.bf16.mxu0 %v4189
        %4822 = vmatpush1.bf16.msra.mxu0 %v4188
        %4823 = vmatprep.subr.bf16.mxu0 %v4249
        %4824 = vmatpush2.bf16.msra.mxu0 %v4248
        %4825 = vmatprep.subr.bf16.mxu0 %v4245
        %4826 = vmatpush2.bf16.msra.mxu0 %v4244
        %4827 = vmatprep.subr.bf16.mxu0 %v4241
        %4828 = vmatpush2.bf16.msra.mxu0 %v4240
        %4829 = vmatprep.subr.bf16.mxu0 %v4237
        %4830 = vmatpush2.bf16.msra.mxu0 %v4236
        %4831 = vmatprep.subr.bf16.mxu0 %v4233
        %4832 = vmatpush2.bf16.msra.mxu0 %v4232
        %4833 = vmatprep.subr.bf16.mxu0 %v4229
        %4834 = vmatpush2.bf16.msra.mxu0 %v4228
        %4835 = vmatprep.subr.bf16.mxu0 %v4225
        %4836 = vmatpush2.bf16.msra.mxu0 %v4224
        %4837 = vmatprep.subr.bf16.mxu0 %v4221
        %4838 = vmatpush2.bf16.msra.mxu0 %v4220
        %4839 = vmatprep.mubr.bf16.mxu0 %v2947
        %4840 = vmatmul.mubr.bf16.gmra.mxu0 %v2946
        %v4841 = vpop.f32.mrf.mxu0
        %v4842 = vadd.f32 %v4799, %v4841
        %v4843 = vpop.f32.mrf.mxu0
        %v4844 = vadd.f32 %v4801, %v4843
        %v4845 = vpop.f32.mrf.mxu0
        %v4846 = vadd.f32 %v4803, %v4845
        %v4847 = vpop.f32.mrf.mxu0
        %v4848 = vadd.f32 %v4805, %v4847
        %4849 = vdwg.mxu0
        %v4850 = vpack.c.bf16 %v4674, %v4670
        %v4851 = vpack.c.bf16 %v4676, %v4672
        %v4852 = vpack.c.bf16 %v4846, %v4842
        %v4853 = vpack.c.bf16 %v4848, %v4844
        %v4854 = vtanh.bf16.pop %v4850
        %v4855 = vtanh.bf16.pop %v4851
        %v4856 = vtanh.bf16.pop %v4852
        %v4857 = vtanh.bf16.pop %v4853
        %v4858 = vld [vmem:[#allocation9] sm:$0xff]
        %v4859 = vld [vmem:[#allocation9 + $0x8] sm:$0xff]
        %v4860 = vld [vmem:[#allocation9 + $0x10] sm:$0xff]
        %v4861 = vld [vmem:[#allocation9 + $0x18] sm:$0xff]
        %v4862 = vld [vmem:[#allocation9 + $0x20] sm:$0xff]
        %v4863 = vld [vmem:[#allocation9 + $0x28] sm:$0xff]
        %v4864 = vld [vmem:[#allocation9 + $0x30] sm:$0xff]
        %v4865 = vld [vmem:[#allocation9 + $0x38] sm:$0xff]
        %v4866 = vld [vmem:[#allocation9 + $0x40] sm:$0xff]
        %v4867 = vld [vmem:[#allocation9 + $0x48] sm:$0xff]
        %v4868 = vld [vmem:[#allocation9 + $0x50] sm:$0xff]
        %v4869 = vld [vmem:[#allocation9 + $0x58] sm:$0xff]
        %v4870 = vld [vmem:[#allocation9 + $0x60] sm:$0xff]
        %v4871 = vld [vmem:[#allocation9 + $0x68] sm:$0xff]
        %v4872 = vld [vmem:[#allocation9 + $0x70] sm:$0xff]
        %v4873 = vld [vmem:[#allocation9 + $0x78] sm:$0xff]
        %v4874 = vld [vmem:[#allocation9 + $0x80] sm:$0xff]
        %v4875 = vld [vmem:[#allocation9 + $0x88] sm:$0xff]
        %v4876 = vld [vmem:[#allocation9 + $0x90] sm:$0xff]
        %v4877 = vld [vmem:[#allocation9 + $0x98] sm:$0xff]
        %v4878 = vld [vmem:[#allocation9 + $0xa0] sm:$0xff]
        %v4879 = vld [vmem:[#allocation9 + $0xa8] sm:$0xff]
        %v4880 = vld [vmem:[#allocation9 + $0xb0] sm:$0xff]
        %v4881 = vld [vmem:[#allocation9 + $0xb8] sm:$0xff]
        %v4882 = vld [vmem:[#allocation9 + $0xc0] sm:$0xff]
        %v4883 = vld [vmem:[#allocation9 + $0xc8] sm:$0xff]
        %v4884 = vld [vmem:[#allocation9 + $0xd0] sm:$0xff]
        %v4885 = vld [vmem:[#allocation9 + $0xd8] sm:$0xff]
        %v4886 = vld [vmem:[#allocation9 + $0xe0] sm:$0xff]
        %v4887 = vld [vmem:[#allocation9 + $0xe8] sm:$0xff]
        %v4888 = vld [vmem:[#allocation9 + $0xf0] sm:$0xff]
        %v4889 = vld [vmem:[#allocation9 + $0xf8] sm:$0xff]
        %v4890 = vld [vmem:[#allocation9 + $0x100] sm:$0xff]
        %v4891 = vld [vmem:[#allocation9 + $0x108] sm:$0xff]
        %v4892 = vld [vmem:[#allocation9 + $0x110] sm:$0xff]
        %v4893 = vld [vmem:[#allocation9 + $0x118] sm:$0xff]
        %v4894 = vld [vmem:[#allocation9 + $0x120] sm:$0xff]
        %v4895 = vld [vmem:[#allocation9 + $0x128] sm:$0xff]
        %v4896 = vld [vmem:[#allocation9 + $0x130] sm:$0xff]
        %v4897 = vld [vmem:[#allocation9 + $0x138] sm:$0xff]
        %v4898 = vld [vmem:[#allocation9 + $0x140] sm:$0xff]
        %v4899 = vld [vmem:[#allocation9 + $0x148] sm:$0xff]
        %v4900 = vld [vmem:[#allocation9 + $0x150] sm:$0xff]
        %v4901 = vld [vmem:[#allocation9 + $0x158] sm:$0xff]
        %v4902 = vld [vmem:[#allocation9 + $0x160] sm:$0xff]
        %v4903 = vld [vmem:[#allocation9 + $0x168] sm:$0xff]
        %v4904 = vld [vmem:[#allocation9 + $0x170] sm:$0xff]
        %v4905 = vld [vmem:[#allocation9 + $0x178] sm:$0xff]
        %v4906 = vld [vmem:[#allocation9 + $0x180] sm:$0xff]
        %v4907 = vld [vmem:[#allocation9 + $0x188] sm:$0xff]
        %v4908 = vld [vmem:[#allocation9 + $0x190] sm:$0xff]
        %v4909 = vld [vmem:[#allocation9 + $0x198] sm:$0xff]
        %v4910 = vld [vmem:[#allocation9 + $0x1a0] sm:$0xff]
        %v4911 = vld [vmem:[#allocation9 + $0x1a8] sm:$0xff]
        %v4912 = vld [vmem:[#allocation9 + $0x1b0] sm:$0xff]
        %v4913 = vld [vmem:[#allocation9 + $0x1b8] sm:$0xff]
        %v4914 = vld [vmem:[#allocation9 + $0x1c0] sm:$0xff]
        %v4915 = vld [vmem:[#allocation9 + $0x1c8] sm:$0xff]
        %v4916 = vld [vmem:[#allocation9 + $0x1d0] sm:$0xff]
        %v4917 = vld [vmem:[#allocation9 + $0x1d8] sm:$0xff]
        %v4918 = vld [vmem:[#allocation9 + $0x1e0] sm:$0xff]
        %v4919 = vld [vmem:[#allocation9 + $0x1e8] sm:$0xff]
        %v4920 = vld [vmem:[#allocation9 + $0x1f0] sm:$0xff]
        %v4921 = vld [vmem:[#allocation9 + $0x1f8] sm:$0xff]
        %v4922 = vld [vmem:[#allocation10] sm:$0x3]
        %v4924 = vlaneseq
        %v4925 = vshrl.u32 %v4924, 7
        %v4926 = vsub.s32 0, %v4925
        %v4927 = vrot.slane %v4922, %v4926
        %v4928 = vlaneseq
        %v4929 = vshrl.u32 %v4928, 7
        %v4930 = vsub.s32 1, %v4929
        %v4931 = vrot.slane %v4922, %v4930
        %v4998 = vunpack.c.l.b16 %v4858
        %v4999 = vunpack.c.h.b16 %v4858
        %v5000 = vunpack.c.l.b16 %v4859
        %v5001 = vunpack.c.h.b16 %v4859
        %v5002 = vunpack.c.l.b16 %v4860
        %v5003 = vunpack.c.h.b16 %v4860
        %v5004 = vunpack.c.l.b16 %v4861
        %v5005 = vunpack.c.h.b16 %v4861
        %v5006 = vunpack.c.l.b16 %v4862
        %v5007 = vunpack.c.h.b16 %v4862
        %v5008 = vunpack.c.l.b16 %v4863
        %v5009 = vunpack.c.h.b16 %v4863
        %v5010 = vunpack.c.l.b16 %v4864
        %v5011 = vunpack.c.h.b16 %v4864
        %v5012 = vunpack.c.l.b16 %v4865
        %v5013 = vunpack.c.h.b16 %v4865
        %v5014 = vunpack.c.l.b16 %v4866
        %v5015 = vunpack.c.h.b16 %v4866
        %v5016 = vunpack.c.l.b16 %v4867
        %v5017 = vunpack.c.h.b16 %v4867
        %v5018 = vunpack.c.l.b16 %v4868
        %v5019 = vunpack.c.h.b16 %v4868
        %v5020 = vunpack.c.l.b16 %v4869
        %v5021 = vunpack.c.h.b16 %v4869
        %v5022 = vunpack.c.l.b16 %v4870
        %v5023 = vunpack.c.h.b16 %v4870
        %v5024 = vunpack.c.l.b16 %v4871
        %v5025 = vunpack.c.h.b16 %v4871
        %v5026 = vunpack.c.l.b16 %v4872
        %v5027 = vunpack.c.h.b16 %v4872
        %v5028 = vunpack.c.l.b16 %v4873
        %v5029 = vunpack.c.h.b16 %v4873
        %v5030 = vunpack.c.l.b16 %v4874
        %v5031 = vunpack.c.h.b16 %v4874
        %v5032 = vunpack.c.l.b16 %v4875
        %v5033 = vunpack.c.h.b16 %v4875
        %v5034 = vunpack.c.l.b16 %v4876
        %v5035 = vunpack.c.h.b16 %v4876
        %v5036 = vunpack.c.l.b16 %v4877
        %v5037 = vunpack.c.h.b16 %v4877
        %v5038 = vunpack.c.l.b16 %v4878
        %v5039 = vunpack.c.h.b16 %v4878
        %v5040 = vunpack.c.l.b16 %v4879
        %v5041 = vunpack.c.h.b16 %v4879
        %v5042 = vunpack.c.l.b16 %v4880
        %v5043 = vunpack.c.h.b16 %v4880
        %v5044 = vunpack.c.l.b16 %v4881
        %v5045 = vunpack.c.h.b16 %v4881
        %v5046 = vunpack.c.l.b16 %v4882
        %v5047 = vunpack.c.h.b16 %v4882
        %v5048 = vunpack.c.l.b16 %v4883
        %v5049 = vunpack.c.h.b16 %v4883
        %v5050 = vunpack.c.l.b16 %v4884
        %v5051 = vunpack.c.h.b16 %v4884
        %v5052 = vunpack.c.l.b16 %v4885
        %v5053 = vunpack.c.h.b16 %v4885
        %v5054 = vunpack.c.l.b16 %v4886
        %v5055 = vunpack.c.h.b16 %v4886
        %v5056 = vunpack.c.l.b16 %v4887
        %v5057 = vunpack.c.h.b16 %v4887
        %v5058 = vunpack.c.l.b16 %v4888
        %v5059 = vunpack.c.h.b16 %v4888
        %v5060 = vunpack.c.l.b16 %v4889
        %v5061 = vunpack.c.h.b16 %v4889
        %v5062 = vunpack.c.l.b16 %v4890
        %v5063 = vunpack.c.h.b16 %v4890
        %v5064 = vunpack.c.l.b16 %v4891
        %v5065 = vunpack.c.h.b16 %v4891
        %v5066 = vunpack.c.l.b16 %v4892
        %v5067 = vunpack.c.h.b16 %v4892
        %v5068 = vunpack.c.l.b16 %v4893
        %v5069 = vunpack.c.h.b16 %v4893
        %v5070 = vunpack.c.l.b16 %v4894
        %v5071 = vunpack.c.h.b16 %v4894
        %v5072 = vunpack.c.l.b16 %v4895
        %v5073 = vunpack.c.h.b16 %v4895
        %v5074 = vunpack.c.l.b16 %v4896
        %v5075 = vunpack.c.h.b16 %v4896
        %v5076 = vunpack.c.l.b16 %v4897
        %v5077 = vunpack.c.h.b16 %v4897
        %v5078 = vunpack.c.l.b16 %v4898
        %v5079 = vunpack.c.h.b16 %v4898
        %v5080 = vunpack.c.l.b16 %v4899
        %v5081 = vunpack.c.h.b16 %v4899
        %v5082 = vunpack.c.l.b16 %v4900
        %v5083 = vunpack.c.h.b16 %v4900
        %v5084 = vunpack.c.l.b16 %v4901
        %v5085 = vunpack.c.h.b16 %v4901
        %v5086 = vunpack.c.l.b16 %v4902
        %v5087 = vunpack.c.h.b16 %v4902
        %v5088 = vunpack.c.l.b16 %v4903
        %v5089 = vunpack.c.h.b16 %v4903
        %v5090 = vunpack.c.l.b16 %v4904
        %v5091 = vunpack.c.h.b16 %v4904
        %v5092 = vunpack.c.l.b16 %v4905
        %v5093 = vunpack.c.h.b16 %v4905
        %v5094 = vunpack.c.l.b16 %v4906
        %v5095 = vunpack.c.h.b16 %v4906
        %v5096 = vunpack.c.l.b16 %v4907
        %v5097 = vunpack.c.h.b16 %v4907
        %v5098 = vunpack.c.l.b16 %v4908
        %v5099 = vunpack.c.h.b16 %v4908
        %v5100 = vunpack.c.l.b16 %v4909
        %v5101 = vunpack.c.h.b16 %v4909
        %v5102 = vunpack.c.l.b16 %v4910
        %v5103 = vunpack.c.h.b16 %v4910
        %v5104 = vunpack.c.l.b16 %v4911
        %v5105 = vunpack.c.h.b16 %v4911
        %v5106 = vunpack.c.l.b16 %v4912
        %v5107 = vunpack.c.h.b16 %v4912
        %v5108 = vunpack.c.l.b16 %v4913
        %v5109 = vunpack.c.h.b16 %v4913
        %v5110 = vunpack.c.l.b16 %v4914
        %v5111 = vunpack.c.h.b16 %v4914
        %v5112 = vunpack.c.l.b16 %v4915
        %v5113 = vunpack.c.h.b16 %v4915
        %v5114 = vunpack.c.l.b16 %v4916
        %v5115 = vunpack.c.h.b16 %v4916
        %v5116 = vunpack.c.l.b16 %v4917
        %v5117 = vunpack.c.h.b16 %v4917
        %v5118 = vunpack.c.l.b16 %v4918
        %v5119 = vunpack.c.h.b16 %v4918
        %v5120 = vunpack.c.l.b16 %v4919
        %v5121 = vunpack.c.h.b16 %v4919
        %v5122 = vunpack.c.l.b16 %v4920
        %v5123 = vunpack.c.h.b16 %v4920
        %v5124 = vunpack.c.l.b16 %v4921
        %v5125 = vunpack.c.h.b16 %v4921
        %v5126 = vpack.c.b16 %v5000, %v4998
        %v5127 = vpack.c.b16 %v5001, %v4999
        %v5128 = vpack.c.b16 %v5004, %v5002
        %v5129 = vpack.c.b16 %v5005, %v5003
        %v5130 = vpack.c.b16 %v5008, %v5006
        %v5131 = vpack.c.b16 %v5009, %v5007
        %v5132 = vpack.c.b16 %v5012, %v5010
        %v5133 = vpack.c.b16 %v5013, %v5011
        %v5134 = vpack.c.b16 %v5016, %v5014
        %v5135 = vpack.c.b16 %v5017, %v5015
        %v5136 = vpack.c.b16 %v5020, %v5018
        %v5137 = vpack.c.b16 %v5021, %v5019
        %v5138 = vpack.c.b16 %v5024, %v5022
        %v5139 = vpack.c.b16 %v5025, %v5023
        %v5140 = vpack.c.b16 %v5028, %v5026
        %v5141 = vpack.c.b16 %v5029, %v5027
        %v5142 = vpack.c.b16 %v5032, %v5030
        %v5143 = vpack.c.b16 %v5033, %v5031
        %v5144 = vpack.c.b16 %v5036, %v5034
        %v5145 = vpack.c.b16 %v5037, %v5035
        %v5146 = vpack.c.b16 %v5040, %v5038
        %v5147 = vpack.c.b16 %v5041, %v5039
        %v5148 = vpack.c.b16 %v5044, %v5042
        %v5149 = vpack.c.b16 %v5045, %v5043
        %v5150 = vpack.c.b16 %v5048, %v5046
        %v5151 = vpack.c.b16 %v5049, %v5047
        %v5152 = vpack.c.b16 %v5052, %v5050
        %v5153 = vpack.c.b16 %v5053, %v5051
        %v5154 = vpack.c.b16 %v5056, %v5054
        %v5155 = vpack.c.b16 %v5057, %v5055
        %v5156 = vpack.c.b16 %v5060, %v5058
        %v5157 = vpack.c.b16 %v5061, %v5059
        %v5158 = vpack.c.b16 %v5064, %v5062
        %v5159 = vpack.c.b16 %v5065, %v5063
        %v5160 = vpack.c.b16 %v5068, %v5066
        %v5161 = vpack.c.b16 %v5069, %v5067
        %v5162 = vpack.c.b16 %v5072, %v5070
        %v5163 = vpack.c.b16 %v5073, %v5071
        %v5164 = vpack.c.b16 %v5076, %v5074
        %v5165 = vpack.c.b16 %v5077, %v5075
        %v5166 = vpack.c.b16 %v5080, %v5078
        %v5167 = vpack.c.b16 %v5081, %v5079
        %v5168 = vpack.c.b16 %v5084, %v5082
        %v5169 = vpack.c.b16 %v5085, %v5083
        %v5170 = vpack.c.b16 %v5088, %v5086
        %v5171 = vpack.c.b16 %v5089, %v5087
        %v5172 = vpack.c.b16 %v5092, %v5090
        %v5173 = vpack.c.b16 %v5093, %v5091
        %v5174 = vpack.c.b16 %v5096, %v5094
        %v5175 = vpack.c.b16 %v5097, %v5095
        %v5176 = vpack.c.b16 %v5100, %v5098
        %v5177 = vpack.c.b16 %v5101, %v5099
        %v5178 = vpack.c.b16 %v5104, %v5102
        %v5179 = vpack.c.b16 %v5105, %v5103
        %v5180 = vpack.c.b16 %v5108, %v5106
        %v5181 = vpack.c.b16 %v5109, %v5107
        %v5182 = vpack.c.b16 %v5112, %v5110
        %v5183 = vpack.c.b16 %v5113, %v5111
        %v5184 = vpack.c.b16 %v5116, %v5114
        %v5185 = vpack.c.b16 %v5117, %v5115
        %v5186 = vpack.c.b16 %v5120, %v5118
        %v5187 = vpack.c.b16 %v5121, %v5119
        %v5188 = vpack.c.b16 %v5124, %v5122
        %v5189 = vpack.c.b16 %v5125, %v5123
        %5254 = vmatprep.subr.bf16.mxu0 %v5141
        %5255 = vmatpush1.bf16.msra.mxu0 %v5140
        %5256 = vmatprep.subr.bf16.mxu0 %v5139
        %5257 = vmatpush1.bf16.msra.mxu0 %v5138
        %5258 = vmatprep.subr.bf16.mxu0 %v5137
        %5259 = vmatpush1.bf16.msra.mxu0 %v5136
        %5260 = vmatprep.subr.bf16.mxu0 %v5135
        %5261 = vmatpush1.bf16.msra.mxu0 %v5134
        %5262 = vmatprep.subr.bf16.mxu0 %v5133
        %5263 = vmatpush1.bf16.msra.mxu0 %v5132
        %5264 = vmatprep.subr.bf16.mxu0 %v5131
        %5265 = vmatpush1.bf16.msra.mxu0 %v5130
        %5266 = vmatprep.subr.bf16.mxu0 %v5129
        %5267 = vmatpush1.bf16.msra.mxu0 %v5128
        %5268 = vmatprep.subr.bf16.mxu0 %v5127
        %5269 = vmatpush1.bf16.msra.mxu0 %v5126
        %5270 = vmatprep.subr.bf16.mxu0 %v5157
        %5271 = vmatpush2.bf16.msra.mxu0 %v5156
        %5272 = vmatprep.subr.bf16.mxu0 %v5155
        %5273 = vmatpush2.bf16.msra.mxu0 %v5154
        %5274 = vmatprep.subr.bf16.mxu0 %v5153
        %5275 = vmatpush2.bf16.msra.mxu0 %v5152
        %5276 = vmatprep.subr.bf16.mxu0 %v5151
        %5277 = vmatpush2.bf16.msra.mxu0 %v5150
        %5278 = vmatprep.subr.bf16.mxu0 %v5149
        %5279 = vmatpush2.bf16.msra.mxu0 %v5148
        %5280 = vmatprep.subr.bf16.mxu0 %v5147
        %5281 = vmatpush2.bf16.msra.mxu0 %v5146
        %5282 = vmatprep.subr.bf16.mxu0 %v5145
        %5283 = vmatpush2.bf16.msra.mxu0 %v5144
        %5284 = vmatprep.subr.bf16.mxu0 %v5143
        %5285 = vmatpush2.bf16.msra.mxu0 %v5142
        %5286 = vmatprep.mubr.bf16.mxu0 %v4855
        %5287 = vmatmul.mubr.bf16.gmra.mxu0 %v4854
        %v5288 = vpop.f32.mrf.mxu0
        %v5289 = vadd.f32 %v4927, %v5288
        %v5290 = vpop.f32.mrf.mxu0
        %v5291 = vadd.f32 %v4931, %v5290
        %v5292 = vpop.f32.mrf.mxu0
        %v5293 = vadd.f32 %v4927, %v5292
        %v5294 = vpop.f32.mrf.mxu0
        %v5295 = vadd.f32 %v4931, %v5294
        %5296 = vdwg.mxu0
        %5297 = vmatprep.subr.bf16.mxu0 %v5173
        %5298 = vmatpush1.bf16.msra.mxu0 %v5172
        %5299 = vmatprep.subr.bf16.mxu0 %v5171
        %5300 = vmatpush1.bf16.msra.mxu0 %v5170
        %5301 = vmatprep.subr.bf16.mxu0 %v5169
        %5302 = vmatpush1.bf16.msra.mxu0 %v5168
        %5303 = vmatprep.subr.bf16.mxu0 %v5167
        %5304 = vmatpush1.bf16.msra.mxu0 %v5166
        %5305 = vmatprep.subr.bf16.mxu0 %v5165
        %5306 = vmatpush1.bf16.msra.mxu0 %v5164
        %5307 = vmatprep.subr.bf16.mxu0 %v5163
        %5308 = vmatpush1.bf16.msra.mxu0 %v5162
        %5309 = vmatprep.subr.bf16.mxu0 %v5161
        %5310 = vmatpush1.bf16.msra.mxu0 %v5160
        %5311 = vmatprep.subr.bf16.mxu0 %v5159
        %5312 = vmatpush1.bf16.msra.mxu0 %v5158
        %5313 = vmatprep.subr.bf16.mxu0 %v5189
        %5314 = vmatpush2.bf16.msra.mxu0 %v5188
        %5315 = vmatprep.subr.bf16.mxu0 %v5187
        %5316 = vmatpush2.bf16.msra.mxu0 %v5186
        %5317 = vmatprep.subr.bf16.mxu0 %v5185
        %5318 = vmatpush2.bf16.msra.mxu0 %v5184
        %5319 = vmatprep.subr.bf16.mxu0 %v5183
        %5320 = vmatpush2.bf16.msra.mxu0 %v5182
        %5321 = vmatprep.subr.bf16.mxu0 %v5181
        %5322 = vmatpush2.bf16.msra.mxu0 %v5180
        %5323 = vmatprep.subr.bf16.mxu0 %v5179
        %5324 = vmatpush2.bf16.msra.mxu0 %v5178
        %5325 = vmatprep.subr.bf16.mxu0 %v5177
        %5326 = vmatpush2.bf16.msra.mxu0 %v5176
        %5327 = vmatprep.subr.bf16.mxu0 %v5175
        %5328 = vmatpush2.bf16.msra.mxu0 %v5174
        %5329 = vmatprep.mubr.bf16.mxu0 %v4857
        %5330 = vmatmul.mubr.bf16.gmra.mxu0 %v4856
        %v5331 = vpop.f32.mrf.mxu0
        %v5332 = vadd.f32 %v5289, %v5331
        %v5333 = vpop.f32.mrf.mxu0
        %v5334 = vadd.f32 %v5291, %v5333
        %v5335 = vpop.f32.mrf.mxu0
        %v5336 = vadd.f32 %v5293, %v5335
        %v5337 = vpop.f32.mrf.mxu0
        %v5338 = vadd.f32 %v5295, %v5337
        %5339 = vdwg.mxu0
        %v5340 = vpack.c.bf16 %v5336, %v5332
        %v5341 = vpack.c.bf16 %v5338, %v5334
        %v5342 = vtanh.bf16.pop %v5340
        %v5343 = vtanh.bf16.pop %v5341
        %v5344 = vld [vmem:[#allocation12] sm:$0xf]
        %v5345 = vld [vmem:[#allocation12 + $0x4] sm:$0xf]
        %v5346 = vld [vmem:[#allocation12 + $0x8] sm:$0xf]
        %v5347 = vld [vmem:[#allocation12 + $0xc] sm:$0xf]
        %v5348 = vld [vmem:[#allocation12 + $0x10] sm:$0xf]
        %v5349 = vld [vmem:[#allocation12 + $0x14] sm:$0xf]
        %v5350 = vld [vmem:[#allocation12 + $0x18] sm:$0xf]
        %v5351 = vld [vmem:[#allocation12 + $0x1c] sm:$0xf]
        %v5352 = vld [vmem:[#allocation12 + $0x20] sm:$0xf]
        %v5353 = vld [vmem:[#allocation12 + $0x24] sm:$0xf]
        %v5354 = vld [vmem:[#allocation12 + $0x28] sm:$0xf]
        %v5355 = vld [vmem:[#allocation12 + $0x2c] sm:$0xf]
        %v5356 = vld [vmem:[#allocation12 + $0x30] sm:$0xf]
        %v5357 = vld [vmem:[#allocation12 + $0x34] sm:$0xf]
        %v5358 = vld [vmem:[#allocation12 + $0x38] sm:$0xf]
        %v5359 = vld [vmem:[#allocation12 + $0x3c] sm:$0xf]
        %v5360 = vld [vmem:[#allocation12 + $0x40] sm:$0xf]
        %v5361 = vld [vmem:[#allocation12 + $0x44] sm:$0xf]
        %v5362 = vld [vmem:[#allocation12 + $0x48] sm:$0xf]
        %v5363 = vld [vmem:[#allocation12 + $0x4c] sm:$0xf]
        %v5364 = vld [vmem:[#allocation12 + $0x50] sm:$0xf]
        %v5365 = vld [vmem:[#allocation12 + $0x54] sm:$0xf]
        %v5366 = vld [vmem:[#allocation12 + $0x58] sm:$0xf]
        %v5367 = vld [vmem:[#allocation12 + $0x5c] sm:$0xf]
        %v5368 = vld [vmem:[#allocation12 + $0x60] sm:$0xf]
        %v5369 = vld [vmem:[#allocation12 + $0x64] sm:$0xf]
        %v5370 = vld [vmem:[#allocation12 + $0x68] sm:$0xf]
        %v5371 = vld [vmem:[#allocation12 + $0x6c] sm:$0xf]
        %v5372 = vld [vmem:[#allocation12 + $0x70] sm:$0xf]
        %v5373 = vld [vmem:[#allocation12 + $0x74] sm:$0xf]
        %v5374 = vld [vmem:[#allocation12 + $0x78] sm:$0xf]
        %v5375 = vld [vmem:[#allocation12 + $0x7c] sm:$0xf]
        %v5376 = vld [vmem:[#allocation13] sm:$0x1]
        %v5378 = vlaneseq
        %v5379 = vshrl.u32 %v5378, 7
        %v5380 = vsub.s32 0, %v5379
        %v5381 = vrot.slane %v5376, %v5380
        %v5415 = vunpack.c.l.b16 %v5344
        %v5416 = vunpack.c.l.b16 %v5345
        %v5417 = vunpack.c.l.b16 %v5346
        %v5418 = vunpack.c.l.b16 %v5347
        %v5419 = vunpack.c.l.b16 %v5348
        %v5420 = vunpack.c.l.b16 %v5349
        %v5421 = vunpack.c.l.b16 %v5350
        %v5422 = vunpack.c.l.b16 %v5351
        %v5423 = vunpack.c.l.b16 %v5352
        %v5424 = vunpack.c.l.b16 %v5353
        %v5425 = vunpack.c.l.b16 %v5354
        %v5426 = vunpack.c.l.b16 %v5355
        %v5427 = vunpack.c.l.b16 %v5356
        %v5428 = vunpack.c.l.b16 %v5357
        %v5429 = vunpack.c.l.b16 %v5358
        %v5430 = vunpack.c.l.b16 %v5359
        %v5431 = vunpack.c.l.b16 %v5360
        %v5432 = vunpack.c.l.b16 %v5361
        %v5433 = vunpack.c.l.b16 %v5362
        %v5434 = vunpack.c.l.b16 %v5363
        %v5435 = vunpack.c.l.b16 %v5364
        %v5436 = vunpack.c.l.b16 %v5365
        %v5437 = vunpack.c.l.b16 %v5366
        %v5438 = vunpack.c.l.b16 %v5367
        %v5439 = vunpack.c.l.b16 %v5368
        %v5440 = vunpack.c.l.b16 %v5369
        %v5441 = vunpack.c.l.b16 %v5370
        %v5442 = vunpack.c.l.b16 %v5371
        %v5443 = vunpack.c.l.b16 %v5372
        %v5444 = vunpack.c.l.b16 %v5373
        %v5445 = vunpack.c.l.b16 %v5374
        %v5446 = vunpack.c.l.b16 %v5375
        %v5447 = vpack.c.b16 %v5416, %v5415
        %v5448 = vpack.c.b16 %v5418, %v5417
        %v5449 = vpack.c.b16 %v5420, %v5419
        %v5450 = vpack.c.b16 %v5422, %v5421
        %v5451 = vpack.c.b16 %v5424, %v5423
        %v5452 = vpack.c.b16 %v5426, %v5425
        %v5453 = vpack.c.b16 %v5428, %v5427
        %v5454 = vpack.c.b16 %v5430, %v5429
        %v5455 = vpack.c.b16 %v5432, %v5431
        %v5456 = vpack.c.b16 %v5434, %v5433
        %v5457 = vpack.c.b16 %v5436, %v5435
        %v5458 = vpack.c.b16 %v5438, %v5437
        %v5459 = vpack.c.b16 %v5440, %v5439
        %v5460 = vpack.c.b16 %v5442, %v5441
        %v5461 = vpack.c.b16 %v5444, %v5443
        %v5462 = vpack.c.b16 %v5446, %v5445
        %5479 = vmatprep.subr.bf16.mxu0 0
        %5480 = vmatpush1.bf16.msra.mxu0 %v5454
        %5481 = vmatprep.subr.bf16.mxu0 0
        %5482 = vmatpush1.bf16.msra.mxu0 %v5453
        %5483 = vmatprep.subr.bf16.mxu0 0
        %5484 = vmatpush1.bf16.msra.mxu0 %v5452
        %5485 = vmatprep.subr.bf16.mxu0 0
        %5486 = vmatpush1.bf16.msra.mxu0 %v5451
        %5487 = vmatprep.subr.bf16.mxu0 0
        %5488 = vmatpush1.bf16.msra.mxu0 %v5450
        %5489 = vmatprep.subr.bf16.mxu0 0
        %5490 = vmatpush1.bf16.msra.mxu0 %v5449
        %5491 = vmatprep.subr.bf16.mxu0 0
        %5492 = vmatpush1.bf16.msra.mxu0 %v5448
        %5493 = vmatprep.subr.bf16.mxu0 0
        %5494 = vmatpush1.bf16.msra.mxu0 %v5447
        %5495 = vmatprep.subr.bf16.mxu0 0
        %5496 = vmatpush2.bf16.msra.mxu0 %v5462
        %5497 = vmatprep.subr.bf16.mxu0 0
        %5498 = vmatpush2.bf16.msra.mxu0 %v5461
        %5499 = vmatprep.subr.bf16.mxu0 0
        %5500 = vmatpush2.bf16.msra.mxu0 %v5460
        %5501 = vmatprep.subr.bf16.mxu0 0
        %5502 = vmatpush2.bf16.msra.mxu0 %v5459
        %5503 = vmatprep.subr.bf16.mxu0 0
        %5504 = vmatpush2.bf16.msra.mxu0 %v5458
        %5505 = vmatprep.subr.bf16.mxu0 0
        %5506 = vmatpush2.bf16.msra.mxu0 %v5457
        %5507 = vmatprep.subr.bf16.mxu0 0
        %5508 = vmatpush2.bf16.msra.mxu0 %v5456
        %5509 = vmatprep.subr.bf16.mxu0 0
        %5510 = vmatpush2.bf16.msra.mxu0 %v5455
        %5511 = vmatprep.mubr.bf16.mxu0 %v5343
        %5512 = vmatmul.mubr.bf16.gmra.mxu0 %v5342
        %v5513 = vpop.f32.mrf.mxu0
        %v5514 = vadd.f32 %v5381, %v5513
        %v5515 = vpop.f32.mrf.mxu0
        %v5516 = vpop.f32.mrf.mxu0
        %v5517 = vadd.f32 %v5381, %v5516
        %v5518 = vpop.f32.mrf.mxu0
        %5519 = vdwg.mxu0
        %v5520 = vpack.c.bf16 %v5517, %v5514
        %v5521 = vtanh.bf16.pop %v5520
        %v5522 = vld [vmem:[#allocation15] sm:$0xf]
        %v5523 = vld [vmem:[#allocation15 + $0x4] sm:$0xf]
        %v5524 = vld [vmem:[#allocation15 + $0x8] sm:$0xf]
        %v5525 = vld [vmem:[#allocation15 + $0xc] sm:$0xf]
        %v5526 = vld [vmem:[#allocation15 + $0x10] sm:$0xf]
        %v5527 = vld [vmem:[#allocation15 + $0x14] sm:$0xf]
        %v5528 = vld [vmem:[#allocation15 + $0x18] sm:$0xf]
        %v5529 = vld [vmem:[#allocation15 + $0x1c] sm:$0xf]
        %v5530 = vld [vmem:[#allocation15 + $0x20] sm:$0xf]
        %v5531 = vld [vmem:[#allocation15 + $0x24] sm:$0xf]
        %v5532 = vld [vmem:[#allocation15 + $0x28] sm:$0xf]
        %v5533 = vld [vmem:[#allocation15 + $0x2c] sm:$0xf]
        %v5534 = vld [vmem:[#allocation15 + $0x30] sm:$0xf]
        %v5535 = vld [vmem:[#allocation15 + $0x34] sm:$0xf]
        %v5536 = vld [vmem:[#allocation15 + $0x38] sm:$0xf]
        %v5537 = vld [vmem:[#allocation15 + $0x3c] sm:$0xf]
        %v5538 = vld [vmem:[#allocation16] sm:$0x1]
        %v5540 = vlaneseq
        %v5541 = vshrl.u32 %v5540, 7
        %v5542 = vsub.s32 0, %v5541
        %v5543 = vrot.slane %v5538, %v5542
        %v5561 = vunpack.c.l.b16 %v5522
        %v5562 = vunpack.c.l.b16 %v5523
        %v5563 = vunpack.c.l.b16 %v5524
        %v5564 = vunpack.c.l.b16 %v5525
        %v5565 = vunpack.c.l.b16 %v5526
        %v5566 = vunpack.c.l.b16 %v5527
        %v5567 = vunpack.c.l.b16 %v5528
        %v5568 = vunpack.c.l.b16 %v5529
        %v5569 = vunpack.c.l.b16 %v5530
        %v5570 = vunpack.c.l.b16 %v5531
        %v5571 = vunpack.c.l.b16 %v5532
        %v5572 = vunpack.c.l.b16 %v5533
        %v5573 = vunpack.c.l.b16 %v5534
        %v5574 = vunpack.c.l.b16 %v5535
        %v5575 = vunpack.c.l.b16 %v5536
        %v5576 = vunpack.c.l.b16 %v5537
        %v5577 = vpack.c.b16 %v5562, %v5561
        %v5578 = vpack.c.b16 %v5564, %v5563
        %v5579 = vpack.c.b16 %v5566, %v5565
        %v5580 = vpack.c.b16 %v5568, %v5567
        %v5581 = vpack.c.b16 %v5570, %v5569
        %v5582 = vpack.c.b16 %v5572, %v5571
        %v5583 = vpack.c.b16 %v5574, %v5573
        %v5584 = vpack.c.b16 %v5576, %v5575
        %5593 = vmatprep.subr.bf16.mxu0 0
        %5594 = vmatpush1.bf16.msra.mxu0 %v5584
        %5595 = vmatprep.subr.bf16.mxu0 0
        %5596 = vmatpush1.bf16.msra.mxu0 %v5583
        %5597 = vmatprep.subr.bf16.mxu0 0
        %5598 = vmatpush1.bf16.msra.mxu0 %v5582
        %5599 = vmatprep.subr.bf16.mxu0 0
        %5600 = vmatpush1.bf16.msra.mxu0 %v5581
        %5601 = vmatprep.subr.bf16.mxu0 0
        %5602 = vmatpush1.bf16.msra.mxu0 %v5580
        %5603 = vmatprep.subr.bf16.mxu0 0
        %5604 = vmatpush1.bf16.msra.mxu0 %v5579
        %5605 = vmatprep.subr.bf16.mxu0 0
        %5606 = vmatpush1.bf16.msra.mxu0 %v5578
        %5607 = vmatprep.subr.bf16.mxu0 0
        %5608 = vmatpush1.bf16.msra.mxu0 %v5577
        %5609 = vmatprep.subr.bf16.mxu0 0
        %5610 = vmatpush2.bf16.msra.mxu0 0
        %5611 = vmatprep.subr.bf16.mxu0 0
        %5612 = vmatpush2.bf16.msra.mxu0 0
        %5613 = vmatprep.subr.bf16.mxu0 0
        %5614 = vmatpush2.bf16.msra.mxu0 0
        %5615 = vmatprep.subr.bf16.mxu0 0
        %5616 = vmatpush2.bf16.msra.mxu0 0
        %5617 = vmatprep.subr.bf16.mxu0 0
        %5618 = vmatpush2.bf16.msra.mxu0 0
        %5619 = vmatprep.subr.bf16.mxu0 0
        %5620 = vmatpush2.bf16.msra.mxu0 0
        %5621 = vmatprep.subr.bf16.mxu0 0
        %5622 = vmatpush2.bf16.msra.mxu0 0
        %5623 = vmatprep.subr.bf16.mxu0 0
        %5624 = vmatpush2.bf16.msra.mxu0 0
        %5625 = vmatprep.mubr.bf16.mxu0 0
        %5626 = vmatmul.mubr.bf16.gmra.mxu0 %v5521
        %v5627 = vpop.f32.mrf.mxu0
        %v5628 = vadd.f32 %v5543, %v5627
        %v5629 = vpop.f32.mrf.mxu0
        %v5630 = vpop.f32.mrf.mxu0
        %v5631 = vadd.f32 %v5543, %v5630
        %v5632 = vpop.f32.mrf.mxu0
        %5633 = vdwg.mxu0
        %5634 = vst [vmem:[%s527] sm:$0xff] %v5628
        %5635 = vst [vmem:[%s527 + $0x8] sm:$0xff] %v5631
        %s5636 = smul.u32 2, %s28
        %p5637 = scmp.lt.s32.totalorder %s5636, 5
        %s5638 = scalar_select %p5637, %s5636, 5
        %s5639 = smul.addr %s5638, 8
        %s5640 = scalar_lea.vmem %s11, %s5639
        // Predicated region
        $region105: #{purchase_classifier.1} parent=63 // pred_check
          %p5641 = pneg %p282
        $region106: #{purchase_classifier.1} parent=63 // pred_check_branch
          %5643 = sbr.rel (%p5641) target = $region108
        $region107: #{purchase_classifier.1} parent=63 // pred_region
          %s5644 = smul.u32 2, %s28
        $region108: #{purchase_classifier.1} parent=63 // pred_fallthru
          _
      $region64: #{purchase_classifier.1} parent=5 // pred_fallthru
        _
      %p5645 = scmp.le.s32.totalorder 2, %s23
      // Predicated region
      $region109: #{purchase_classifier.1} parent=5 // pred_check
        %p5646 = pneg %p5645
      $region110: #{purchase_classifier.1} parent=5 // pred_check_branch
        %5648 = sbr.rel (%p5646) target = $region112
      $region111: #{purchase_classifier.1} parent=5 // pred_region
        %s5649 = ssub.s32 %s23, 2
        // Predicated region
        $region113: #{purchase_classifier.1} parent=111 // pred_check
          %p5650 = pneg %p288
        $region114: #{purchase_classifier.1} parent=111 // pred_check_branch
          %5652 = sbr.rel (%p5650) target = $region116
        $region115: #{purchase_classifier.1} parent=111 // pred_region
          %s5653 = smul.u32 2, %s29
          %p5654 = scmp.lt.s32.totalorder %s5653, 5
          %s5655 = scalar_select %p5654, %s5653, 5
          %s5656 = smul.addr %s5655, 8
          %s5657 = scalar_lea.vmem %s11, %s5656
        $region116: #{purchase_classifier.1} parent=111 // pred_fallthru
          _
      $region112: #{purchase_classifier.1} parent=5 // pred_fallthru
        _
    $region6: #{purchase_classifier.1} parent=1 // loop_footer
      %s27 = sadd.s32 1, %s23
    $region7: #{purchase_classifier.1} parent=1 // loop_footer_branch
      %22 = sbr.rel target = $region3
    $region8: #{purchase_classifier.1} parent=1 // loop_exit
      _
    %5658 = vsyncpa [#allocation3], 1
    %s5659 = scalar_lea.sflag [#allocation3], 1
    %5660 = vsyncpa %s5659, 1
    %5661 = vsyncpa [#allocation5], 1
    %5662 = vsyncpa [#allocation8], 1
    %5663 = vsyncpa [#allocation11], 1
    %5664 = vsyncpa [#allocation14], 1
    %5665 = vsyncpa [#allocation17], 1

</llo_original>
